<compile_context>
chip_gen: v7x
topology: tpu7x:2x2x1
jax: 0.10.0
libtpu: 0.0.40
codegen_flags: <defaults>
</compile_context>

<pallas_src>
import jax
import jax.numpy as jnp
from jax import lax
from jax.experimental import pallas as pl
from jax.experimental.pallas import tpu as pltpu


def _make_kernel(n_step, n_hop, n_layer, n_hidden):
    H = n_hidden

    def kernel(*refs):
        (attn_mem_ref, attn_wm_ref, attn_wq_ref, attn_v_ref,
         hop_wm_ref, hop_wq_ref, hop_v_ref,
         init_i_ref, init_h_ref, init_c_ref) = refs[:10]
        lstm_refs = refs[10:10 + 3 * n_layer]
        out_ref = refs[-1]

        f32 = jnp.float32
        attn_mem = attn_mem_ref[...]                                   # [N, D]
        N = attn_mem.shape[0]

        # --- hoist every constant weight load above the (unrolled) decode loop
        attn_wq = attn_wq_ref[...]                                     # [H, H]
        attn_v = attn_v_ref[...]                                       # [1, H] row
        hop_wq = hop_wq_ref[...]                                       # [H, H]
        hop_v = hop_v_ref[...]                                         # [1, H] row
        w_ih = [lstm_refs[3 * l][...] for l in range(n_layer)]         # [in, 4H]
        w_hh = [lstm_refs[3 * l + 1][...] for l in range(n_layer)]     # [H, 4H]
        bias = [lstm_refs[3 * l + 2][...] for l in range(n_layer)]     # [1, 4H]

        # MXU feature projections of the memory (done once)
        attn_feat = jnp.dot(attn_mem, attn_wm_ref[...],
                            preferred_element_type=f32)                # [N, H]
        hop_feat = jnp.dot(attn_mem, hop_wm_ref[...],
                           preferred_element_type=f32)                 # [N, H]

        def score_col(feat, query, wq, v_row):
            # unnormalized attention score as a column vector [N, 1]
            mul = jnp.dot(query, wq, preferred_element_type=f32)       # [1, H]
            t = jnp.tanh(feat + mul)                                   # [N, H]
            # v-projection on the VPU + lane reduce (no lane-dim-1 matmul)
            return jnp.sum(t * v_row, axis=1, keepdims=True)           # [N, 1]

        def attention_ctx(feat, query, wq, v_row):
            s = score_col(feat, query, wq, v_row)                      # [N, 1]
            s = s - jnp.max(s, axis=0, keepdims=True)
            e = jnp.exp(s)
            p = e / jnp.sum(e, axis=0, keepdims=True)                  # softmax over N
            return jnp.sum(p * feat, axis=0, keepdims=True)            # [1, H]

        def lstm_cell(x, h, c, wx, wh, b):
            # fused PyTorch LSTMCell: gates (i, f, g, o) on the lane axis
            gates = (jnp.dot(x, wx, preferred_element_type=f32)
                     + jnp.dot(h, wh, preferred_element_type=f32)
                     + b)                                              # [1, 4H]
            i = jax.nn.sigmoid(gates[:, 0 * H:1 * H])
            f = jax.nn.sigmoid(gates[:, 1 * H:2 * H])
            g = jnp.tanh(gates[:, 2 * H:3 * H])
            o = jax.nn.sigmoid(gates[:, 3 * H:4 * H])
            c_new = f * c + i * g
            h_new = o * jnp.tanh(c_new)
            return h_new, c_new

        lstm_in = init_i_ref[...]                                      # [1, D]
        h = [init_h_ref[l] for l in range(n_layer)]                    # each [1, H]
        c = [init_c_ref[l] for l in range(n_layer)]

        row_ids = lax.broadcasted_iota(jnp.int32, (N, 1), 0)           # [N, 1]
        selected = jnp.zeros((N, 1), dtype=jnp.bool_)

        # TODO(synk): training-mode branch (torch.distributions.Categorical
        # sampling) not implemented; this kernel is the eval-mode greedy decode.
        for step in range(n_step):
            x = lstm_in
            new_h, new_c = [], []
            for l in range(n_layer):
                hn, cn = lstm_cell(x, h[l], c[l], w_ih[l], w_hh[l], bias[l])
                new_h.append(hn)
                new_c.append(cn)
                x = hn
            h, c = new_h, new_c

            query = h[-1]                                              # [1, H]
            for _ in range(n_hop):
                query = attention_ctx(hop_feat, query, hop_wq, hop_v)

            score = score_col(attn_feat, query, attn_wq, attn_v)       # [N, 1]
            # mask out already-extracted sentences (score <- -1e18)
            score = jnp.where(selected, jnp.float32(-1e18), score)
            max_v = jnp.max(score, axis=0, keepdims=True)              # [1, 1]
            idx = jnp.min(jnp.where(score == max_v, row_ids, jnp.int32(N)),
                          axis=0, keepdims=True)                       # [1, 1]

            # write the pick straight to the output (static row, no list+concat)
            out_ref[pl.ds(step, 1), :] = idx

            is_pick = row_ids == idx                                   # [N, 1]
            selected = jnp.logical_or(selected, is_pick)
            # feedback: lstm_in = attn_mem[idx] (one-hot select + sublane reduce)
            lstm_in = jnp.sum(jnp.where(is_pick, attn_mem, 0.0),
                              axis=0, keepdims=True)                   # [1, D]

    return kernel


def ptr_extractor_rl(attn_mem, params, n_step, n_hop):
    n_layer = len(params["lstm"])
    n_hidden = params["attn_wq"].shape[0]
    inputs = [attn_mem,
              params["attn_wm"], params["attn_wq"], params["attn_v"],
              params["hop_wm"], params["hop_wq"], params["hop_v"],
              params["init_i"], params["init_h"], params["init_c"]]
    for (wx, wh, b) in params["lstm"]:
        inputs.extend([wx, wh, b])

    kernel = _make_kernel(n_step, n_hop, n_layer, n_hidden)
    out = pl.pallas_call(
        kernel,
        out_shape=jax.ShapeDtypeStruct((n_step, 1), jnp.int32),
        in_specs=[pl.BlockSpec(memory_space=pltpu.MemorySpace.VMEM)] * len(inputs),
        out_specs=pl.BlockSpec(memory_space=pltpu.MemorySpace.VMEM),
    )(*inputs)
    return out[:, 0]


def make_params(key, input_dim, n_hidden, n_layer):
    def nrm(k, shape, scale=0.1):
        return scale * jax.random.normal(k, shape, dtype=jnp.float32)

    keys = jax.random.split(key, 9 + n_layer)
    params = {
        "attn_wm": nrm(keys[0], (input_dim, n_hidden)),
        "attn_wq": nrm(keys[1], (n_hidden, n_hidden)),
        "attn_v":  nrm(keys[2], (1, n_hidden)),        # pre-transposed row layout
        "hop_wm":  nrm(keys[3], (input_dim, n_hidden)),
        "hop_wq":  nrm(keys[4], (n_hidden, n_hidden)),
        "hop_v":   nrm(keys[5], (1, n_hidden)),        # pre-transposed row layout
        "init_i":  nrm(keys[6], (1, input_dim)),
        "init_h":  nrm(keys[7], (n_layer, 1, n_hidden)),
        "init_c":  nrm(keys[8], (n_layer, 1, n_hidden)),
        "lstm": [],
    }
    for l in range(n_layer):
        in_dim = input_dim if l == 0 else n_hidden
        k1, k2, k3 = jax.random.split(keys[9 + l], 3)
        # LSTMCell weights, pre-transposed: columns = 4 gates (i, f, g, o)
        # each of width n_hidden; combined bias (b_ih + b_hh).
        params["lstm"].append((
            nrm(k1, (in_dim, 4 * n_hidden)),     # W_ih^T
            nrm(k2, (n_hidden, 4 * n_hidden)),   # W_hh^T
            nrm(k3, (1, 4 * n_hidden)),          # b
        ))
    return params


def reference(attn_mem, params, n_step, n_hop):
    """Plain-JAX replica of PtrExtractorRL.forward (eval mode) for validation."""
    H = params["attn_wq"].shape[0]
    attn_feat = attn_mem @ params["attn_wm"]
    hop_feat = attn_mem @ params["hop_wm"]
    n_layer = len(params["lstm"])

    def score_row(feat, query, wq, v_row):
        return (jnp.tanh(feat + query @ wq) @ v_row.T).T       # [1, N]

    def attention(feat, query, wq, v_row):
        s = jax.nn.softmax(score_row(feat, query, wq, v_row), axis=-1)
        return s @ feat

    lstm_in = params["init_i"]
    h = [params["init_h"][l] for l in range(n_layer)]
    c = [params["init_c"][l] for l in range(n_layer)]
    picked = []
    for _ in range(n_step):
        x = lstm_in
        nh, nc = [], []
        for l, (wx, wh, b) in enumerate(params["lstm"]):
            gates = x @ wx + h[l] @ wh + b
            i = jax.nn.sigmoid(gates[:, 0 * H:1 * H])
            f = jax.nn.sigmoid(gates[:, 1 * H:2 * H])
            g_ = jnp.tanh(gates[:, 2 * H:3 * H])
            o = jax.nn.sigmoid(gates[:, 3 * H:4 * H])
            cn = f * c[l] + i * g_
            hn = o * jnp.tanh(cn)
            nh.append(hn)
            nc.append(cn)
            x = hn
        h, c = nh, nc
        query = h[-1]
        for _ in range(n_hop):
            query = attention(hop_feat, query, params["hop_wq"], params["hop_v"])
        score = score_row(attn_feat, query, params["attn_wq"], params["attn_v"])
        for o_idx in picked:
            score = score.at[0, o_idx].set(-1e18)
        idx = int(jnp.argmax(score[0]))
        picked.append(idx)
        lstm_in = attn_mem[idx][None, :]
    return jnp.array(picked, dtype=jnp.int32)


if __name__ == "__main__":
    N, D, H, L = 8, 64, 32, 2        # num_sents, input_dim, n_hidden, n_layer
    n_hop, n_step = 1, 4

    key = jax.random.PRNGKey(0)
    k_mem, k_par = jax.random.split(key)
    attn_mem = jax.random.normal(k_mem, (N, D), dtype=jnp.float32)
    params = make_params(k_par, D, H, L)

    out = ptr_extractor_rl(attn_mem, params, n_step, n_hop)
    out = jax.block_until_ready(out)

    ref = reference(attn_mem, params, n_step, n_hop)
    assert out.shape == (n_step,), out.shape
    if not bool(jnp.all(out == ref)):
        raise AssertionError(f"mismatch: kernel={out}, ref={ref}")
    print("KERNEL_OK")
</pallas_src>

<mosaic_0001>
module attributes {stable_mosaic.version = 11 : i64} {
  func.func @kernel(%arg0: memref<8x64xf32, #tpu.memory_space<vmem>>, %arg1: memref<64x32xf32, #tpu.memory_space<vmem>>, %arg2: memref<32x32xf32, #tpu.memory_space<vmem>>, %arg3: memref<1x32xf32, #tpu.memory_space<vmem>>, %arg4: memref<64x32xf32, #tpu.memory_space<vmem>>, %arg5: memref<32x32xf32, #tpu.memory_space<vmem>>, %arg6: memref<1x32xf32, #tpu.memory_space<vmem>>, %arg7: memref<1x64xf32, #tpu.memory_space<vmem>>, %arg8: memref<2x1x32xf32, #tpu.memory_space<vmem>>, %arg9: memref<2x1x32xf32, #tpu.memory_space<vmem>>, %arg10: memref<64x128xf32, #tpu.memory_space<vmem>>, %arg11: memref<32x128xf32, #tpu.memory_space<vmem>>, %arg12: memref<1x128xf32, #tpu.memory_space<vmem>>, %arg13: memref<32x128xf32, #tpu.memory_space<vmem>>, %arg14: memref<32x128xf32, #tpu.memory_space<vmem>>, %arg15: memref<1x128xf32, #tpu.memory_space<vmem>>, %arg16: memref<4x1xi32, #tpu.memory_space<vmem>>) attributes {dimension_semantics = [], scalar_prefetch = 0 : i64, scratch_operands = 0 : i64, tpu.core_type = #tpu.core_type<tc>} {
    %c0 = arith.constant 0 : index
    %c0_0 = arith.constant 0 : index
    %0 = vector.load %arg0[%c0, %c0_0] : memref<8x64xf32, #tpu.memory_space<vmem>>, vector<8x64xf32>
    %c0_1 = arith.constant 0 : index
    %c0_2 = arith.constant 0 : index
    %1 = vector.load %arg2[%c0_1, %c0_2] : memref<32x32xf32, #tpu.memory_space<vmem>>, vector<32x32xf32>
    %c0_3 = arith.constant 0 : index
    %c0_4 = arith.constant 0 : index
    %2 = vector.load %arg3[%c0_3, %c0_4] : memref<1x32xf32, #tpu.memory_space<vmem>>, vector<1x32xf32>
    %c0_5 = arith.constant 0 : index
    %c0_6 = arith.constant 0 : index
    %3 = vector.load %arg5[%c0_5, %c0_6] : memref<32x32xf32, #tpu.memory_space<vmem>>, vector<32x32xf32>
    %c0_7 = arith.constant 0 : index
    %c0_8 = arith.constant 0 : index
    %4 = vector.load %arg6[%c0_7, %c0_8] : memref<1x32xf32, #tpu.memory_space<vmem>>, vector<1x32xf32>
    %c0_9 = arith.constant 0 : index
    %c0_10 = arith.constant 0 : index
    %5 = vector.load %arg10[%c0_9, %c0_10] : memref<64x128xf32, #tpu.memory_space<vmem>>, vector<64x128xf32>
    %c0_11 = arith.constant 0 : index
    %c0_12 = arith.constant 0 : index
    %6 = vector.load %arg13[%c0_11, %c0_12] : memref<32x128xf32, #tpu.memory_space<vmem>>, vector<32x128xf32>
    %c0_13 = arith.constant 0 : index
    %c0_14 = arith.constant 0 : index
    %7 = vector.load %arg11[%c0_13, %c0_14] : memref<32x128xf32, #tpu.memory_space<vmem>>, vector<32x128xf32>
    %c0_15 = arith.constant 0 : index
    %c0_16 = arith.constant 0 : index
    %8 = vector.load %arg14[%c0_15, %c0_16] : memref<32x128xf32, #tpu.memory_space<vmem>>, vector<32x128xf32>
    %c0_17 = arith.constant 0 : index
    %c0_18 = arith.constant 0 : index
    %9 = vector.load %arg12[%c0_17, %c0_18] : memref<1x128xf32, #tpu.memory_space<vmem>>, vector<1x128xf32>
    %c0_19 = arith.constant 0 : index
    %c0_20 = arith.constant 0 : index
    %10 = vector.load %arg15[%c0_19, %c0_20] : memref<1x128xf32, #tpu.memory_space<vmem>>, vector<1x128xf32>
    %c0_21 = arith.constant 0 : index
    %c0_22 = arith.constant 0 : index
    %11 = vector.load %arg1[%c0_21, %c0_22] : memref<64x32xf32, #tpu.memory_space<vmem>>, vector<64x32xf32>
    %cst = arith.constant dense<0.000000e+00> : vector<8x32xf32>
    %12 = tpu.matmul %0, %11, %cst {dimension_numbers = #tpu.dot_dimension_numbers<[1], [0], [0], [1], [0, 0, 1, 1], [], []>} : vector<8x64xf32>, vector<64x32xf32>, vector<8x32xf32> -> vector<8x32xf32>
    %c0_23 = arith.constant 0 : index
    %c0_24 = arith.constant 0 : index
    %13 = vector.load %arg4[%c0_23, %c0_24] : memref<64x32xf32, #tpu.memory_space<vmem>>, vector<64x32xf32>
    %cst_25 = arith.constant dense<0.000000e+00> : vector<8x32xf32>
    %14 = tpu.matmul %0, %13, %cst_25 {dimension_numbers = #tpu.dot_dimension_numbers<[1], [0], [0], [1], [0, 0, 1, 1], [], []>} : vector<8x64xf32>, vector<64x32xf32>, vector<8x32xf32> -> vector<8x32xf32>
    %c0_26 = arith.constant 0 : index
    %c0_27 = arith.constant 0 : index
    %15 = vector.load %arg7[%c0_26, %c0_27] : memref<1x64xf32, #tpu.memory_space<vmem>>, vector<1x64xf32>
    %c0_28 = arith.constant 0 : index
    %c0_29 = arith.constant 0 : index
    %c0_30 = arith.constant 0 : index
    %16 = vector.load %arg8[%c0_28, %c0_29, %c0_30] : memref<2x1x32xf32, #tpu.memory_space<vmem>>, vector<1x1x32xf32>
    %17 = vector.shape_cast %16 : vector<1x1x32xf32> to vector<1x32xf32>
    %c1 = arith.constant 1 : index
    %c0_31 = arith.constant 0 : index
    %c0_32 = arith.constant 0 : index
    %18 = vector.load %arg8[%c1, %c0_31, %c0_32] : memref<2x1x32xf32, #tpu.memory_space<vmem>>, vector<1x1x32xf32>
    %19 = vector.shape_cast %18 : vector<1x1x32xf32> to vector<1x32xf32>
    %c0_33 = arith.constant 0 : index
    %c0_34 = arith.constant 0 : index
    %c0_35 = arith.constant 0 : index
    %20 = vector.load %arg9[%c0_33, %c0_34, %c0_35] : memref<2x1x32xf32, #tpu.memory_space<vmem>>, vector<1x1x32xf32>
    %21 = vector.shape_cast %20 : vector<1x1x32xf32> to vector<1x32xf32>
    %c1_36 = arith.constant 1 : index
    %c0_37 = arith.constant 0 : index
    %c0_38 = arith.constant 0 : index
    %22 = vector.load %arg9[%c1_36, %c0_37, %c0_38] : memref<2x1x32xf32, #tpu.memory_space<vmem>>, vector<1x1x32xf32>
    %23 = vector.shape_cast %22 : vector<1x1x32xf32> to vector<1x32xf32>
    %24 = tpu.iota {dimensions = array<i32: 0>} : vector<8x1xi32>
    %false = arith.constant false
    %25 = vector.broadcast %false : i1 to vector<8x1xi1>
    %cst_39 = arith.constant dense<0.000000e+00> : vector<1x128xf32>
    %26 = tpu.matmul %15, %5, %cst_39 {dimension_numbers = #tpu.dot_dimension_numbers<[1], [0], [0], [1], [0, 0, 1, 1], [], []>} : vector<1x64xf32>, vector<64x128xf32>, vector<1x128xf32> -> vector<1x128xf32>
    %cst_40 = arith.constant dense<0.000000e+00> : vector<1x128xf32>
    %27 = tpu.matmul %17, %7, %cst_40 {dimension_numbers = #tpu.dot_dimension_numbers<[1], [0], [0], [1], [0, 0, 1, 1], [], []>} : vector<1x32xf32>, vector<32x128xf32>, vector<1x128xf32> -> vector<1x128xf32>
    %28 = arith.addf %26, %27 : vector<1x128xf32>
    %29 = arith.addf %28, %9 : vector<1x128xf32>
    %30 = vector.extract_strided_slice %29 {offsets = [0, 0], sizes = [1, 32], strides = [1, 1]} : vector<1x128xf32> to vector<1x32xf32>
    %31 = arith.negf %30 : vector<1x32xf32>
    %32 = math.exp %31 : vector<1x32xf32>
    %cst_41 = arith.constant 1.000000e+00 : f32
    %33 = vector.broadcast %cst_41 : f32 to vector<1x32xf32>
    %34 = arith.addf %33, %32 : vector<1x32xf32>
    %35 = arith.divf %33, %34 : vector<1x32xf32>
    %36 = vector.extract_strided_slice %29 {offsets = [0, 32], sizes = [1, 32], strides = [1, 1]} : vector<1x128xf32> to vector<1x32xf32>
    %37 = arith.negf %36 : vector<1x32xf32>
    %38 = math.exp %37 : vector<1x32xf32>
    %cst_42 = arith.constant 1.000000e+00 : f32
    %39 = vector.broadcast %cst_42 : f32 to vector<1x32xf32>
    %40 = arith.addf %39, %38 : vector<1x32xf32>
    %41 = arith.divf %39, %40 : vector<1x32xf32>
    %42 = vector.extract_strided_slice %29 {offsets = [0, 64], sizes = [1, 32], strides = [1, 1]} : vector<1x128xf32> to vector<1x32xf32>
    %43 = math.tanh %42 : vector<1x32xf32>
    %44 = vector.extract_strided_slice %29 {offsets = [0, 96], sizes = [1, 32], strides = [1, 1]} : vector<1x128xf32> to vector<1x32xf32>
    %45 = arith.negf %44 : vector<1x32xf32>
    %46 = math.exp %45 : vector<1x32xf32>
    %cst_43 = arith.constant 1.000000e+00 : f32
    %47 = vector.broadcast %cst_43 : f32 to vector<1x32xf32>
    %48 = arith.addf %47, %46 : vector<1x32xf32>
    %49 = arith.divf %47, %48 : vector<1x32xf32>
    %50 = arith.mulf %41, %21 : vector<1x32xf32>
    %51 = arith.mulf %35, %43 : vector<1x32xf32>
    %52 = arith.addf %50, %51 : vector<1x32xf32>
    %53 = math.tanh %52 : vector<1x32xf32>
    %54 = arith.mulf %49, %53 : vector<1x32xf32>
    %cst_44 = arith.constant dense<0.000000e+00> : vector<1x128xf32>
    %55 = tpu.matmul %54, %6, %cst_44 {dimension_numbers = #tpu.dot_dimension_numbers<[1], [0], [0], [1], [0, 0, 1, 1], [], []>} : vector<1x32xf32>, vector<32x128xf32>, vector<1x128xf32> -> vector<1x128xf32>
    %cst_45 = arith.constant dense<0.000000e+00> : vector<1x128xf32>
    %56 = tpu.matmul %19, %8, %cst_45 {dimension_numbers = #tpu.dot_dimension_numbers<[1], [0], [0], [1], [0, 0, 1, 1], [], []>} : vector<1x32xf32>, vector<32x128xf32>, vector<1x128xf32> -> vector<1x128xf32>
    %57 = arith.addf %55, %56 : vector<1x128xf32>
    %58 = arith.addf %57, %10 : vector<1x128xf32>
    %59 = vector.extract_strided_slice %58 {offsets = [0, 0], sizes = [1, 32], strides = [1, 1]} : vector<1x128xf32> to vector<1x32xf32>
    %60 = arith.negf %59 : vector<1x32xf32>
    %61 = math.exp %60 : vector<1x32xf32>
    %cst_46 = arith.constant 1.000000e+00 : f32
    %62 = vector.broadcast %cst_46 : f32 to vector<1x32xf32>
    %63 = arith.addf %62, %61 : vector<1x32xf32>
    %64 = arith.divf %62, %63 : vector<1x32xf32>
    %65 = vector.extract_strided_slice %58 {offsets = [0, 32], sizes = [1, 32], strides = [1, 1]} : vector<1x128xf32> to vector<1x32xf32>
    %66 = arith.negf %65 : vector<1x32xf32>
    %67 = math.exp %66 : vector<1x32xf32>
    %cst_47 = arith.constant 1.000000e+00 : f32
    %68 = vector.broadcast %cst_47 : f32 to vector<1x32xf32>
    %69 = arith.addf %68, %67 : vector<1x32xf32>
    %70 = arith.divf %68, %69 : vector<1x32xf32>
    %71 = vector.extract_strided_slice %58 {offsets = [0, 64], sizes = [1, 32], strides = [1, 1]} : vector<1x128xf32> to vector<1x32xf32>
    %72 = math.tanh %71 : vector<1x32xf32>
    %73 = vector.extract_strided_slice %58 {offsets = [0, 96], sizes = [1, 32], strides = [1, 1]} : vector<1x128xf32> to vector<1x32xf32>
    %74 = arith.negf %73 : vector<1x32xf32>
    %75 = math.exp %74 : vector<1x32xf32>
    %cst_48 = arith.constant 1.000000e+00 : f32
    %76 = vector.broadcast %cst_48 : f32 to vector<1x32xf32>
    %77 = arith.addf %76, %75 : vector<1x32xf32>
    %78 = arith.divf %76, %77 : vector<1x32xf32>
    %79 = arith.mulf %70, %23 : vector<1x32xf32>
    %80 = arith.mulf %64, %72 : vector<1x32xf32>
    %81 = arith.addf %79, %80 : vector<1x32xf32>
    %82 = math.tanh %81 : vector<1x32xf32>
    %83 = arith.mulf %78, %82 : vector<1x32xf32>
    %cst_49 = arith.constant dense<0.000000e+00> : vector<1x32xf32>
    %84 = tpu.matmul %83, %3, %cst_49 {dimension_numbers = #tpu.dot_dimension_numbers<[1], [0], [0], [1], [0, 0, 1, 1], [], []>} : vector<1x32xf32>, vector<32x32xf32>, vector<1x32xf32> -> vector<1x32xf32>
    %85 = vector.broadcast %84 : vector<1x32xf32> to vector<8x32xf32>
    %86 = arith.addf %14, %85 : vector<8x32xf32>
    %87 = math.tanh %86 : vector<8x32xf32>
    %88 = vector.broadcast %4 : vector<1x32xf32> to vector<8x32xf32>
    %89 = arith.mulf %87, %88 : vector<8x32xf32>
    %cst_50 = arith.constant dense<0.000000e+00> : vector<8xf32>
    %90 = vector.multi_reduction <add>, %89, %cst_50 [1] : vector<8x32xf32> to vector<8xf32>
    %91 = vector.shape_cast %90 : vector<8xf32> to vector<8x1xf32>
    %cst_51 = arith.constant dense<0xFF800000> : vector<1xf32>
    %92 = vector.multi_reduction <maximumf>, %91, %cst_51 [0] : vector<8x1xf32> to vector<1xf32>
    %93 = vector.shape_cast %92 : vector<1xf32> to vector<1x1xf32>
    %94 = vector.broadcast %93 : vector<1x1xf32> to vector<8x1xf32>
    %95 = arith.subf %91, %94 : vector<8x1xf32>
    %96 = math.exp %95 : vector<8x1xf32>
    %cst_52 = arith.constant dense<0.000000e+00> : vector<1xf32>
    %97 = vector.multi_reduction <add>, %96, %cst_52 [0] : vector<8x1xf32> to vector<1xf32>
    %98 = vector.shape_cast %97 : vector<1xf32> to vector<1x1xf32>
    %99 = vector.broadcast %98 : vector<1x1xf32> to vector<8x1xf32>
    %100 = arith.divf %96, %99 : vector<8x1xf32>
    %101 = vector.broadcast %100 : vector<8x1xf32> to vector<8x32xf32>
    %102 = arith.mulf %101, %14 : vector<8x32xf32>
    %cst_53 = arith.constant dense<0.000000e+00> : vector<32xf32>
    %103 = vector.multi_reduction <add>, %102, %cst_53 [0] : vector<8x32xf32> to vector<32xf32>
    %104 = vector.shape_cast %103 : vector<32xf32> to vector<1x32xf32>
    %cst_54 = arith.constant dense<0.000000e+00> : vector<1x32xf32>
    %105 = tpu.matmul %104, %1, %cst_54 {dimension_numbers = #tpu.dot_dimension_numbers<[1], [0], [0], [1], [0, 0, 1, 1], [], []>} : vector<1x32xf32>, vector<32x32xf32>, vector<1x32xf32> -> vector<1x32xf32>
    %106 = vector.broadcast %105 : vector<1x32xf32> to vector<8x32xf32>
    %107 = arith.addf %12, %106 : vector<8x32xf32>
    %108 = math.tanh %107 : vector<8x32xf32>
    %109 = vector.broadcast %2 : vector<1x32xf32> to vector<8x32xf32>
    %110 = arith.mulf %108, %109 : vector<8x32xf32>
    %cst_55 = arith.constant dense<0.000000e+00> : vector<8xf32>
    %111 = vector.multi_reduction <add>, %110, %cst_55 [1] : vector<8x32xf32> to vector<8xf32>
    %112 = vector.shape_cast %111 : vector<8xf32> to vector<8x1xf32>
    %cst_56 = arith.constant -9.99999984E+17 : f32
    %113 = vector.broadcast %cst_56 : f32 to vector<8x1xf32>
    %114 = arith.select %25, %113, %112 : vector<8x1xi1>, vector<8x1xf32>
    %cst_57 = arith.constant dense<0xFF800000> : vector<1xf32>
    %115 = vector.multi_reduction <maximumf>, %114, %cst_57 [0] : vector<8x1xf32> to vector<1xf32>
    %116 = vector.shape_cast %115 : vector<1xf32> to vector<1x1xf32>
    %117 = vector.broadcast %116 : vector<1x1xf32> to vector<8x1xf32>
    %118 = arith.cmpf oeq, %114, %117 : vector<8x1xf32>
    %c8_i32 = arith.constant 8 : i32
    %119 = vector.broadcast %c8_i32 : i32 to vector<8x1xi32>
    %120 = arith.select %118, %24, %119 : vector<8x1xi1>, vector<8x1xi32>
    %cst_58 = arith.constant dense<2147483647> : vector<1xi32>
    %121 = vector.multi_reduction <minsi>, %120, %cst_58 [0] : vector<8x1xi32> to vector<1xi32>
    %122 = vector.shape_cast %121 : vector<1xi32> to vector<1x1xi32>
    %c0_59 = arith.constant 0 : index
    %c0_60 = arith.constant 0 : index
    %123 = vector.load %arg16[%c0_59, %c0_60] : memref<4x1xi32, #tpu.memory_space<vmem>>, vector<1x1xi32>
    tpu.vector_store %arg16[%c0_59, %c0_60], %122 {strides = array<i32>} : memref<4x1xi32, #tpu.memory_space<vmem>>, vector<1x1xi32>,
    %124 = vector.broadcast %122 : vector<1x1xi32> to vector<8x1xi32>
    %125 = arith.cmpi eq, %24, %124 : vector<8x1xi32>
    %126 = arith.ori %25, %125 : vector<8x1xi1>
    %cst_61 = arith.constant 0.000000e+00 : f32
    %127 = vector.shape_cast %125 : vector<8x1xi1> to vector<8x1xi1>
    %128 = vector.broadcast %127 : vector<8x1xi1> to vector<8x64xi1>
    %129 = vector.broadcast %cst_61 : f32 to vector<8x64xf32>
    %130 = arith.select %128, %0, %129 : vector<8x64xi1>, vector<8x64xf32>
    %cst_62 = arith.constant dense<0.000000e+00> : vector<64xf32>
    %131 = vector.multi_reduction <add>, %130, %cst_62 [0] : vector<8x64xf32> to vector<64xf32>
    %132 = vector.shape_cast %131 : vector<64xf32> to vector<1x64xf32>
    %cst_63 = arith.constant dense<0.000000e+00> : vector<1x128xf32>
    %133 = tpu.matmul %132, %5, %cst_63 {dimension_numbers = #tpu.dot_dimension_numbers<[1], [0], [0], [1], [0, 0, 1, 1], [], []>} : vector<1x64xf32>, vector<64x128xf32>, vector<1x128xf32> -> vector<1x128xf32>
    %cst_64 = arith.constant dense<0.000000e+00> : vector<1x128xf32>
    %134 = tpu.matmul %54, %7, %cst_64 {dimension_numbers = #tpu.dot_dimension_numbers<[1], [0], [0], [1], [0, 0, 1, 1], [], []>} : vector<1x32xf32>, vector<32x128xf32>, vector<1x128xf32> -> vector<1x128xf32>
    %135 = arith.addf %133, %134 : vector<1x128xf32>
    %136 = arith.addf %135, %9 : vector<1x128xf32>
    %137 = vector.extract_strided_slice %136 {offsets = [0, 0], sizes = [1, 32], strides = [1, 1]} : vector<1x128xf32> to vector<1x32xf32>
    %138 = arith.negf %137 : vector<1x32xf32>
    %139 = math.exp %138 : vector<1x32xf32>
    %cst_65 = arith.constant 1.000000e+00 : f32
    %140 = vector.broadcast %cst_65 : f32 to vector<1x32xf32>
    %141 = arith.addf %140, %139 : vector<1x32xf32>
    %142 = arith.divf %140, %141 : vector<1x32xf32>
    %143 = vector.extract_strided_slice %136 {offsets = [0, 32], sizes = [1, 32], strides = [1, 1]} : vector<1x128xf32> to vector<1x32xf32>
    %144 = arith.negf %143 : vector<1x32xf32>
    %145 = math.exp %144 : vector<1x32xf32>
    %cst_66 = arith.constant 1.000000e+00 : f32
    %146 = vector.broadcast %cst_66 : f32 to vector<1x32xf32>
    %147 = arith.addf %146, %145 : vector<1x32xf32>
    %148 = arith.divf %146, %147 : vector<1x32xf32>
    %149 = vector.extract_strided_slice %136 {offsets = [0, 64], sizes = [1, 32], strides = [1, 1]} : vector<1x128xf32> to vector<1x32xf32>
    %150 = math.tanh %149 : vector<1x32xf32>
    %151 = vector.extract_strided_slice %136 {offsets = [0, 96], sizes = [1, 32], strides = [1, 1]} : vector<1x128xf32> to vector<1x32xf32>
    %152 = arith.negf %151 : vector<1x32xf32>
    %153 = math.exp %152 : vector<1x32xf32>
    %cst_67 = arith.constant 1.000000e+00 : f32
    %154 = vector.broadcast %cst_67 : f32 to vector<1x32xf32>
    %155 = arith.addf %154, %153 : vector<1x32xf32>
    %156 = arith.divf %154, %155 : vector<1x32xf32>
    %157 = arith.mulf %148, %52 : vector<1x32xf32>
    %158 = arith.mulf %142, %150 : vector<1x32xf32>
    %159 = arith.addf %157, %158 : vector<1x32xf32>
    %160 = math.tanh %159 : vector<1x32xf32>
    %161 = arith.mulf %156, %160 : vector<1x32xf32>
    %cst_68 = arith.constant dense<0.000000e+00> : vector<1x128xf32>
    %162 = tpu.matmul %161, %6, %cst_68 {dimension_numbers = #tpu.dot_dimension_numbers<[1], [0], [0], [1], [0, 0, 1, 1], [], []>} : vector<1x32xf32>, vector<32x128xf32>, vector<1x128xf32> -> vector<1x128xf32>
    %cst_69 = arith.constant dense<0.000000e+00> : vector<1x128xf32>
    %163 = tpu.matmul %83, %8, %cst_69 {dimension_numbers = #tpu.dot_dimension_numbers<[1], [0], [0], [1], [0, 0, 1, 1], [], []>} : vector<1x32xf32>, vector<32x128xf32>, vector<1x128xf32> -> vector<1x128xf32>
    %164 = arith.addf %162, %163 : vector<1x128xf32>
    %165 = arith.addf %164, %10 : vector<1x128xf32>
    %166 = vector.extract_strided_slice %165 {offsets = [0, 0], sizes = [1, 32], strides = [1, 1]} : vector<1x128xf32> to vector<1x32xf32>
    %167 = arith.negf %166 : vector<1x32xf32>
    %168 = math.exp %167 : vector<1x32xf32>
    %cst_70 = arith.constant 1.000000e+00 : f32
    %169 = vector.broadcast %cst_70 : f32 to vector<1x32xf32>
    %170 = arith.addf %169, %168 : vector<1x32xf32>
    %171 = arith.divf %169, %170 : vector<1x32xf32>
    %172 = vector.extract_strided_slice %165 {offsets = [0, 32], sizes = [1, 32], strides = [1, 1]} : vector<1x128xf32> to vector<1x32xf32>
    %173 = arith.negf %172 : vector<1x32xf32>
    %174 = math.exp %173 : vector<1x32xf32>
    %cst_71 = arith.constant 1.000000e+00 : f32
    %175 = vector.broadcast %cst_71 : f32 to vector<1x32xf32>
    %176 = arith.addf %175, %174 : vector<1x32xf32>
    %177 = arith.divf %175, %176 : vector<1x32xf32>
    %178 = vector.extract_strided_slice %165 {offsets = [0, 64], sizes = [1, 32], strides = [1, 1]} : vector<1x128xf32> to vector<1x32xf32>
    %179 = math.tanh %178 : vector<1x32xf32>
    %180 = vector.extract_strided_slice %165 {offsets = [0, 96], sizes = [1, 32], strides = [1, 1]} : vector<1x128xf32> to vector<1x32xf32>
    %181 = arith.negf %180 : vector<1x32xf32>
    %182 = math.exp %181 : vector<1x32xf32>
    %cst_72 = arith.constant 1.000000e+00 : f32
    %183 = vector.broadcast %cst_72 : f32 to vector<1x32xf32>
    %184 = arith.addf %183, %182 : vector<1x32xf32>
    %185 = arith.divf %183, %184 : vector<1x32xf32>
    %186 = arith.mulf %177, %81 : vector<1x32xf32>
    %187 = arith.mulf %171, %179 : vector<1x32xf32>
    %188 = arith.addf %186, %187 : vector<1x32xf32>
    %189 = math.tanh %188 : vector<1x32xf32>
    %190 = arith.mulf %185, %189 : vector<1x32xf32>
    %cst_73 = arith.constant dense<0.000000e+00> : vector<1x32xf32>
    %191 = tpu.matmul %190, %3, %cst_73 {dimension_numbers = #tpu.dot_dimension_numbers<[1], [0], [0], [1], [0, 0, 1, 1], [], []>} : vector<1x32xf32>, vector<32x32xf32>, vector<1x32xf32> -> vector<1x32xf32>
    %192 = vector.broadcast %191 : vector<1x32xf32> to vector<8x32xf32>
    %193 = arith.addf %14, %192 : vector<8x32xf32>
    %194 = math.tanh %193 : vector<8x32xf32>
    %195 = vector.broadcast %4 : vector<1x32xf32> to vector<8x32xf32>
    %196 = arith.mulf %194, %195 : vector<8x32xf32>
    %cst_74 = arith.constant dense<0.000000e+00> : vector<8xf32>
    %197 = vector.multi_reduction <add>, %196, %cst_74 [1] : vector<8x32xf32> to vector<8xf32>
    %198 = vector.shape_cast %197 : vector<8xf32> to vector<8x1xf32>
    %cst_75 = arith.constant dense<0xFF800000> : vector<1xf32>
    %199 = vector.multi_reduction <maximumf>, %198, %cst_75 [0] : vector<8x1xf32> to vector<1xf32>
    %200 = vector.shape_cast %199 : vector<1xf32> to vector<1x1xf32>
    %201 = vector.broadcast %200 : vector<1x1xf32> to vector<8x1xf32>
    %202 = arith.subf %198, %201 : vector<8x1xf32>
    %203 = math.exp %202 : vector<8x1xf32>
    %cst_76 = arith.constant dense<0.000000e+00> : vector<1xf32>
    %204 = vector.multi_reduction <add>, %203, %cst_76 [0] : vector<8x1xf32> to vector<1xf32>
    %205 = vector.shape_cast %204 : vector<1xf32> to vector<1x1xf32>
    %206 = vector.broadcast %205 : vector<1x1xf32> to vector<8x1xf32>
    %207 = arith.divf %203, %206 : vector<8x1xf32>
    %208 = vector.broadcast %207 : vector<8x1xf32> to vector<8x32xf32>
    %209 = arith.mulf %208, %14 : vector<8x32xf32>
    %cst_77 = arith.constant dense<0.000000e+00> : vector<32xf32>
    %210 = vector.multi_reduction <add>, %209, %cst_77 [0] : vector<8x32xf32> to vector<32xf32>
    %211 = vector.shape_cast %210 : vector<32xf32> to vector<1x32xf32>
    %cst_78 = arith.constant dense<0.000000e+00> : vector<1x32xf32>
    %212 = tpu.matmul %211, %1, %cst_78 {dimension_numbers = #tpu.dot_dimension_numbers<[1], [0], [0], [1], [0, 0, 1, 1], [], []>} : vector<1x32xf32>, vector<32x32xf32>, vector<1x32xf32> -> vector<1x32xf32>
    %213 = vector.broadcast %212 : vector<1x32xf32> to vector<8x32xf32>
    %214 = arith.addf %12, %213 : vector<8x32xf32>
    %215 = math.tanh %214 : vector<8x32xf32>
    %216 = vector.broadcast %2 : vector<1x32xf32> to vector<8x32xf32>
    %217 = arith.mulf %215, %216 : vector<8x32xf32>
    %cst_79 = arith.constant dense<0.000000e+00> : vector<8xf32>
    %218 = vector.multi_reduction <add>, %217, %cst_79 [1] : vector<8x32xf32> to vector<8xf32>
    %219 = vector.shape_cast %218 : vector<8xf32> to vector<8x1xf32>
    %cst_80 = arith.constant -9.99999984E+17 : f32
    %220 = vector.broadcast %cst_80 : f32 to vector<8x1xf32>
    %221 = arith.select %126, %220, %219 : vector<8x1xi1>, vector<8x1xf32>
    %cst_81 = arith.constant dense<0xFF800000> : vector<1xf32>
    %222 = vector.multi_reduction <maximumf>, %221, %cst_81 [0] : vector<8x1xf32> to vector<1xf32>
    %223 = vector.shape_cast %222 : vector<1xf32> to vector<1x1xf32>
    %224 = vector.broadcast %223 : vector<1x1xf32> to vector<8x1xf32>
    %225 = arith.cmpf oeq, %221, %224 : vector<8x1xf32>
    %c8_i32_82 = arith.constant 8 : i32
    %226 = vector.broadcast %c8_i32_82 : i32 to vector<8x1xi32>
    %227 = arith.select %225, %24, %226 : vector<8x1xi1>, vector<8x1xi32>
    %cst_83 = arith.constant dense<2147483647> : vector<1xi32>
    %228 = vector.multi_reduction <minsi>, %227, %cst_83 [0] : vector<8x1xi32> to vector<1xi32>
    %229 = vector.shape_cast %228 : vector<1xi32> to vector<1x1xi32>
    %c1_84 = arith.constant 1 : index
    %c0_85 = arith.constant 0 : index
    %230 = vector.load %arg16[%c1_84, %c0_85] : memref<4x1xi32, #tpu.memory_space<vmem>>, vector<1x1xi32>
    tpu.vector_store %arg16[%c1_84, %c0_85], %229 {strides = array<i32>} : memref<4x1xi32, #tpu.memory_space<vmem>>, vector<1x1xi32>,
    %231 = vector.broadcast %229 : vector<1x1xi32> to vector<8x1xi32>
    %232 = arith.cmpi eq, %24, %231 : vector<8x1xi32>
    %233 = arith.ori %126, %232 : vector<8x1xi1>
    %cst_86 = arith.constant 0.000000e+00 : f32
    %234 = vector.shape_cast %232 : vector<8x1xi1> to vector<8x1xi1>
    %235 = vector.broadcast %234 : vector<8x1xi1> to vector<8x64xi1>
    %236 = vector.broadcast %cst_86 : f32 to vector<8x64xf32>
    %237 = arith.select %235, %0, %236 : vector<8x64xi1>, vector<8x64xf32>
    %cst_87 = arith.constant dense<0.000000e+00> : vector<64xf32>
    %238 = vector.multi_reduction <add>, %237, %cst_87 [0] : vector<8x64xf32> to vector<64xf32>
    %239 = vector.shape_cast %238 : vector<64xf32> to vector<1x64xf32>
    %cst_88 = arith.constant dense<0.000000e+00> : vector<1x128xf32>
    %240 = tpu.matmul %239, %5, %cst_88 {dimension_numbers = #tpu.dot_dimension_numbers<[1], [0], [0], [1], [0, 0, 1, 1], [], []>} : vector<1x64xf32>, vector<64x128xf32>, vector<1x128xf32> -> vector<1x128xf32>
    %cst_89 = arith.constant dense<0.000000e+00> : vector<1x128xf32>
    %241 = tpu.matmul %161, %7, %cst_89 {dimension_numbers = #tpu.dot_dimension_numbers<[1], [0], [0], [1], [0, 0, 1, 1], [], []>} : vector<1x32xf32>, vector<32x128xf32>, vector<1x128xf32> -> vector<1x128xf32>
    %242 = arith.addf %240, %241 : vector<1x128xf32>
    %243 = arith.addf %242, %9 : vector<1x128xf32>
    %244 = vector.extract_strided_slice %243 {offsets = [0, 0], sizes = [1, 32], strides = [1, 1]} : vector<1x128xf32> to vector<1x32xf32>
    %245 = arith.negf %244 : vector<1x32xf32>
    %246 = math.exp %245 : vector<1x32xf32>
    %cst_90 = arith.constant 1.000000e+00 : f32
    %247 = vector.broadcast %cst_90 : f32 to vector<1x32xf32>
    %248 = arith.addf %247, %246 : vector<1x32xf32>
    %249 = arith.divf %247, %248 : vector<1x32xf32>
    %250 = vector.extract_strided_slice %243 {offsets = [0, 32], sizes = [1, 32], strides = [1, 1]} : vector<1x128xf32> to vector<1x32xf32>
    %251 = arith.negf %250 : vector<1x32xf32>
    %252 = math.exp %251 : vector<1x32xf32>
    %cst_91 = arith.constant 1.000000e+00 : f32
    %253 = vector.broadcast %cst_91 : f32 to vector<1x32xf32>
    %254 = arith.addf %253, %252 : vector<1x32xf32>
    %255 = arith.divf %253, %254 : vector<1x32xf32>
    %256 = vector.extract_strided_slice %243 {offsets = [0, 64], sizes = [1, 32], strides = [1, 1]} : vector<1x128xf32> to vector<1x32xf32>
    %257 = math.tanh %256 : vector<1x32xf32>
    %258 = vector.extract_strided_slice %243 {offsets = [0, 96], sizes = [1, 32], strides = [1, 1]} : vector<1x128xf32> to vector<1x32xf32>
    %259 = arith.negf %258 : vector<1x32xf32>
    %260 = math.exp %259 : vector<1x32xf32>
    %cst_92 = arith.constant 1.000000e+00 : f32
    %261 = vector.broadcast %cst_92 : f32 to vector<1x32xf32>
    %262 = arith.addf %261, %260 : vector<1x32xf32>
    %263 = arith.divf %261, %262 : vector<1x32xf32>
    %264 = arith.mulf %255, %159 : vector<1x32xf32>
    %265 = arith.mulf %249, %257 : vector<1x32xf32>
    %266 = arith.addf %264, %265 : vector<1x32xf32>
    %267 = math.tanh %266 : vector<1x32xf32>
    %268 = arith.mulf %263, %267 : vector<1x32xf32>
    %cst_93 = arith.constant dense<0.000000e+00> : vector<1x128xf32>
    %269 = tpu.matmul %268, %6, %cst_93 {dimension_numbers = #tpu.dot_dimension_numbers<[1], [0], [0], [1], [0, 0, 1, 1], [], []>} : vector<1x32xf32>, vector<32x128xf32>, vector<1x128xf32> -> vector<1x128xf32>
    %cst_94 = arith.constant dense<0.000000e+00> : vector<1x128xf32>
    %270 = tpu.matmul %190, %8, %cst_94 {dimension_numbers = #tpu.dot_dimension_numbers<[1], [0], [0], [1], [0, 0, 1, 1], [], []>} : vector<1x32xf32>, vector<32x128xf32>, vector<1x128xf32> -> vector<1x128xf32>
    %271 = arith.addf %269, %270 : vector<1x128xf32>
    %272 = arith.addf %271, %10 : vector<1x128xf32>
    %273 = vector.extract_strided_slice %272 {offsets = [0, 0], sizes = [1, 32], strides = [1, 1]} : vector<1x128xf32> to vector<1x32xf32>
    %274 = arith.negf %273 : vector<1x32xf32>
    %275 = math.exp %274 : vector<1x32xf32>
    %cst_95 = arith.constant 1.000000e+00 : f32
    %276 = vector.broadcast %cst_95 : f32 to vector<1x32xf32>
    %277 = arith.addf %276, %275 : vector<1x32xf32>
    %278 = arith.divf %276, %277 : vector<1x32xf32>
    %279 = vector.extract_strided_slice %272 {offsets = [0, 32], sizes = [1, 32], strides = [1, 1]} : vector<1x128xf32> to vector<1x32xf32>
    %280 = arith.negf %279 : vector<1x32xf32>
    %281 = math.exp %280 : vector<1x32xf32>
    %cst_96 = arith.constant 1.000000e+00 : f32
    %282 = vector.broadcast %cst_96 : f32 to vector<1x32xf32>
    %283 = arith.addf %282, %281 : vector<1x32xf32>
    %284 = arith.divf %282, %283 : vector<1x32xf32>
    %285 = vector.extract_strided_slice %272 {offsets = [0, 64], sizes = [1, 32], strides = [1, 1]} : vector<1x128xf32> to vector<1x32xf32>
    %286 = math.tanh %285 : vector<1x32xf32>
    %287 = vector.extract_strided_slice %272 {offsets = [0, 96], sizes = [1, 32], strides = [1, 1]} : vector<1x128xf32> to vector<1x32xf32>
    %288 = arith.negf %287 : vector<1x32xf32>
    %289 = math.exp %288 : vector<1x32xf32>
    %cst_97 = arith.constant 1.000000e+00 : f32
    %290 = vector.broadcast %cst_97 : f32 to vector<1x32xf32>
    %291 = arith.addf %290, %289 : vector<1x32xf32>
    %292 = arith.divf %290, %291 : vector<1x32xf32>
    %293 = arith.mulf %284, %188 : vector<1x32xf32>
    %294 = arith.mulf %278, %286 : vector<1x32xf32>
    %295 = arith.addf %293, %294 : vector<1x32xf32>
    %296 = math.tanh %295 : vector<1x32xf32>
    %297 = arith.mulf %292, %296 : vector<1x32xf32>
    %cst_98 = arith.constant dense<0.000000e+00> : vector<1x32xf32>
    %298 = tpu.matmul %297, %3, %cst_98 {dimension_numbers = #tpu.dot_dimension_numbers<[1], [0], [0], [1], [0, 0, 1, 1], [], []>} : vector<1x32xf32>, vector<32x32xf32>, vector<1x32xf32> -> vector<1x32xf32>
    %299 = vector.broadcast %298 : vector<1x32xf32> to vector<8x32xf32>
    %300 = arith.addf %14, %299 : vector<8x32xf32>
    %301 = math.tanh %300 : vector<8x32xf32>
    %302 = vector.broadcast %4 : vector<1x32xf32> to vector<8x32xf32>
    %303 = arith.mulf %301, %302 : vector<8x32xf32>
    %cst_99 = arith.constant dense<0.000000e+00> : vector<8xf32>
    %304 = vector.multi_reduction <add>, %303, %cst_99 [1] : vector<8x32xf32> to vector<8xf32>
    %305 = vector.shape_cast %304 : vector<8xf32> to vector<8x1xf32>
    %cst_100 = arith.constant dense<0xFF800000> : vector<1xf32>
    %306 = vector.multi_reduction <maximumf>, %305, %cst_100 [0] : vector<8x1xf32> to vector<1xf32>
    %307 = vector.shape_cast %306 : vector<1xf32> to vector<1x1xf32>
    %308 = vector.broadcast %307 : vector<1x1xf32> to vector<8x1xf32>
    %309 = arith.subf %305, %308 : vector<8x1xf32>
    %310 = math.exp %309 : vector<8x1xf32>
    %cst_101 = arith.constant dense<0.000000e+00> : vector<1xf32>
    %311 = vector.multi_reduction <add>, %310, %cst_101 [0] : vector<8x1xf32> to vector<1xf32>
    %312 = vector.shape_cast %311 : vector<1xf32> to vector<1x1xf32>
    %313 = vector.broadcast %312 : vector<1x1xf32> to vector<8x1xf32>
    %314 = arith.divf %310, %313 : vector<8x1xf32>
    %315 = vector.broadcast %314 : vector<8x1xf32> to vector<8x32xf32>
    %316 = arith.mulf %315, %14 : vector<8x32xf32>
    %cst_102 = arith.constant dense<0.000000e+00> : vector<32xf32>
    %317 = vector.multi_reduction <add>, %316, %cst_102 [0] : vector<8x32xf32> to vector<32xf32>
    %318 = vector.shape_cast %317 : vector<32xf32> to vector<1x32xf32>
    %cst_103 = arith.constant dense<0.000000e+00> : vector<1x32xf32>
    %319 = tpu.matmul %318, %1, %cst_103 {dimension_numbers = #tpu.dot_dimension_numbers<[1], [0], [0], [1], [0, 0, 1, 1], [], []>} : vector<1x32xf32>, vector<32x32xf32>, vector<1x32xf32> -> vector<1x32xf32>
    %320 = vector.broadcast %319 : vector<1x32xf32> to vector<8x32xf32>
    %321 = arith.addf %12, %320 : vector<8x32xf32>
    %322 = math.tanh %321 : vector<8x32xf32>
    %323 = vector.broadcast %2 : vector<1x32xf32> to vector<8x32xf32>
    %324 = arith.mulf %322, %323 : vector<8x32xf32>
    %cst_104 = arith.constant dense<0.000000e+00> : vector<8xf32>
    %325 = vector.multi_reduction <add>, %324, %cst_104 [1] : vector<8x32xf32> to vector<8xf32>
    %326 = vector.shape_cast %325 : vector<8xf32> to vector<8x1xf32>
    %cst_105 = arith.constant -9.99999984E+17 : f32
    %327 = vector.broadcast %cst_105 : f32 to vector<8x1xf32>
    %328 = arith.select %233, %327, %326 : vector<8x1xi1>, vector<8x1xf32>
    %cst_106 = arith.constant dense<0xFF800000> : vector<1xf32>
    %329 = vector.multi_reduction <maximumf>, %328, %cst_106 [0] : vector<8x1xf32> to vector<1xf32>
    %330 = vector.shape_cast %329 : vector<1xf32> to vector<1x1xf32>
    %331 = vector.broadcast %330 : vector<1x1xf32> to vector<8x1xf32>
    %332 = arith.cmpf oeq, %328, %331 : vector<8x1xf32>
    %c8_i32_107 = arith.constant 8 : i32
    %333 = vector.broadcast %c8_i32_107 : i32 to vector<8x1xi32>
    %334 = arith.select %332, %24, %333 : vector<8x1xi1>, vector<8x1xi32>
    %cst_108 = arith.constant dense<2147483647> : vector<1xi32>
    %335 = vector.multi_reduction <minsi>, %334, %cst_108 [0] : vector<8x1xi32> to vector<1xi32>
    %336 = vector.shape_cast %335 : vector<1xi32> to vector<1x1xi32>
    %c2 = arith.constant 2 : index
    %c0_109 = arith.constant 0 : index
    %337 = vector.load %arg16[%c2, %c0_109] : memref<4x1xi32, #tpu.memory_space<vmem>>, vector<1x1xi32>
    tpu.vector_store %arg16[%c2, %c0_109], %336 {strides = array<i32>} : memref<4x1xi32, #tpu.memory_space<vmem>>, vector<1x1xi32>,
    %338 = vector.broadcast %336 : vector<1x1xi32> to vector<8x1xi32>
    %339 = arith.cmpi eq, %24, %338 : vector<8x1xi32>
    %340 = arith.ori %233, %339 : vector<8x1xi1>
    %cst_110 = arith.constant 0.000000e+00 : f32
    %341 = vector.shape_cast %339 : vector<8x1xi1> to vector<8x1xi1>
    %342 = vector.broadcast %341 : vector<8x1xi1> to vector<8x64xi1>
    %343 = vector.broadcast %cst_110 : f32 to vector<8x64xf32>
    %344 = arith.select %342, %0, %343 : vector<8x64xi1>, vector<8x64xf32>
    %cst_111 = arith.constant dense<0.000000e+00> : vector<64xf32>
    %345 = vector.multi_reduction <add>, %344, %cst_111 [0] : vector<8x64xf32> to vector<64xf32>
    %346 = vector.shape_cast %345 : vector<64xf32> to vector<1x64xf32>
    %cst_112 = arith.constant dense<0.000000e+00> : vector<1x128xf32>
    %347 = tpu.matmul %346, %5, %cst_112 {dimension_numbers = #tpu.dot_dimension_numbers<[1], [0], [0], [1], [0, 0, 1, 1], [], []>} : vector<1x64xf32>, vector<64x128xf32>, vector<1x128xf32> -> vector<1x128xf32>
    %cst_113 = arith.constant dense<0.000000e+00> : vector<1x128xf32>
    %348 = tpu.matmul %268, %7, %cst_113 {dimension_numbers = #tpu.dot_dimension_numbers<[1], [0], [0], [1], [0, 0, 1, 1], [], []>} : vector<1x32xf32>, vector<32x128xf32>, vector<1x128xf32> -> vector<1x128xf32>
    %349 = arith.addf %347, %348 : vector<1x128xf32>
    %350 = arith.addf %349, %9 : vector<1x128xf32>
    %351 = vector.extract_strided_slice %350 {offsets = [0, 0], sizes = [1, 32], strides = [1, 1]} : vector<1x128xf32> to vector<1x32xf32>
    %352 = arith.negf %351 : vector<1x32xf32>
    %353 = math.exp %352 : vector<1x32xf32>
    %cst_114 = arith.constant 1.000000e+00 : f32
    %354 = vector.broadcast %cst_114 : f32 to vector<1x32xf32>
    %355 = arith.addf %354, %353 : vector<1x32xf32>
    %356 = arith.divf %354, %355 : vector<1x32xf32>
    %357 = vector.extract_strided_slice %350 {offsets = [0, 32], sizes = [1, 32], strides = [1, 1]} : vector<1x128xf32> to vector<1x32xf32>
    %358 = arith.negf %357 : vector<1x32xf32>
    %359 = math.exp %358 : vector<1x32xf32>
    %cst_115 = arith.constant 1.000000e+00 : f32
    %360 = vector.broadcast %cst_115 : f32 to vector<1x32xf32>
    %361 = arith.addf %360, %359 : vector<1x32xf32>
    %362 = arith.divf %360, %361 : vector<1x32xf32>
    %363 = vector.extract_strided_slice %350 {offsets = [0, 64], sizes = [1, 32], strides = [1, 1]} : vector<1x128xf32> to vector<1x32xf32>
    %364 = math.tanh %363 : vector<1x32xf32>
    %365 = vector.extract_strided_slice %350 {offsets = [0, 96], sizes = [1, 32], strides = [1, 1]} : vector<1x128xf32> to vector<1x32xf32>
    %366 = arith.negf %365 : vector<1x32xf32>
    %367 = math.exp %366 : vector<1x32xf32>
    %cst_116 = arith.constant 1.000000e+00 : f32
    %368 = vector.broadcast %cst_116 : f32 to vector<1x32xf32>
    %369 = arith.addf %368, %367 : vector<1x32xf32>
    %370 = arith.divf %368, %369 : vector<1x32xf32>
    %371 = arith.mulf %362, %266 : vector<1x32xf32>
    %372 = arith.mulf %356, %364 : vector<1x32xf32>
    %373 = arith.addf %371, %372 : vector<1x32xf32>
    %374 = math.tanh %373 : vector<1x32xf32>
    %375 = arith.mulf %370, %374 : vector<1x32xf32>
    %cst_117 = arith.constant dense<0.000000e+00> : vector<1x128xf32>
    %376 = tpu.matmul %375, %6, %cst_117 {dimension_numbers = #tpu.dot_dimension_numbers<[1], [0], [0], [1], [0, 0, 1, 1], [], []>} : vector<1x32xf32>, vector<32x128xf32>, vector<1x128xf32> -> vector<1x128xf32>
    %cst_118 = arith.constant dense<0.000000e+00> : vector<1x128xf32>
    %377 = tpu.matmul %297, %8, %cst_118 {dimension_numbers = #tpu.dot_dimension_numbers<[1], [0], [0], [1], [0, 0, 1, 1], [], []>} : vector<1x32xf32>, vector<32x128xf32>, vector<1x128xf32> -> vector<1x128xf32>
    %378 = arith.addf %376, %377 : vector<1x128xf32>
    %379 = arith.addf %378, %10 : vector<1x128xf32>
    %380 = vector.extract_strided_slice %379 {offsets = [0, 0], sizes = [1, 32], strides = [1, 1]} : vector<1x128xf32> to vector<1x32xf32>
    %381 = arith.negf %380 : vector<1x32xf32>
    %382 = math.exp %381 : vector<1x32xf32>
    %cst_119 = arith.constant 1.000000e+00 : f32
    %383 = vector.broadcast %cst_119 : f32 to vector<1x32xf32>
    %384 = arith.addf %383, %382 : vector<1x32xf32>
    %385 = arith.divf %383, %384 : vector<1x32xf32>
    %386 = vector.extract_strided_slice %379 {offsets = [0, 32], sizes = [1, 32], strides = [1, 1]} : vector<1x128xf32> to vector<1x32xf32>
    %387 = arith.negf %386 : vector<1x32xf32>
    %388 = math.exp %387 : vector<1x32xf32>
    %cst_120 = arith.constant 1.000000e+00 : f32
    %389 = vector.broadcast %cst_120 : f32 to vector<1x32xf32>
    %390 = arith.addf %389, %388 : vector<1x32xf32>
    %391 = arith.divf %389, %390 : vector<1x32xf32>
    %392 = vector.extract_strided_slice %379 {offsets = [0, 64], sizes = [1, 32], strides = [1, 1]} : vector<1x128xf32> to vector<1x32xf32>
    %393 = math.tanh %392 : vector<1x32xf32>
    %394 = vector.extract_strided_slice %379 {offsets = [0, 96], sizes = [1, 32], strides = [1, 1]} : vector<1x128xf32> to vector<1x32xf32>
    %395 = arith.negf %394 : vector<1x32xf32>
    %396 = math.exp %395 : vector<1x32xf32>
    %cst_121 = arith.constant 1.000000e+00 : f32
    %397 = vector.broadcast %cst_121 : f32 to vector<1x32xf32>
    %398 = arith.addf %397, %396 : vector<1x32xf32>
    %399 = arith.divf %397, %398 : vector<1x32xf32>
    %400 = arith.mulf %391, %295 : vector<1x32xf32>
    %401 = arith.mulf %385, %393 : vector<1x32xf32>
    %402 = arith.addf %400, %401 : vector<1x32xf32>
    %403 = math.tanh %402 : vector<1x32xf32>
    %404 = arith.mulf %399, %403 : vector<1x32xf32>
    %cst_122 = arith.constant dense<0.000000e+00> : vector<1x32xf32>
    %405 = tpu.matmul %404, %3, %cst_122 {dimension_numbers = #tpu.dot_dimension_numbers<[1], [0], [0], [1], [0, 0, 1, 1], [], []>} : vector<1x32xf32>, vector<32x32xf32>, vector<1x32xf32> -> vector<1x32xf32>
    %406 = vector.broadcast %405 : vector<1x32xf32> to vector<8x32xf32>
    %407 = arith.addf %14, %406 : vector<8x32xf32>
    %408 = math.tanh %407 : vector<8x32xf32>
    %409 = vector.broadcast %4 : vector<1x32xf32> to vector<8x32xf32>
    %410 = arith.mulf %408, %409 : vector<8x32xf32>
    %cst_123 = arith.constant dense<0.000000e+00> : vector<8xf32>
    %411 = vector.multi_reduction <add>, %410, %cst_123 [1] : vector<8x32xf32> to vector<8xf32>
    %412 = vector.shape_cast %411 : vector<8xf32> to vector<8x1xf32>
    %cst_124 = arith.constant dense<0xFF800000> : vector<1xf32>
    %413 = vector.multi_reduction <maximumf>, %412, %cst_124 [0] : vector<8x1xf32> to vector<1xf32>
    %414 = vector.shape_cast %413 : vector<1xf32> to vector<1x1xf32>
    %415 = vector.broadcast %414 : vector<1x1xf32> to vector<8x1xf32>
    %416 = arith.subf %412, %415 : vector<8x1xf32>
    %417 = math.exp %416 : vector<8x1xf32>
    %cst_125 = arith.constant dense<0.000000e+00> : vector<1xf32>
    %418 = vector.multi_reduction <add>, %417, %cst_125 [0] : vector<8x1xf32> to vector<1xf32>
    %419 = vector.shape_cast %418 : vector<1xf32> to vector<1x1xf32>
    %420 = vector.broadcast %419 : vector<1x1xf32> to vector<8x1xf32>
    %421 = arith.divf %417, %420 : vector<8x1xf32>
    %422 = vector.broadcast %421 : vector<8x1xf32> to vector<8x32xf32>
    %423 = arith.mulf %422, %14 : vector<8x32xf32>
    %cst_126 = arith.constant dense<0.000000e+00> : vector<32xf32>
    %424 = vector.multi_reduction <add>, %423, %cst_126 [0] : vector<8x32xf32> to vector<32xf32>
    %425 = vector.shape_cast %424 : vector<32xf32> to vector<1x32xf32>
    %cst_127 = arith.constant dense<0.000000e+00> : vector<1x32xf32>
    %426 = tpu.matmul %425, %1, %cst_127 {dimension_numbers = #tpu.dot_dimension_numbers<[1], [0], [0], [1], [0, 0, 1, 1], [], []>} : vector<1x32xf32>, vector<32x32xf32>, vector<1x32xf32> -> vector<1x32xf32>
    %427 = vector.broadcast %426 : vector<1x32xf32> to vector<8x32xf32>
    %428 = arith.addf %12, %427 : vector<8x32xf32>
    %429 = math.tanh %428 : vector<8x32xf32>
    %430 = vector.broadcast %2 : vector<1x32xf32> to vector<8x32xf32>
    %431 = arith.mulf %429, %430 : vector<8x32xf32>
    %cst_128 = arith.constant dense<0.000000e+00> : vector<8xf32>
    %432 = vector.multi_reduction <add>, %431, %cst_128 [1] : vector<8x32xf32> to vector<8xf32>
    %433 = vector.shape_cast %432 : vector<8xf32> to vector<8x1xf32>
    %cst_129 = arith.constant -9.99999984E+17 : f32
    %434 = vector.broadcast %cst_129 : f32 to vector<8x1xf32>
    %435 = arith.select %340, %434, %433 : vector<8x1xi1>, vector<8x1xf32>
    %cst_130 = arith.constant dense<0xFF800000> : vector<1xf32>
    %436 = vector.multi_reduction <maximumf>, %435, %cst_130 [0] : vector<8x1xf32> to vector<1xf32>
    %437 = vector.shape_cast %436 : vector<1xf32> to vector<1x1xf32>
    %438 = vector.broadcast %437 : vector<1x1xf32> to vector<8x1xf32>
    %439 = arith.cmpf oeq, %435, %438 : vector<8x1xf32>
    %c8_i32_131 = arith.constant 8 : i32
    %440 = vector.broadcast %c8_i32_131 : i32 to vector<8x1xi32>
    %441 = arith.select %439, %24, %440 : vector<8x1xi1>, vector<8x1xi32>
    %cst_132 = arith.constant dense<2147483647> : vector<1xi32>
    %442 = vector.multi_reduction <minsi>, %441, %cst_132 [0] : vector<8x1xi32> to vector<1xi32>
    %443 = vector.shape_cast %442 : vector<1xi32> to vector<1x1xi32>
    %c3 = arith.constant 3 : index
    %c0_133 = arith.constant 0 : index
    %444 = vector.load %arg16[%c3, %c0_133] : memref<4x1xi32, #tpu.memory_space<vmem>>, vector<1x1xi32>
    tpu.vector_store %arg16[%c3, %c0_133], %443 {strides = array<i32>} : memref<4x1xi32, #tpu.memory_space<vmem>>, vector<1x1xi32>,
    return
  }
}

</mosaic_0001>

<llo_original>
// kernel: tpu_custom_call.1
$region0: #{tpu_custom_call.1}
  #allocation0 [shape = 'u32[]', space=smem, size = 0x4, offset = 0x4, fixed_abs, tag = 'smem constant byte address 0x4 - core index']
  #allocation1 [shape = 'u32[144,128]{1,0:T(1,128)}', space=vmem, size = 0x12000, scoped, tag = 'internal scratch']
  %s0 = inlined_call_operand.hbm [shape: f32[8,64], index: 0, kind: input, shape index: {}]
  %s1 = inlined_call_operand.vmem [shape: f32[64,32], index: 1, kind: input, shape index: {}]
  %s2 = inlined_call_operand.vmem [shape: f32[32,32], index: 2, kind: input, shape index: {}]
  %s3 = inlined_call_operand.hbm [shape: f32[1,32], index: 3, kind: input, shape index: {}]
  %s4 = inlined_call_operand.vmem [shape: f32[64,32], index: 4, kind: input, shape index: {}]
  %s5 = inlined_call_operand.vmem [shape: f32[32,32], index: 5, kind: input, shape index: {}]
  %s6 = inlined_call_operand.hbm [shape: f32[1,32], index: 6, kind: input, shape index: {}]
  %s7 = inlined_call_operand.hbm [shape: f32[1,64], index: 7, kind: input, shape index: {}]
  %s8 = inlined_call_operand.vmem [shape: f32[2,1,32], index: 8, kind: input, shape index: {}]
  %s9 = inlined_call_operand.hbm [shape: f32[2,1,32], index: 9, kind: input, shape index: {}]
  %s10 = inlined_call_operand.vmem [shape: f32[64,128], index: 10, kind: input, shape index: {}]
  %s11 = inlined_call_operand.vmem [shape: f32[32,128], index: 11, kind: input, shape index: {}]
  %s12 = inlined_call_operand.vmem [shape: f32[1,128], index: 12, kind: input, shape index: {}]
  %s13 = inlined_call_operand.vmem [shape: f32[32,128], index: 13, kind: input, shape index: {}]
  %s14 = inlined_call_operand.hbm [shape: f32[32,128], index: 14, kind: input, shape index: {}]
  %s15 = inlined_call_operand.vmem [shape: f32[1,128], index: 15, kind: input, shape index: {}]
  %s16 = inlined_call_operand.vmem [shape: s32[4,1], index: 16, kind: output, shape index: {}]
  %s17 = sld [smem:[#allocation0]]
  $region98: #{tpu_custom_call.1} parent=0
    _
  %s19 = ssub.s32 1, %s17
  %s20 = scalar_select 0, %s19, %s17
  $region1: #{tpu_custom_call.1} parent=0
    #allocation2 [shape = 'u8[4096]{0}', space=vmem, size = 0x1000, scoped, tag = 'input window, operand 0, single buffered']
    #allocation3 [shape = 's32[1]{0}', space=sflag, size = 0x4, scoped, tag = 'scoped memory for tpu_custom_call.1']
    #allocation4 [shape = 'u8[512]{0}', space=vmem, size = 0x400, scoped, tag = 'input window, operand 3, single buffered']
    #allocation5 [shape = 's32[1]{0}', space=sflag, size = 0x4, scoped, tag = 'scoped memory for tpu_custom_call.1']
    #allocation6 [shape = 'u8[512]{0}', space=vmem, size = 0x400, scoped, tag = 'input window, operand 6, single buffered']
    #allocation7 [shape = 'u8[512]{0}', space=vmem, size = 0x400, scoped, tag = 'input window, operand 7, single buffered']
    #allocation8 [shape = 's32[1]{0}', space=sflag, size = 0x4, scoped, tag = 'scoped memory for tpu_custom_call.1']
    #allocation9 [shape = 'u8[1024]{0}', space=vmem, size = 0x400, scoped, tag = 'input window, operand 9, single buffered']
    #allocation10 [shape = 'u8[16384]{0}', space=vmem, size = 0x4000, scoped, tag = 'input window, operand 14, single buffered']
    #allocation11 [shape = 's32[1]{0}', space=sflag, size = 0x4, scoped, tag = 'scoped memory for tpu_custom_call.1']
    %21 = vsyncpa [#allocation3], 0
    %22 = vsyncpa [#allocation5], 0
    %23 = vsyncpa [#allocation8], 0
    %24 = vsyncpa [#allocation11], 0
    // Predicated region
    $region2: #{tpu_custom_call.1} parent=1 // pred_check
      _
    $region3: #{tpu_custom_call.1} parent=1 // pred_check_branch
      %26 = sbr.rel (0) target = $region5
    $region4: #{tpu_custom_call.1} parent=1 // pred_region
      %s28 = ssub.s32 128, 128
      %29 = vsyncadd [#allocation3], %s28
      %s31 = sshll.u32 [#allocation2], 4
      %s32 = int_to_ptr.vmem [resolvable:$true] %s31
      %34 = dma.hbm_to_vmem [thread:$0]  %s0, 128, %s32, [#allocation3]
    $region5: #{tpu_custom_call.1} parent=1 // pred_fallthru
      _
    // Predicated region
    $region6: #{tpu_custom_call.1} parent=1 // pred_check
      _
    $region7: #{tpu_custom_call.1} parent=1 // pred_check_branch
      %36 = sbr.rel (0) target = $region9
    $region8: #{tpu_custom_call.1} parent=1 // pred_region
      _
    $region9: #{tpu_custom_call.1} parent=1 // pred_fallthru
      _
    // Predicated region
    $region10: #{tpu_custom_call.1} parent=1 // pred_check
      _
    $region11: #{tpu_custom_call.1} parent=1 // pred_check_branch
      %38 = sbr.rel (0) target = $region13
    $region12: #{tpu_custom_call.1} parent=1 // pred_region
      _
    $region13: #{tpu_custom_call.1} parent=1 // pred_fallthru
      _
    // Predicated region
    $region14: #{tpu_custom_call.1} parent=1 // pred_check
      _
    $region15: #{tpu_custom_call.1} parent=1 // pred_check_branch
      %40 = sbr.rel (0) target = $region17
    $region16: #{tpu_custom_call.1} parent=1 // pred_region
      %s42 = ssub.s32 16, 16
      %43 = vsyncadd [#allocation5], %s42
      %s45 = sshll.u32 [#allocation4], 4
      %s46 = int_to_ptr.vmem [resolvable:$true] %s45
      %48 = dma.hbm_to_vmem [thread:$0]  %s3, 16, %s46, [#allocation5]
    $region17: #{tpu_custom_call.1} parent=1 // pred_fallthru
      _
    // Predicated region
    $region18: #{tpu_custom_call.1} parent=1 // pred_check
      _
    $region19: #{tpu_custom_call.1} parent=1 // pred_check_branch
      %50 = sbr.rel (0) target = $region21
    $region20: #{tpu_custom_call.1} parent=1 // pred_region
      _
    $region21: #{tpu_custom_call.1} parent=1 // pred_fallthru
      _
    // Predicated region
    $region22: #{tpu_custom_call.1} parent=1 // pred_check
      _
    $region23: #{tpu_custom_call.1} parent=1 // pred_check_branch
      %52 = sbr.rel (0) target = $region25
    $region24: #{tpu_custom_call.1} parent=1 // pred_region
      _
    $region25: #{tpu_custom_call.1} parent=1 // pred_fallthru
      _
    // Predicated region
    $region26: #{tpu_custom_call.1} parent=1 // pred_check
      _
    $region27: #{tpu_custom_call.1} parent=1 // pred_check_branch
      %54 = sbr.rel (0) target = $region29
    $region28: #{tpu_custom_call.1} parent=1 // pred_region
      %s56 = ssub.s32 16, 16
      %57 = vsyncadd [#allocation5], %s56
      %s59 = sshll.u32 [#allocation6], 4
      %s60 = int_to_ptr.vmem [resolvable:$true] %s59
      %62 = dma.hbm_to_vmem [thread:$0]  %s6, 16, %s60, [#allocation5]
    $region29: #{tpu_custom_call.1} parent=1 // pred_fallthru
      _
    // Predicated region
    $region30: #{tpu_custom_call.1} parent=1 // pred_check
      _
    $region31: #{tpu_custom_call.1} parent=1 // pred_check_branch
      %64 = sbr.rel (0) target = $region33
    $region32: #{tpu_custom_call.1} parent=1 // pred_region
      %s66 = ssub.s32 16, 16
      %67 = vsyncadd [#allocation8], %s66
      %s69 = sshll.u32 [#allocation7], 4
      %s70 = int_to_ptr.vmem [resolvable:$true] %s69
      %72 = dma.hbm_to_vmem [thread:$0]  %s7, 16, %s70, [#allocation8]
    $region33: #{tpu_custom_call.1} parent=1 // pred_fallthru
      _
    // Predicated region
    $region34: #{tpu_custom_call.1} parent=1 // pred_check
      _
    $region35: #{tpu_custom_call.1} parent=1 // pred_check_branch
      %74 = sbr.rel (0) target = $region37
    $region36: #{tpu_custom_call.1} parent=1 // pred_region
      _
    $region37: #{tpu_custom_call.1} parent=1 // pred_fallthru
      _
    // Predicated region
    $region38: #{tpu_custom_call.1} parent=1 // pred_check
      _
    $region39: #{tpu_custom_call.1} parent=1 // pred_check_branch
      %76 = sbr.rel (0) target = $region41
    $region40: #{tpu_custom_call.1} parent=1 // pred_region
      %s78 = ssub.s32 32, 32
      %79 = vsyncadd [#allocation8], %s78
      %s80 = sshll.u32 [#allocation9], 4
      %s81 = int_to_ptr.vmem [resolvable:$true] %s80
      %86 = dma.hbm_to_vmem [thread:$0]  %s9, 32, %s81, [#allocation8], 16, 16, 1
    $region41: #{tpu_custom_call.1} parent=1 // pred_fallthru
      _
    // Predicated region
    $region42: #{tpu_custom_call.1} parent=1 // pred_check
      _
    $region43: #{tpu_custom_call.1} parent=1 // pred_check_branch
      %88 = sbr.rel (0) target = $region45
    $region44: #{tpu_custom_call.1} parent=1 // pred_region
      _
    $region45: #{tpu_custom_call.1} parent=1 // pred_fallthru
      _
    // Predicated region
    $region46: #{tpu_custom_call.1} parent=1 // pred_check
      _
    $region47: #{tpu_custom_call.1} parent=1 // pred_check_branch
      %90 = sbr.rel (0) target = $region49
    $region48: #{tpu_custom_call.1} parent=1 // pred_region
      _
    $region49: #{tpu_custom_call.1} parent=1 // pred_fallthru
      _
    // Predicated region
    $region50: #{tpu_custom_call.1} parent=1 // pred_check
      _
    $region51: #{tpu_custom_call.1} parent=1 // pred_check_branch
      %92 = sbr.rel (0) target = $region53
    $region52: #{tpu_custom_call.1} parent=1 // pred_region
      _
    $region53: #{tpu_custom_call.1} parent=1 // pred_fallthru
      _
    // Predicated region
    $region54: #{tpu_custom_call.1} parent=1 // pred_check
      _
    $region55: #{tpu_custom_call.1} parent=1 // pred_check_branch
      %94 = sbr.rel (0) target = $region57
    $region56: #{tpu_custom_call.1} parent=1 // pred_region
      _
    $region57: #{tpu_custom_call.1} parent=1 // pred_fallthru
      _
    // Predicated region
    $region58: #{tpu_custom_call.1} parent=1 // pred_check
      _
    $region59: #{tpu_custom_call.1} parent=1 // pred_check_branch
      %96 = sbr.rel (0) target = $region61
    $region60: #{tpu_custom_call.1} parent=1 // pred_region
      %s98 = ssub.s32 512, 512
      %99 = vsyncadd [#allocation11], %s98
      %s100 = sshll.u32 [#allocation10], 4
      %s101 = int_to_ptr.vmem [resolvable:$true] %s100
      %106 = dma.hbm_to_vmem [thread:$0]  %s14, 512, %s101, [#allocation11], 128, 128, 8
    $region61: #{tpu_custom_call.1} parent=1 // pred_fallthru
      _
    // Predicated region
    $region62: #{tpu_custom_call.1} parent=1 // pred_check
      _
    $region63: #{tpu_custom_call.1} parent=1 // pred_check_branch
      %108 = sbr.rel (0) target = $region65
    $region64: #{tpu_custom_call.1} parent=1 // pred_region
      _
    $region65: #{tpu_custom_call.1} parent=1 // pred_fallthru
      _
    // Predicated region
    $region66: #{tpu_custom_call.1} parent=1 // pred_check
      _
    $region67: #{tpu_custom_call.1} parent=1 // pred_check_branch
      %110 = sbr.rel (0) target = $region69
    $region68: #{tpu_custom_call.1} parent=1 // pred_region
      %111 = dma.done [#allocation3], 128
    $region69: #{tpu_custom_call.1} parent=1 // pred_fallthru
      _
    // Predicated region
    $region70: #{tpu_custom_call.1} parent=1 // pred_check
      _
    $region71: #{tpu_custom_call.1} parent=1 // pred_check_branch
      %113 = sbr.rel (0) target = $region73
    $region72: #{tpu_custom_call.1} parent=1 // pred_region
      %114 = dma.done [#allocation5], 16
    $region73: #{tpu_custom_call.1} parent=1 // pred_fallthru
      _
    // Predicated region
    $region74: #{tpu_custom_call.1} parent=1 // pred_check
      _
    $region75: #{tpu_custom_call.1} parent=1 // pred_check_branch
      %116 = sbr.rel (0) target = $region77
    $region76: #{tpu_custom_call.1} parent=1 // pred_region
      %117 = dma.done [#allocation5], 16
    $region77: #{tpu_custom_call.1} parent=1 // pred_fallthru
      _
    // Predicated region
    $region78: #{tpu_custom_call.1} parent=1 // pred_check
      _
    $region79: #{tpu_custom_call.1} parent=1 // pred_check_branch
      %119 = sbr.rel (0) target = $region81
    $region80: #{tpu_custom_call.1} parent=1 // pred_region
      %120 = dma.done [#allocation8], 16
    $region81: #{tpu_custom_call.1} parent=1 // pred_fallthru
      _
    // Predicated region
    $region82: #{tpu_custom_call.1} parent=1 // pred_check
      _
    $region83: #{tpu_custom_call.1} parent=1 // pred_check_branch
      %122 = sbr.rel (0) target = $region85
    $region84: #{tpu_custom_call.1} parent=1 // pred_region
      %123 = dma.done [#allocation8], 32
    $region85: #{tpu_custom_call.1} parent=1 // pred_fallthru
      _
    // Predicated region
    $region86: #{tpu_custom_call.1} parent=1 // pred_check
      _
    $region87: #{tpu_custom_call.1} parent=1 // pred_check_branch
      %125 = sbr.rel (0) target = $region89
    $region88: #{tpu_custom_call.1} parent=1 // pred_region
      %126 = dma.done [#allocation11], 512
    $region89: #{tpu_custom_call.1} parent=1 // pred_fallthru
      _
    %v127 = vld [vmem:[#allocation2] sm:$0xff]
    %v128 = vld [vmem:[%s2] sm:$0xff]
    %v129 = vld [vmem:[%s2 + $0x8] sm:$0xff]
    %v130 = vld [vmem:[%s2 + $0x10] sm:$0xff]
    %v131 = vld [vmem:[%s2 + $0x18] sm:$0xff]
    %v132 = vld [vmem:[#allocation4] sm:$0x1]
    %v133 = vld [vmem:[%s5] sm:$0xff]
    %v134 = vld [vmem:[%s5 + $0x8] sm:$0xff]
    %v135 = vld [vmem:[%s5 + $0x10] sm:$0xff]
    %v136 = vld [vmem:[%s5 + $0x18] sm:$0xff]
    %v137 = vld [vmem:[#allocation6] sm:$0x1]
    %v138 = vld [vmem:[%s10] sm:$0xff]
    %v139 = vld [vmem:[%s10 + $0x8] sm:$0xff]
    %v140 = vld [vmem:[%s10 + $0x10] sm:$0xff]
    %v141 = vld [vmem:[%s10 + $0x18] sm:$0xff]
    %v142 = vld [vmem:[%s10 + $0x20] sm:$0xff]
    %v143 = vld [vmem:[%s10 + $0x28] sm:$0xff]
    %v144 = vld [vmem:[%s10 + $0x30] sm:$0xff]
    %v145 = vld [vmem:[%s10 + $0x38] sm:$0xff]
    %v146 = vld [vmem:[%s13] sm:$0xff]
    %v147 = vld [vmem:[%s13 + $0x8] sm:$0xff]
    %v148 = vld [vmem:[%s13 + $0x10] sm:$0xff]
    %v149 = vld [vmem:[%s13 + $0x18] sm:$0xff]
    %v150 = vld [vmem:[%s11] sm:$0xff]
    %v151 = vld [vmem:[%s11 + $0x8] sm:$0xff]
    %v152 = vld [vmem:[%s11 + $0x10] sm:$0xff]
    %v153 = vld [vmem:[%s11 + $0x18] sm:$0xff]
    %v154 = vld [vmem:[#allocation10] sm:$0xff]
    %v155 = vld [vmem:[#allocation10 + $0x8] sm:$0xff]
    %v156 = vld [vmem:[#allocation10 + $0x10] sm:$0xff]
    %v157 = vld [vmem:[#allocation10 + $0x18] sm:$0xff]
    %v158 = vld [vmem:[%s12] sm:$0x1]
    %v159 = vld [vmem:[%s15] sm:$0x1]
    %v160 = vld [vmem:[%s1] sm:$0xff]
    %v161 = vld [vmem:[%s1 + $0x8] sm:$0xff]
    %v162 = vld [vmem:[%s1 + $0x10] sm:$0xff]
    %v163 = vld [vmem:[%s1 + $0x18] sm:$0xff]
    %v164 = vld [vmem:[%s1 + $0x20] sm:$0xff]
    %v165 = vld [vmem:[%s1 + $0x28] sm:$0xff]
    %v166 = vld [vmem:[%s1 + $0x30] sm:$0xff]
    %v167 = vld [vmem:[%s1 + $0x38] sm:$0xff]
    %vm168 = vcmask 523264
    %v170 = vsel %vm168, %v127, 0
    %172 = vmatprep.subr.mxu0 0.0
    %173 = vmatpush1.msra.mxu0 %v160
    %174 = vmatprep.subr.mxu0 0.0
    %175 = vmatpush1.msra.mxu0 %v161
    %176 = vmatprep.subr.mxu0 0.0
    %177 = vmatpush1.msra.mxu0 %v162
    %178 = vmatprep.subr.mxu0 0.0
    %179 = vmatpush1.msra.mxu0 %v163
    %180 = vmatprep.subr.mxu0 0.0
    %181 = vmatpush1.msra.mxu0 %v164
    %182 = vmatprep.subr.mxu0 0.0
    %183 = vmatpush1.msra.mxu0 %v165
    %184 = vmatprep.subr.mxu0 0.0
    %185 = vmatpush1.msra.mxu0 %v166
    %186 = vmatprep.subr.mxu0 0.0
    %187 = vmatpush1.msra.mxu0 %v167
    %188 = vmatprep.subr.mxu0 0.0
    %189 = vmatpush1.msra.mxu0 0.0
    %190 = vmatprep.subr.mxu0 0.0
    %191 = vmatpush1.msra.mxu0 0.0
    %192 = vmatprep.subr.mxu0 0.0
    %193 = vmatpush1.msra.mxu0 0.0
    %194 = vmatprep.subr.mxu0 0.0
    %195 = vmatpush1.msra.mxu0 0.0
    %196 = vmatprep.subr.mxu0 0.0
    %197 = vmatpush1.msra.mxu0 0.0
    %198 = vmatprep.subr.mxu0 0.0
    %199 = vmatpush1.msra.mxu0 0.0
    %200 = vmatprep.subr.mxu0 0.0
    %201 = vmatpush1.msra.mxu0 0.0
    %202 = vmatprep.subr.mxu0 0.0
    %203 = vmatpush1.msra.mxu0 0.0
    %204 = vmatprep.subr.mxu0 0.0
    %205 = vmatpush1.msra.mxu0 0.0
    %206 = vmatprep.subr.mxu0 0.0
    %207 = vmatpush1.msra.mxu0 0.0
    %208 = vmatprep.subr.mxu0 0.0
    %209 = vmatpush1.msra.mxu0 0.0
    %210 = vmatprep.subr.mxu0 0.0
    %211 = vmatpush1.msra.mxu0 0.0
    %212 = vmatprep.subr.mxu0 0.0
    %213 = vmatpush1.msra.mxu0 0.0
    %214 = vmatprep.subr.mxu0 0.0
    %215 = vmatpush1.msra.mxu0 0.0
    %216 = vmatprep.subr.mxu0 0.0
    %217 = vmatpush1.msra.mxu0 0.0
    %218 = vmatprep.subr.mxu0 0.0
    %219 = vmatpush1.msra.mxu0 0.0
    %220 = vmatprep.subr.mxu0 0.0
    %221 = vmatpush1.msra.mxu0 0.0
    %222 = vmatprep.subr.mxu0 0.0
    %223 = vmatpush1.msra.mxu0 0.0
    %224 = vmatprep.subr.mxu0 0.0
    %225 = vmatpush1.msra.mxu0 0.0
    %226 = vmatprep.subr.mxu0 0.0
    %227 = vmatpush1.msra.mxu0 0.0
    %228 = vmatprep.subr.mxu0 0.0
    %229 = vmatpush1.msra.mxu0 0.0
    %230 = vmatprep.subr.mxu0 0.0
    %231 = vmatpush1.msra.mxu0 0.0
    %232 = vmatprep.subr.mxu0 0.0
    %233 = vmatpush1.msra.mxu0 0.0
    %234 = vmatprep.subr.mxu0 0.0
    %235 = vmatpush1.msra.mxu0 0.0
    %236 = vmatprep.mubr.f32.mxu0 0.0
    %237 = vmatmul.mubr.f32.gmra.mrb[0].mxu0 %v170
    %v238 = vpop.f32.mrb[0].mxu0
    %v239 = vadd.f32 0.0, %v238
    %v240 = vpop.f32.mrb[0].mxu0
    %241 = vdwg.mxu0
    %v242 = vld [vmem:[%s4] sm:$0xff]
    %v243 = vld [vmem:[%s4 + $0x8] sm:$0xff]
    %v244 = vld [vmem:[%s4 + $0x10] sm:$0xff]
    %v245 = vld [vmem:[%s4 + $0x18] sm:$0xff]
    %v246 = vld [vmem:[%s4 + $0x20] sm:$0xff]
    %v247 = vld [vmem:[%s4 + $0x28] sm:$0xff]
    %v248 = vld [vmem:[%s4 + $0x30] sm:$0xff]
    %v249 = vld [vmem:[%s4 + $0x38] sm:$0xff]
    %250 = vmatprep.subr.mxu0 0.0
    %251 = vmatpush1.msra.mxu0 %v242
    %252 = vmatprep.subr.mxu0 0.0
    %253 = vmatpush1.msra.mxu0 %v243
    %254 = vmatprep.subr.mxu0 0.0
    %255 = vmatpush1.msra.mxu0 %v244
    %256 = vmatprep.subr.mxu0 0.0
    %257 = vmatpush1.msra.mxu0 %v245
    %258 = vmatprep.subr.mxu0 0.0
    %259 = vmatpush1.msra.mxu0 %v246
    %260 = vmatprep.subr.mxu0 0.0
    %261 = vmatpush1.msra.mxu0 %v247
    %262 = vmatprep.subr.mxu0 0.0
    %263 = vmatpush1.msra.mxu0 %v248
    %264 = vmatprep.subr.mxu0 0.0
    %265 = vmatpush1.msra.mxu0 %v249
    %266 = vmatprep.subr.mxu0 0.0
    %267 = vmatpush1.msra.mxu0 0.0
    %268 = vmatprep.subr.mxu0 0.0
    %269 = vmatpush1.msra.mxu0 0.0
    %270 = vmatprep.subr.mxu0 0.0
    %271 = vmatpush1.msra.mxu0 0.0
    %272 = vmatprep.subr.mxu0 0.0
    %273 = vmatpush1.msra.mxu0 0.0
    %274 = vmatprep.subr.mxu0 0.0
    %275 = vmatpush1.msra.mxu0 0.0
    %276 = vmatprep.subr.mxu0 0.0
    %277 = vmatpush1.msra.mxu0 0.0
    %278 = vmatprep.subr.mxu0 0.0
    %279 = vmatpush1.msra.mxu0 0.0
    %280 = vmatprep.subr.mxu0 0.0
    %281 = vmatpush1.msra.mxu0 0.0
    %282 = vmatprep.subr.mxu0 0.0
    %283 = vmatpush1.msra.mxu0 0.0
    %284 = vmatprep.subr.mxu0 0.0
    %285 = vmatpush1.msra.mxu0 0.0
    %286 = vmatprep.subr.mxu0 0.0
    %287 = vmatpush1.msra.mxu0 0.0
    %288 = vmatprep.subr.mxu0 0.0
    %289 = vmatpush1.msra.mxu0 0.0
    %290 = vmatprep.subr.mxu0 0.0
    %291 = vmatpush1.msra.mxu0 0.0
    %292 = vmatprep.subr.mxu0 0.0
    %293 = vmatpush1.msra.mxu0 0.0
    %294 = vmatprep.subr.mxu0 0.0
    %295 = vmatpush1.msra.mxu0 0.0
    %296 = vmatprep.subr.mxu0 0.0
    %297 = vmatpush1.msra.mxu0 0.0
    %298 = vmatprep.subr.mxu0 0.0
    %299 = vmatpush1.msra.mxu0 0.0
    %300 = vmatprep.subr.mxu0 0.0
    %301 = vmatpush1.msra.mxu0 0.0
    %302 = vmatprep.subr.mxu0 0.0
    %303 = vmatpush1.msra.mxu0 0.0
    %304 = vmatprep.subr.mxu0 0.0
    %305 = vmatpush1.msra.mxu0 0.0
    %306 = vmatprep.subr.mxu0 0.0
    %307 = vmatpush1.msra.mxu0 0.0
    %308 = vmatprep.subr.mxu0 0.0
    %309 = vmatpush1.msra.mxu0 0.0
    %310 = vmatprep.subr.mxu0 0.0
    %311 = vmatpush1.msra.mxu0 0.0
    %312 = vmatprep.subr.mxu0 0.0
    %313 = vmatpush1.msra.mxu0 0.0
    %314 = vmatprep.mubr.f32.mxu0 0.0
    %315 = vmatmul.mubr.f32.gmra.mrb[0].mxu0 %v170
    %v316 = vpop.f32.mrb[0].mxu0
    %v317 = vadd.f32 0.0, %v316
    %v318 = vpop.f32.mrb[0].mxu0
    %319 = vdwg.mxu0
    %v320 = vld [vmem:[#allocation7] sm:$0x1]
    %v321 = vld [vmem:[%s8] sm:$0x1]
    %s322 = scalar_lea.vmem %s8, 1
    %v323 = vld [vmem:[%s322] sm:$0x1]
    %v324 = vld [vmem:[#allocation9] sm:$0x1]
    %s325 = scalar_lea.vmem [#allocation9], 1
    %v326 = vld [vmem:[%s325] sm:$0x1]
    %v327 = vlaneseq
    %v328 = vshrl.u32 %v327, 7
    %vm329 = vcmask 261120
    %v331 = vsel %vm329, %v321, 0
    %333 = vmatprep.subr.mxu0 0.0
    %334 = vmatpush1.msra.mxu0 %v150
    %335 = vmatprep.subr.mxu0 0.0
    %336 = vmatpush1.msra.mxu0 %v151
    %337 = vmatprep.subr.mxu0 0.0
    %338 = vmatpush1.msra.mxu0 %v152
    %339 = vmatprep.subr.mxu0 0.0
    %340 = vmatpush1.msra.mxu0 %v153
    %341 = vmatprep.subr.mxu0 0.0
    %342 = vmatpush1.msra.mxu0 0.0
    %343 = vmatprep.subr.mxu0 0.0
    %344 = vmatpush1.msra.mxu0 0.0
    %345 = vmatprep.subr.mxu0 0.0
    %346 = vmatpush1.msra.mxu0 0.0
    %347 = vmatprep.subr.mxu0 0.0
    %348 = vmatpush1.msra.mxu0 0.0
    %349 = vmatprep.subr.mxu0 0.0
    %350 = vmatpush1.msra.mxu0 0.0
    %351 = vmatprep.subr.mxu0 0.0
    %352 = vmatpush1.msra.mxu0 0.0
    %353 = vmatprep.subr.mxu0 0.0
    %354 = vmatpush1.msra.mxu0 0.0
    %355 = vmatprep.subr.mxu0 0.0
    %356 = vmatpush1.msra.mxu0 0.0
    %357 = vmatprep.subr.mxu0 0.0
    %358 = vmatpush1.msra.mxu0 0.0
    %359 = vmatprep.subr.mxu0 0.0
    %360 = vmatpush1.msra.mxu0 0.0
    %361 = vmatprep.subr.mxu0 0.0
    %362 = vmatpush1.msra.mxu0 0.0
    %363 = vmatprep.subr.mxu0 0.0
    %364 = vmatpush1.msra.mxu0 0.0
    %365 = vmatprep.subr.mxu0 0.0
    %366 = vmatpush1.msra.mxu0 0.0
    %367 = vmatprep.subr.mxu0 0.0
    %368 = vmatpush1.msra.mxu0 0.0
    %369 = vmatprep.subr.mxu0 0.0
    %370 = vmatpush1.msra.mxu0 0.0
    %371 = vmatprep.subr.mxu0 0.0
    %372 = vmatpush1.msra.mxu0 0.0
    %373 = vmatprep.subr.mxu0 0.0
    %374 = vmatpush1.msra.mxu0 0.0
    %375 = vmatprep.subr.mxu0 0.0
    %376 = vmatpush1.msra.mxu0 0.0
    %377 = vmatprep.subr.mxu0 0.0
    %378 = vmatpush1.msra.mxu0 0.0
    %379 = vmatprep.subr.mxu0 0.0
    %380 = vmatpush1.msra.mxu0 0.0
    %381 = vmatprep.subr.mxu0 0.0
    %382 = vmatpush1.msra.mxu0 0.0
    %383 = vmatprep.subr.mxu0 0.0
    %384 = vmatpush1.msra.mxu0 0.0
    %385 = vmatprep.subr.mxu0 0.0
    %386 = vmatpush1.msra.mxu0 0.0
    %387 = vmatprep.subr.mxu0 0.0
    %388 = vmatpush1.msra.mxu0 0.0
    %389 = vmatprep.subr.mxu0 0.0
    %390 = vmatpush1.msra.mxu0 0.0
    %391 = vmatprep.subr.mxu0 0.0
    %392 = vmatpush1.msra.mxu0 0.0
    %393 = vmatprep.subr.mxu0 0.0
    %394 = vmatpush1.msra.mxu0 0.0
    %395 = vmatprep.subr.mxu0 0.0
    %396 = vmatpush1.msra.mxu0 0.0
    %397 = vmatprep.mubr.f32.mxu0 0.0
    %398 = vmatmul.mubr.f32.gmra.mrb[0].mxu0 %v331
    %v399 = vpop.f32.mrb[0].mxu0
    %v400 = vadd.f32 0.0, %v399
    %v401 = vpop.f32.mrb[0].mxu0
    %402 = vdwg.mxu0
    %v404 = vsel %vm168, %v320, 0
    %406 = vmatprep.subr.mxu0 0.0
    %407 = vmatpush1.msra.mxu0 %v138
    %408 = vmatprep.subr.mxu0 0.0
    %409 = vmatpush1.msra.mxu0 %v139
    %410 = vmatprep.subr.mxu0 0.0
    %411 = vmatpush1.msra.mxu0 %v140
    %412 = vmatprep.subr.mxu0 0.0
    %413 = vmatpush1.msra.mxu0 %v141
    %414 = vmatprep.subr.mxu0 0.0
    %415 = vmatpush1.msra.mxu0 %v142
    %416 = vmatprep.subr.mxu0 0.0
    %417 = vmatpush1.msra.mxu0 %v143
    %418 = vmatprep.subr.mxu0 0.0
    %419 = vmatpush1.msra.mxu0 %v144
    %420 = vmatprep.subr.mxu0 0.0
    %421 = vmatpush1.msra.mxu0 %v145
    %422 = vmatprep.subr.mxu0 0.0
    %423 = vmatpush1.msra.mxu0 0.0
    %424 = vmatprep.subr.mxu0 0.0
    %425 = vmatpush1.msra.mxu0 0.0
    %426 = vmatprep.subr.mxu0 0.0
    %427 = vmatpush1.msra.mxu0 0.0
    %428 = vmatprep.subr.mxu0 0.0
    %429 = vmatpush1.msra.mxu0 0.0
    %430 = vmatprep.subr.mxu0 0.0
    %431 = vmatpush1.msra.mxu0 0.0
    %432 = vmatprep.subr.mxu0 0.0
    %433 = vmatpush1.msra.mxu0 0.0
    %434 = vmatprep.subr.mxu0 0.0
    %435 = vmatpush1.msra.mxu0 0.0
    %436 = vmatprep.subr.mxu0 0.0
    %437 = vmatpush1.msra.mxu0 0.0
    %438 = vmatprep.subr.mxu0 0.0
    %439 = vmatpush1.msra.mxu0 0.0
    %440 = vmatprep.subr.mxu0 0.0
    %441 = vmatpush1.msra.mxu0 0.0
    %442 = vmatprep.subr.mxu0 0.0
    %443 = vmatpush1.msra.mxu0 0.0
    %444 = vmatprep.subr.mxu0 0.0
    %445 = vmatpush1.msra.mxu0 0.0
    %446 = vmatprep.subr.mxu0 0.0
    %447 = vmatpush1.msra.mxu0 0.0
    %448 = vmatprep.subr.mxu0 0.0
    %449 = vmatpush1.msra.mxu0 0.0
    %450 = vmatprep.subr.mxu0 0.0
    %451 = vmatpush1.msra.mxu0 0.0
    %452 = vmatprep.subr.mxu0 0.0
    %453 = vmatpush1.msra.mxu0 0.0
    %454 = vmatprep.subr.mxu0 0.0
    %455 = vmatpush1.msra.mxu0 0.0
    %456 = vmatprep.subr.mxu0 0.0
    %457 = vmatpush1.msra.mxu0 0.0
    %458 = vmatprep.subr.mxu0 0.0
    %459 = vmatpush1.msra.mxu0 0.0
    %460 = vmatprep.subr.mxu0 0.0
    %461 = vmatpush1.msra.mxu0 0.0
    %462 = vmatprep.subr.mxu0 0.0
    %463 = vmatpush1.msra.mxu0 0.0
    %464 = vmatprep.subr.mxu0 0.0
    %465 = vmatpush1.msra.mxu0 0.0
    %466 = vmatprep.subr.mxu0 0.0
    %467 = vmatpush1.msra.mxu0 0.0
    %468 = vmatprep.subr.mxu0 0.0
    %469 = vmatpush1.msra.mxu0 0.0
    %470 = vmatprep.mubr.f32.mxu0 0.0
    %471 = vmatmul.mubr.f32.gmra.mrb[0].mxu0 %v404
    %v472 = vpop.f32.mrb[0].mxu0
    %v473 = vadd.f32 %v400, %v472
    %v474 = vpop.f32.mrb[0].mxu0
    %475 = vdwg.mxu0
    %v476 = vadd.f32 %v473, %v158
    %v477 = vxor.u32 %v476, 2147483648
    %v478 = vmul.f32 %v477, 1.442695
    %v479 = vpow.pop %v478
    %v480 = vadd.f32 %v479, 1.0
    %v481 = vrcp.pop %v480
    %v482 = vmul.f32 1.0, %v481
    %v483 = vtanh.pop %v476
    %v485 = vlaneseq
    %v486 = vshrl.u32 %v485, 7
    %v487 = vsub.s32 0, %v486
    %v488 = vrot.slane %v324, %v487
    %489 = vrot.lane.b32.xlu0 %v488, 32
    %v490 = vpop.permute.xlu0 %489
    %v492 = vmul.f32 %v482, %v490
    %494 = vrot.lane.b32.xlu0 %v483, 64
    %v495 = vpop.permute.xlu0 %494
    %v497 = vmul.f32 %v482, %v495
    %499 = vrot.lane.b32.xlu0 %v497, 32
    %v500 = vpop.permute.xlu0 %499
    %v502 = vadd.f32 %v492, %v500
    %v503 = vtanh.pop %v502
    %505 = vrot.lane.b32.xlu0 %v503, 64
    %v506 = vpop.permute.xlu0 %505
    %v508 = vmul.f32 %v482, %v506
    %v510 = vsel %vm329, %v323, 0
    %512 = vmatprep.subr.mxu0 0.0
    %513 = vmatpush1.msra.mxu0 %v154
    %514 = vmatprep.subr.mxu0 0.0
    %515 = vmatpush1.msra.mxu0 %v155
    %516 = vmatprep.subr.mxu0 0.0
    %517 = vmatpush1.msra.mxu0 %v156
    %518 = vmatprep.subr.mxu0 0.0
    %519 = vmatpush1.msra.mxu0 %v157
    %520 = vmatprep.subr.mxu0 0.0
    %521 = vmatpush1.msra.mxu0 0.0
    %522 = vmatprep.subr.mxu0 0.0
    %523 = vmatpush1.msra.mxu0 0.0
    %524 = vmatprep.subr.mxu0 0.0
    %525 = vmatpush1.msra.mxu0 0.0
    %526 = vmatprep.subr.mxu0 0.0
    %527 = vmatpush1.msra.mxu0 0.0
    %528 = vmatprep.subr.mxu0 0.0
    %529 = vmatpush1.msra.mxu0 0.0
    %530 = vmatprep.subr.mxu0 0.0
    %531 = vmatpush1.msra.mxu0 0.0
    %532 = vmatprep.subr.mxu0 0.0
    %533 = vmatpush1.msra.mxu0 0.0
    %534 = vmatprep.subr.mxu0 0.0
    %535 = vmatpush1.msra.mxu0 0.0
    %536 = vmatprep.subr.mxu0 0.0
    %537 = vmatpush1.msra.mxu0 0.0
    %538 = vmatprep.subr.mxu0 0.0
    %539 = vmatpush1.msra.mxu0 0.0
    %540 = vmatprep.subr.mxu0 0.0
    %541 = vmatpush1.msra.mxu0 0.0
    %542 = vmatprep.subr.mxu0 0.0
    %543 = vmatpush1.msra.mxu0 0.0
    %544 = vmatprep.subr.mxu0 0.0
    %545 = vmatpush1.msra.mxu0 0.0
    %546 = vmatprep.subr.mxu0 0.0
    %547 = vmatpush1.msra.mxu0 0.0
    %548 = vmatprep.subr.mxu0 0.0
    %549 = vmatpush1.msra.mxu0 0.0
    %550 = vmatprep.subr.mxu0 0.0
    %551 = vmatpush1.msra.mxu0 0.0
    %552 = vmatprep.subr.mxu0 0.0
    %553 = vmatpush1.msra.mxu0 0.0
    %554 = vmatprep.subr.mxu0 0.0
    %555 = vmatpush1.msra.mxu0 0.0
    %556 = vmatprep.subr.mxu0 0.0
    %557 = vmatpush1.msra.mxu0 0.0
    %558 = vmatprep.subr.mxu0 0.0
    %559 = vmatpush1.msra.mxu0 0.0
    %560 = vmatprep.subr.mxu0 0.0
    %561 = vmatpush1.msra.mxu0 0.0
    %562 = vmatprep.subr.mxu0 0.0
    %563 = vmatpush1.msra.mxu0 0.0
    %564 = vmatprep.subr.mxu0 0.0
    %565 = vmatpush1.msra.mxu0 0.0
    %566 = vmatprep.subr.mxu0 0.0
    %567 = vmatpush1.msra.mxu0 0.0
    %568 = vmatprep.subr.mxu0 0.0
    %569 = vmatpush1.msra.mxu0 0.0
    %570 = vmatprep.subr.mxu0 0.0
    %571 = vmatpush1.msra.mxu0 0.0
    %572 = vmatprep.subr.mxu0 0.0
    %573 = vmatpush1.msra.mxu0 0.0
    %574 = vmatprep.subr.mxu0 0.0
    %575 = vmatpush1.msra.mxu0 0.0
    %576 = vmatprep.mubr.f32.mxu0 0.0
    %577 = vmatmul.mubr.f32.gmra.mrb[0].mxu0 %v510
    %v578 = vpop.f32.mrb[0].mxu0
    %v579 = vadd.f32 0.0, %v578
    %v580 = vpop.f32.mrb[0].mxu0
    %581 = vdwg.mxu0
    %583 = vrot.lane.b32.xlu0 %v508, 32
    %v584 = vpop.permute.xlu0 %583
    %v585 = vsel %vm329, %v584, 0
    %587 = vmatprep.subr.mxu0 0.0
    %588 = vmatpush1.msra.mxu0 %v146
    %589 = vmatprep.subr.mxu0 0.0
    %590 = vmatpush1.msra.mxu0 %v147
    %591 = vmatprep.subr.mxu0 0.0
    %592 = vmatpush1.msra.mxu0 %v148
    %593 = vmatprep.subr.mxu0 0.0
    %594 = vmatpush1.msra.mxu0 %v149
    %595 = vmatprep.subr.mxu0 0.0
    %596 = vmatpush1.msra.mxu0 0.0
    %597 = vmatprep.subr.mxu0 0.0
    %598 = vmatpush1.msra.mxu0 0.0
    %599 = vmatprep.subr.mxu0 0.0
    %600 = vmatpush1.msra.mxu0 0.0
    %601 = vmatprep.subr.mxu0 0.0
    %602 = vmatpush1.msra.mxu0 0.0
    %603 = vmatprep.subr.mxu0 0.0
    %604 = vmatpush1.msra.mxu0 0.0
    %605 = vmatprep.subr.mxu0 0.0
    %606 = vmatpush1.msra.mxu0 0.0
    %607 = vmatprep.subr.mxu0 0.0
    %608 = vmatpush1.msra.mxu0 0.0
    %609 = vmatprep.subr.mxu0 0.0
    %610 = vmatpush1.msra.mxu0 0.0
    %611 = vmatprep.subr.mxu0 0.0
    %612 = vmatpush1.msra.mxu0 0.0
    %613 = vmatprep.subr.mxu0 0.0
    %614 = vmatpush1.msra.mxu0 0.0
    %615 = vmatprep.subr.mxu0 0.0
    %616 = vmatpush1.msra.mxu0 0.0
    %617 = vmatprep.subr.mxu0 0.0
    %618 = vmatpush1.msra.mxu0 0.0
    %619 = vmatprep.subr.mxu0 0.0
    %620 = vmatpush1.msra.mxu0 0.0
    %621 = vmatprep.subr.mxu0 0.0
    %622 = vmatpush1.msra.mxu0 0.0
    %623 = vmatprep.subr.mxu0 0.0
    %624 = vmatpush1.msra.mxu0 0.0
    %625 = vmatprep.subr.mxu0 0.0
    %626 = vmatpush1.msra.mxu0 0.0
    %627 = vmatprep.subr.mxu0 0.0
    %628 = vmatpush1.msra.mxu0 0.0
    %629 = vmatprep.subr.mxu0 0.0
    %630 = vmatpush1.msra.mxu0 0.0
    %631 = vmatprep.subr.mxu0 0.0
    %632 = vmatpush1.msra.mxu0 0.0
    %633 = vmatprep.subr.mxu0 0.0
    %634 = vmatpush1.msra.mxu0 0.0
    %635 = vmatprep.subr.mxu0 0.0
    %636 = vmatpush1.msra.mxu0 0.0
    %637 = vmatprep.subr.mxu0 0.0
    %638 = vmatpush1.msra.mxu0 0.0
    %639 = vmatprep.subr.mxu0 0.0
    %640 = vmatpush1.msra.mxu0 0.0
    %641 = vmatprep.subr.mxu0 0.0
    %642 = vmatpush1.msra.mxu0 0.0
    %643 = vmatprep.subr.mxu0 0.0
    %644 = vmatpush1.msra.mxu0 0.0
    %645 = vmatprep.subr.mxu0 0.0
    %646 = vmatpush1.msra.mxu0 0.0
    %647 = vmatprep.subr.mxu0 0.0
    %648 = vmatpush1.msra.mxu0 0.0
    %649 = vmatprep.subr.mxu0 0.0
    %650 = vmatpush1.msra.mxu0 0.0
    %651 = vmatprep.mubr.f32.mxu0 0.0
    %652 = vmatmul.mubr.f32.gmra.mrb[0].mxu0 %v585
    %v653 = vpop.f32.mrb[0].mxu0
    %v654 = vadd.f32 %v579, %v653
    %v655 = vpop.f32.mrb[0].mxu0
    %656 = vdwg.mxu0
    %v657 = vadd.f32 %v654, %v159
    %v658 = vxor.u32 %v657, 2147483648
    %v659 = vmul.f32 %v658, 1.442695
    %v660 = vpow.pop %v659
    %v661 = vadd.f32 %v660, 1.0
    %v662 = vrcp.pop %v661
    %v663 = vmul.f32 1.0, %v662
    %v664 = vtanh.pop %v657
    %v666 = vlaneseq
    %v667 = vshrl.u32 %v666, 7
    %v668 = vsub.s32 0, %v667
    %v669 = vrot.slane %v326, %v668
    %670 = vrot.lane.b32.xlu0 %v669, 32
    %v671 = vpop.permute.xlu0 %670
    %v673 = vmul.f32 %v663, %v671
    %675 = vrot.lane.b32.xlu0 %v664, 64
    %v676 = vpop.permute.xlu0 %675
    %v678 = vmul.f32 %v663, %v676
    %680 = vrot.lane.b32.xlu0 %v678, 32
    %v681 = vpop.permute.xlu0 %680
    %v683 = vadd.f32 %v673, %v681
    %v684 = vtanh.pop %v683
    %686 = vrot.lane.b32.xlu0 %v684, 64
    %v687 = vpop.permute.xlu0 %686
    %v689 = vmul.f32 %v663, %v687
    %691 = vrot.lane.b32.xlu0 %v689, 32
    %v692 = vpop.permute.xlu0 %691
    %v693 = vsel %vm329, %v692, 0
    %695 = vmatprep.subr.mxu0 0.0
    %696 = vmatpush1.msra.mxu0 %v133
    %697 = vmatprep.subr.mxu0 0.0
    %698 = vmatpush1.msra.mxu0 %v134
    %699 = vmatprep.subr.mxu0 0.0
    %700 = vmatpush1.msra.mxu0 %v135
    %701 = vmatprep.subr.mxu0 0.0
    %702 = vmatpush1.msra.mxu0 %v136
    %703 = vmatprep.subr.mxu0 0.0
    %704 = vmatpush1.msra.mxu0 0.0
    %705 = vmatprep.subr.mxu0 0.0
    %706 = vmatpush1.msra.mxu0 0.0
    %707 = vmatprep.subr.mxu0 0.0
    %708 = vmatpush1.msra.mxu0 0.0
    %709 = vmatprep.subr.mxu0 0.0
    %710 = vmatpush1.msra.mxu0 0.0
    %711 = vmatprep.subr.mxu0 0.0
    %712 = vmatpush1.msra.mxu0 0.0
    %713 = vmatprep.subr.mxu0 0.0
    %714 = vmatpush1.msra.mxu0 0.0
    %715 = vmatprep.subr.mxu0 0.0
    %716 = vmatpush1.msra.mxu0 0.0
    %717 = vmatprep.subr.mxu0 0.0
    %718 = vmatpush1.msra.mxu0 0.0
    %719 = vmatprep.subr.mxu0 0.0
    %720 = vmatpush1.msra.mxu0 0.0
    %721 = vmatprep.subr.mxu0 0.0
    %722 = vmatpush1.msra.mxu0 0.0
    %723 = vmatprep.subr.mxu0 0.0
    %724 = vmatpush1.msra.mxu0 0.0
    %725 = vmatprep.subr.mxu0 0.0
    %726 = vmatpush1.msra.mxu0 0.0
    %727 = vmatprep.subr.mxu0 0.0
    %728 = vmatpush1.msra.mxu0 0.0
    %729 = vmatprep.subr.mxu0 0.0
    %730 = vmatpush1.msra.mxu0 0.0
    %731 = vmatprep.subr.mxu0 0.0
    %732 = vmatpush1.msra.mxu0 0.0
    %733 = vmatprep.subr.mxu0 0.0
    %734 = vmatpush1.msra.mxu0 0.0
    %735 = vmatprep.subr.mxu0 0.0
    %736 = vmatpush1.msra.mxu0 0.0
    %737 = vmatprep.subr.mxu0 0.0
    %738 = vmatpush1.msra.mxu0 0.0
    %739 = vmatprep.subr.mxu0 0.0
    %740 = vmatpush1.msra.mxu0 0.0
    %741 = vmatprep.subr.mxu0 0.0
    %742 = vmatpush1.msra.mxu0 0.0
    %743 = vmatprep.subr.mxu0 0.0
    %744 = vmatpush1.msra.mxu0 0.0
    %745 = vmatprep.subr.mxu0 0.0
    %746 = vmatpush1.msra.mxu0 0.0
    %747 = vmatprep.subr.mxu0 0.0
    %748 = vmatpush1.msra.mxu0 0.0
    %749 = vmatprep.subr.mxu0 0.0
    %750 = vmatpush1.msra.mxu0 0.0
    %751 = vmatprep.subr.mxu0 0.0
    %752 = vmatpush1.msra.mxu0 0.0
    %753 = vmatprep.subr.mxu0 0.0
    %754 = vmatpush1.msra.mxu0 0.0
    %755 = vmatprep.subr.mxu0 0.0
    %756 = vmatpush1.msra.mxu0 0.0
    %757 = vmatprep.subr.mxu0 0.0
    %758 = vmatpush1.msra.mxu0 0.0
    %759 = vmatprep.mubr.f32.mxu0 0.0
    %760 = vmatmul.mubr.f32.gmra.mrb[0].mxu0 %v693
    %v761 = vpop.f32.mrb[0].mxu0
    %v762 = vadd.f32 0.0, %v761
    %v763 = vpop.f32.mrb[0].mxu0
    %764 = vdwg.mxu0
    %v765 = vlaneseq
    %v766 = vshrl.u32 %v765, 7
    %v767 = vsub.s32 0, %v766
    %v768 = vrot.slane %v762, %v767
    %v769 = vadd.f32 %v317, %v768
    %v770 = vtanh.pop %v769
    %v772 = vlaneseq
    %v773 = vshrl.u32 %v772, 7
    %v774 = vsub.s32 0, %v773
    %v775 = vrot.slane %v137, %v774
    %v777 = vmul.f32 %v770, %v775
    %v778 = vsel %vm329, %v777, 0.0
    %779 = vadd.xlane.f32.xlu0 %v778
    %v780 = vpop.xlane.xlu0 %779
    %v781 = vrot.slane %v780, 4
    %v782 = vmax.f32 %v780, %v781
    %v783 = vrot.slane %v782, 2
    %v784 = vmax.f32 %v782, %v783
    %v785 = vrot.slane %v784, 1
    %v786 = vmax.f32 %v784, %v785
    %v787 = vsub.f32 %v780, %v786
    %v788 = vmul.f32 %v787, 1.442695
    %v789 = vpow.pop %v788
    %v790 = vrot.slane %v789, 4
    %v791 = vadd.f32 %v789, %v790
    %v792 = vrot.slane %v791, 2
    %v793 = vadd.f32 %v791, %v792
    %v794 = vrot.slane %v793, 1
    %v795 = vadd.f32 %v793, %v794
    %v796 = vrcp.pop %v795
    %v797 = vmul.f32 %v789, %v796
    %v798 = vmul.f32 %v797, %v317
    %v799 = vsel %vm329, %v798, 0.0
    %v800 = vrot.slane %v799, 4
    %v801 = vadd.f32 %v799, %v800
    %v802 = vrot.slane %v801, 2
    %v803 = vadd.f32 %v801, %v802
    %v804 = vrot.slane %v803, 1
    %v805 = vadd.f32 %v803, %v804
    %v807 = vsel %vm329, %v805, 0
    %809 = vmatprep.subr.mxu0 0.0
    %810 = vmatpush1.msra.mxu0 %v128
    %811 = vmatprep.subr.mxu0 0.0
    %812 = vmatpush1.msra.mxu0 %v129
    %813 = vmatprep.subr.mxu0 0.0
    %814 = vmatpush1.msra.mxu0 %v130
    %815 = vmatprep.subr.mxu0 0.0
    %816 = vmatpush1.msra.mxu0 %v131
    %817 = vmatprep.subr.mxu0 0.0
    %818 = vmatpush1.msra.mxu0 0.0
    %819 = vmatprep.subr.mxu0 0.0
    %820 = vmatpush1.msra.mxu0 0.0
    %821 = vmatprep.subr.mxu0 0.0
    %822 = vmatpush1.msra.mxu0 0.0
    %823 = vmatprep.subr.mxu0 0.0
    %824 = vmatpush1.msra.mxu0 0.0
    %825 = vmatprep.subr.mxu0 0.0
    %826 = vmatpush1.msra.mxu0 0.0
    %827 = vmatprep.subr.mxu0 0.0
    %828 = vmatpush1.msra.mxu0 0.0
    %829 = vmatprep.subr.mxu0 0.0
    %830 = vmatpush1.msra.mxu0 0.0
    %831 = vmatprep.subr.mxu0 0.0
    %832 = vmatpush1.msra.mxu0 0.0
    %833 = vmatprep.subr.mxu0 0.0
    %834 = vmatpush1.msra.mxu0 0.0
    %835 = vmatprep.subr.mxu0 0.0
    %836 = vmatpush1.msra.mxu0 0.0
    %837 = vmatprep.subr.mxu0 0.0
    %838 = vmatpush1.msra.mxu0 0.0
    %839 = vmatprep.subr.mxu0 0.0
    %840 = vmatpush1.msra.mxu0 0.0
    %841 = vmatprep.subr.mxu0 0.0
    %842 = vmatpush1.msra.mxu0 0.0
    %843 = vmatprep.subr.mxu0 0.0
    %844 = vmatpush1.msra.mxu0 0.0
    %845 = vmatprep.subr.mxu0 0.0
    %846 = vmatpush1.msra.mxu0 0.0
    %847 = vmatprep.subr.mxu0 0.0
    %848 = vmatpush1.msra.mxu0 0.0
    %849 = vmatprep.subr.mxu0 0.0
    %850 = vmatpush1.msra.mxu0 0.0
    %851 = vmatprep.subr.mxu0 0.0
    %852 = vmatpush1.msra.mxu0 0.0
    %853 = vmatprep.subr.mxu0 0.0
    %854 = vmatpush1.msra.mxu0 0.0
    %855 = vmatprep.subr.mxu0 0.0
    %856 = vmatpush1.msra.mxu0 0.0
    %857 = vmatprep.subr.mxu0 0.0
    %858 = vmatpush1.msra.mxu0 0.0
    %859 = vmatprep.subr.mxu0 0.0
    %860 = vmatpush1.msra.mxu0 0.0
    %861 = vmatprep.subr.mxu0 0.0
    %862 = vmatpush1.msra.mxu0 0.0
    %863 = vmatprep.subr.mxu0 0.0
    %864 = vmatpush1.msra.mxu0 0.0
    %865 = vmatprep.subr.mxu0 0.0
    %866 = vmatpush1.msra.mxu0 0.0
    %867 = vmatprep.subr.mxu0 0.0
    %868 = vmatpush1.msra.mxu0 0.0
    %869 = vmatprep.subr.mxu0 0.0
    %870 = vmatpush1.msra.mxu0 0.0
    %871 = vmatprep.subr.mxu0 0.0
    %872 = vmatpush1.msra.mxu0 0.0
    %873 = vmatprep.mubr.f32.mxu0 0.0
    %874 = vmatmul.mubr.f32.gmra.mrb[0].mxu0 %v807
    %v875 = vpop.f32.mrb[0].mxu0
    %v876 = vadd.f32 0.0, %v875
    %v877 = vpop.f32.mrb[0].mxu0
    %878 = vdwg.mxu0
    %v879 = vlaneseq
    %v880 = vshrl.u32 %v879, 7
    %v881 = vsub.s32 0, %v880
    %v882 = vrot.slane %v876, %v881
    %v883 = vadd.f32 %v239, %v882
    %v884 = vtanh.pop %v883
    %v886 = vlaneseq
    %v887 = vshrl.u32 %v886, 7
    %v888 = vsub.s32 0, %v887
    %v889 = vrot.slane %v132, %v888
    %v891 = vmul.f32 %v884, %v889
    %v892 = vsel %vm329, %v891, 0.0
    %893 = vadd.xlane.f32.xlu0 %v892
    %v894 = vpop.xlane.xlu0 %893
    %v895 = vrot.slane %v894, 4
    %v896 = vmax.f32 %v894, %v895
    %v897 = vrot.slane %v896, 2
    %v898 = vmax.f32 %v896, %v897
    %v899 = vrot.slane %v898, 1
    %v900 = vmax.f32 %v898, %v899
    %vm901 = vcmp.eq.f32.partialorder %v894, %v900
    %v902 = vsel %vm901, %v328, 8
    %v903 = vrot.slane %v902, 4
    %vm904 = vcmp.lt.s32.totalorder %v902, %v903
    %v905 = vsel %vm904, %v902, %v903
    %v906 = vrot.slane %v905, 2
    %vm907 = vcmp.lt.s32.totalorder %v905, %v906
    %v908 = vsel %vm907, %v905, %v906
    %v909 = vrot.slane %v908, 1
    %vm910 = vcmp.lt.s32.totalorder %v908, %v909
    %v911 = vsel %vm910, %v908, %v909
    %vm912 = vcmask 0
    %913 = vst.msk [vmem:[%s16] sm:$0x1] %vm912, %v911
    %vm914 = vcmp.eq.s32.totalorder %v328, %v911
    %v915 = vsel %vm914, 1, 0
    %vm916 = vcmp.eq.s32.totalorder %v915, 1
    %v917 = vsel %vm916, %v127, 0.0
    %v918 = vsel %vm168, %v917, 0.0
    %v919 = vrot.slane %v918, 4
    %v920 = vadd.f32 %v918, %v919
    %v921 = vrot.slane %v920, 2
    %v922 = vadd.f32 %v920, %v921
    %v923 = vrot.slane %v922, 1
    %v924 = vadd.f32 %v922, %v923
    %925 = vmatprep.subr.mxu0 0.0
    %926 = vmatpush1.msra.mxu0 %v150
    %927 = vmatprep.subr.mxu0 0.0
    %928 = vmatpush1.msra.mxu0 %v151
    %929 = vmatprep.subr.mxu0 0.0
    %930 = vmatpush1.msra.mxu0 %v152
    %931 = vmatprep.subr.mxu0 0.0
    %932 = vmatpush1.msra.mxu0 %v153
    %933 = vmatprep.subr.mxu0 0.0
    %934 = vmatpush1.msra.mxu0 0.0
    %935 = vmatprep.subr.mxu0 0.0
    %936 = vmatpush1.msra.mxu0 0.0
    %937 = vmatprep.subr.mxu0 0.0
    %938 = vmatpush1.msra.mxu0 0.0
    %939 = vmatprep.subr.mxu0 0.0
    %940 = vmatpush1.msra.mxu0 0.0
    %941 = vmatprep.subr.mxu0 0.0
    %942 = vmatpush1.msra.mxu0 0.0
    %943 = vmatprep.subr.mxu0 0.0
    %944 = vmatpush1.msra.mxu0 0.0
    %945 = vmatprep.subr.mxu0 0.0
    %946 = vmatpush1.msra.mxu0 0.0
    %947 = vmatprep.subr.mxu0 0.0
    %948 = vmatpush1.msra.mxu0 0.0
    %949 = vmatprep.subr.mxu0 0.0
    %950 = vmatpush1.msra.mxu0 0.0
    %951 = vmatprep.subr.mxu0 0.0
    %952 = vmatpush1.msra.mxu0 0.0
    %953 = vmatprep.subr.mxu0 0.0
    %954 = vmatpush1.msra.mxu0 0.0
    %955 = vmatprep.subr.mxu0 0.0
    %956 = vmatpush1.msra.mxu0 0.0
    %957 = vmatprep.subr.mxu0 0.0
    %958 = vmatpush1.msra.mxu0 0.0
    %959 = vmatprep.subr.mxu0 0.0
    %960 = vmatpush1.msra.mxu0 0.0
    %961 = vmatprep.subr.mxu0 0.0
    %962 = vmatpush1.msra.mxu0 0.0
    %963 = vmatprep.subr.mxu0 0.0
    %964 = vmatpush1.msra.mxu0 0.0
    %965 = vmatprep.subr.mxu0 0.0
    %966 = vmatpush1.msra.mxu0 0.0
    %967 = vmatprep.subr.mxu0 0.0
    %968 = vmatpush1.msra.mxu0 0.0
    %969 = vmatprep.subr.mxu0 0.0
    %970 = vmatpush1.msra.mxu0 0.0
    %971 = vmatprep.subr.mxu0 0.0
    %972 = vmatpush1.msra.mxu0 0.0
    %973 = vmatprep.subr.mxu0 0.0
    %974 = vmatpush1.msra.mxu0 0.0
    %975 = vmatprep.subr.mxu0 0.0
    %976 = vmatpush1.msra.mxu0 0.0
    %977 = vmatprep.subr.mxu0 0.0
    %978 = vmatpush1.msra.mxu0 0.0
    %979 = vmatprep.subr.mxu0 0.0
    %980 = vmatpush1.msra.mxu0 0.0
    %981 = vmatprep.subr.mxu0 0.0
    %982 = vmatpush1.msra.mxu0 0.0
    %983 = vmatprep.subr.mxu0 0.0
    %984 = vmatpush1.msra.mxu0 0.0
    %985 = vmatprep.subr.mxu0 0.0
    %986 = vmatpush1.msra.mxu0 0.0
    %987 = vmatprep.subr.mxu0 0.0
    %988 = vmatpush1.msra.mxu0 0.0
    %989 = vmatprep.mubr.f32.mxu0 0.0
    %990 = vmatmul.mubr.f32.gmra.mrb[0].mxu0 %v585
    %v991 = vpop.f32.mrb[0].mxu0
    %v992 = vadd.f32 0.0, %v991
    %v993 = vpop.f32.mrb[0].mxu0
    %994 = vdwg.mxu0
    %v996 = vsel %vm168, %v924, 0
    %998 = vmatprep.subr.mxu0 0.0
    %999 = vmatpush1.msra.mxu0 %v138
    %1000 = vmatprep.subr.mxu0 0.0
    %1001 = vmatpush1.msra.mxu0 %v139
    %1002 = vmatprep.subr.mxu0 0.0
    %1003 = vmatpush1.msra.mxu0 %v140
    %1004 = vmatprep.subr.mxu0 0.0
    %1005 = vmatpush1.msra.mxu0 %v141
    %1006 = vmatprep.subr.mxu0 0.0
    %1007 = vmatpush1.msra.mxu0 %v142
    %1008 = vmatprep.subr.mxu0 0.0
    %1009 = vmatpush1.msra.mxu0 %v143
    %1010 = vmatprep.subr.mxu0 0.0
    %1011 = vmatpush1.msra.mxu0 %v144
    %1012 = vmatprep.subr.mxu0 0.0
    %1013 = vmatpush1.msra.mxu0 %v145
    %1014 = vmatprep.subr.mxu0 0.0
    %1015 = vmatpush1.msra.mxu0 0.0
    %1016 = vmatprep.subr.mxu0 0.0
    %1017 = vmatpush1.msra.mxu0 0.0
    %1018 = vmatprep.subr.mxu0 0.0
    %1019 = vmatpush1.msra.mxu0 0.0
    %1020 = vmatprep.subr.mxu0 0.0
    %1021 = vmatpush1.msra.mxu0 0.0
    %1022 = vmatprep.subr.mxu0 0.0
    %1023 = vmatpush1.msra.mxu0 0.0
    %1024 = vmatprep.subr.mxu0 0.0
    %1025 = vmatpush1.msra.mxu0 0.0
    %1026 = vmatprep.subr.mxu0 0.0
    %1027 = vmatpush1.msra.mxu0 0.0
    %1028 = vmatprep.subr.mxu0 0.0
    %1029 = vmatpush1.msra.mxu0 0.0
    %1030 = vmatprep.subr.mxu0 0.0
    %1031 = vmatpush1.msra.mxu0 0.0
    %1032 = vmatprep.subr.mxu0 0.0
    %1033 = vmatpush1.msra.mxu0 0.0
    %1034 = vmatprep.subr.mxu0 0.0
    %1035 = vmatpush1.msra.mxu0 0.0
    %1036 = vmatprep.subr.mxu0 0.0
    %1037 = vmatpush1.msra.mxu0 0.0
    %1038 = vmatprep.subr.mxu0 0.0
    %1039 = vmatpush1.msra.mxu0 0.0
    %1040 = vmatprep.subr.mxu0 0.0
    %1041 = vmatpush1.msra.mxu0 0.0
    %1042 = vmatprep.subr.mxu0 0.0
    %1043 = vmatpush1.msra.mxu0 0.0
    %1044 = vmatprep.subr.mxu0 0.0
    %1045 = vmatpush1.msra.mxu0 0.0
    %1046 = vmatprep.subr.mxu0 0.0
    %1047 = vmatpush1.msra.mxu0 0.0
    %1048 = vmatprep.subr.mxu0 0.0
    %1049 = vmatpush1.msra.mxu0 0.0
    %1050 = vmatprep.subr.mxu0 0.0
    %1051 = vmatpush1.msra.mxu0 0.0
    %1052 = vmatprep.subr.mxu0 0.0
    %1053 = vmatpush1.msra.mxu0 0.0
    %1054 = vmatprep.subr.mxu0 0.0
    %1055 = vmatpush1.msra.mxu0 0.0
    %1056 = vmatprep.subr.mxu0 0.0
    %1057 = vmatpush1.msra.mxu0 0.0
    %1058 = vmatprep.subr.mxu0 0.0
    %1059 = vmatpush1.msra.mxu0 0.0
    %1060 = vmatprep.subr.mxu0 0.0
    %1061 = vmatpush1.msra.mxu0 0.0
    %1062 = vmatprep.mubr.f32.mxu0 0.0
    %1063 = vmatmul.mubr.f32.gmra.mrb[0].mxu0 %v996
    %v1064 = vpop.f32.mrb[0].mxu0
    %v1065 = vadd.f32 %v992, %v1064
    %v1066 = vpop.f32.mrb[0].mxu0
    %1067 = vdwg.mxu0
    %v1068 = vadd.f32 %v1065, %v158
    %v1069 = vxor.u32 %v1068, 2147483648
    %v1070 = vmul.f32 %v1069, 1.442695
    %v1071 = vpow.pop %v1070
    %v1072 = vadd.f32 %v1071, 1.0
    %v1073 = vrcp.pop %v1072
    %v1074 = vmul.f32 1.0, %v1073
    %v1075 = vtanh.pop %v1068
    %v1076 = vmul.f32 %v1074, %v502
    %1078 = vrot.lane.b32.xlu0 %v1075, 64
    %v1079 = vpop.permute.xlu0 %1078
    %v1081 = vmul.f32 %v1074, %v1079
    %1083 = vrot.lane.b32.xlu0 %v1081, 32
    %v1084 = vpop.permute.xlu0 %1083
    %v1086 = vadd.f32 %v1076, %v1084
    %v1087 = vtanh.pop %v1086
    %1089 = vrot.lane.b32.xlu0 %v1087, 64
    %v1090 = vpop.permute.xlu0 %1089
    %v1092 = vmul.f32 %v1074, %v1090
    %1093 = vmatprep.subr.mxu0 0.0
    %1094 = vmatpush1.msra.mxu0 %v154
    %1095 = vmatprep.subr.mxu0 0.0
    %1096 = vmatpush1.msra.mxu0 %v155
    %1097 = vmatprep.subr.mxu0 0.0
    %1098 = vmatpush1.msra.mxu0 %v156
    %1099 = vmatprep.subr.mxu0 0.0
    %1100 = vmatpush1.msra.mxu0 %v157
    %1101 = vmatprep.subr.mxu0 0.0
    %1102 = vmatpush1.msra.mxu0 0.0
    %1103 = vmatprep.subr.mxu0 0.0
    %1104 = vmatpush1.msra.mxu0 0.0
    %1105 = vmatprep.subr.mxu0 0.0
    %1106 = vmatpush1.msra.mxu0 0.0
    %1107 = vmatprep.subr.mxu0 0.0
    %1108 = vmatpush1.msra.mxu0 0.0
    %1109 = vmatprep.subr.mxu0 0.0
    %1110 = vmatpush1.msra.mxu0 0.0
    %1111 = vmatprep.subr.mxu0 0.0
    %1112 = vmatpush1.msra.mxu0 0.0
    %1113 = vmatprep.subr.mxu0 0.0
    %1114 = vmatpush1.msra.mxu0 0.0
    %1115 = vmatprep.subr.mxu0 0.0
    %1116 = vmatpush1.msra.mxu0 0.0
    %1117 = vmatprep.subr.mxu0 0.0
    %1118 = vmatpush1.msra.mxu0 0.0
    %1119 = vmatprep.subr.mxu0 0.0
    %1120 = vmatpush1.msra.mxu0 0.0
    %1121 = vmatprep.subr.mxu0 0.0
    %1122 = vmatpush1.msra.mxu0 0.0
    %1123 = vmatprep.subr.mxu0 0.0
    %1124 = vmatpush1.msra.mxu0 0.0
    %1125 = vmatprep.subr.mxu0 0.0
    %1126 = vmatpush1.msra.mxu0 0.0
    %1127 = vmatprep.subr.mxu0 0.0
    %1128 = vmatpush1.msra.mxu0 0.0
    %1129 = vmatprep.subr.mxu0 0.0
    %1130 = vmatpush1.msra.mxu0 0.0
    %1131 = vmatprep.subr.mxu0 0.0
    %1132 = vmatpush1.msra.mxu0 0.0
    %1133 = vmatprep.subr.mxu0 0.0
    %1134 = vmatpush1.msra.mxu0 0.0
    %1135 = vmatprep.subr.mxu0 0.0
    %1136 = vmatpush1.msra.mxu0 0.0
    %1137 = vmatprep.subr.mxu0 0.0
    %1138 = vmatpush1.msra.mxu0 0.0
    %1139 = vmatprep.subr.mxu0 0.0
    %1140 = vmatpush1.msra.mxu0 0.0
    %1141 = vmatprep.subr.mxu0 0.0
    %1142 = vmatpush1.msra.mxu0 0.0
    %1143 = vmatprep.subr.mxu0 0.0
    %1144 = vmatpush1.msra.mxu0 0.0
    %1145 = vmatprep.subr.mxu0 0.0
    %1146 = vmatpush1.msra.mxu0 0.0
    %1147 = vmatprep.subr.mxu0 0.0
    %1148 = vmatpush1.msra.mxu0 0.0
    %1149 = vmatprep.subr.mxu0 0.0
    %1150 = vmatpush1.msra.mxu0 0.0
    %1151 = vmatprep.subr.mxu0 0.0
    %1152 = vmatpush1.msra.mxu0 0.0
    %1153 = vmatprep.subr.mxu0 0.0
    %1154 = vmatpush1.msra.mxu0 0.0
    %1155 = vmatprep.subr.mxu0 0.0
    %1156 = vmatpush1.msra.mxu0 0.0
    %1157 = vmatprep.mubr.f32.mxu0 0.0
    %1158 = vmatmul.mubr.f32.gmra.mrb[0].mxu0 %v693
    %v1159 = vpop.f32.mrb[0].mxu0
    %v1160 = vadd.f32 0.0, %v1159
    %v1161 = vpop.f32.mrb[0].mxu0
    %1162 = vdwg.mxu0
    %1164 = vrot.lane.b32.xlu0 %v1092, 32
    %v1165 = vpop.permute.xlu0 %1164
    %v1166 = vsel %vm329, %v1165, 0
    %1168 = vmatprep.subr.mxu0 0.0
    %1169 = vmatpush1.msra.mxu0 %v146
    %1170 = vmatprep.subr.mxu0 0.0
    %1171 = vmatpush1.msra.mxu0 %v147
    %1172 = vmatprep.subr.mxu0 0.0
    %1173 = vmatpush1.msra.mxu0 %v148
    %1174 = vmatprep.subr.mxu0 0.0
    %1175 = vmatpush1.msra.mxu0 %v149
    %1176 = vmatprep.subr.mxu0 0.0
    %1177 = vmatpush1.msra.mxu0 0.0
    %1178 = vmatprep.subr.mxu0 0.0
    %1179 = vmatpush1.msra.mxu0 0.0
    %1180 = vmatprep.subr.mxu0 0.0
    %1181 = vmatpush1.msra.mxu0 0.0
    %1182 = vmatprep.subr.mxu0 0.0
    %1183 = vmatpush1.msra.mxu0 0.0
    %1184 = vmatprep.subr.mxu0 0.0
    %1185 = vmatpush1.msra.mxu0 0.0
    %1186 = vmatprep.subr.mxu0 0.0
    %1187 = vmatpush1.msra.mxu0 0.0
    %1188 = vmatprep.subr.mxu0 0.0
    %1189 = vmatpush1.msra.mxu0 0.0
    %1190 = vmatprep.subr.mxu0 0.0
    %1191 = vmatpush1.msra.mxu0 0.0
    %1192 = vmatprep.subr.mxu0 0.0
    %1193 = vmatpush1.msra.mxu0 0.0
    %1194 = vmatprep.subr.mxu0 0.0
    %1195 = vmatpush1.msra.mxu0 0.0
    %1196 = vmatprep.subr.mxu0 0.0
    %1197 = vmatpush1.msra.mxu0 0.0
    %1198 = vmatprep.subr.mxu0 0.0
    %1199 = vmatpush1.msra.mxu0 0.0
    %1200 = vmatprep.subr.mxu0 0.0
    %1201 = vmatpush1.msra.mxu0 0.0
    %1202 = vmatprep.subr.mxu0 0.0
    %1203 = vmatpush1.msra.mxu0 0.0
    %1204 = vmatprep.subr.mxu0 0.0
    %1205 = vmatpush1.msra.mxu0 0.0
    %1206 = vmatprep.subr.mxu0 0.0
    %1207 = vmatpush1.msra.mxu0 0.0
    %1208 = vmatprep.subr.mxu0 0.0
    %1209 = vmatpush1.msra.mxu0 0.0
    %1210 = vmatprep.subr.mxu0 0.0
    %1211 = vmatpush1.msra.mxu0 0.0
    %1212 = vmatprep.subr.mxu0 0.0
    %1213 = vmatpush1.msra.mxu0 0.0
    %1214 = vmatprep.subr.mxu0 0.0
    %1215 = vmatpush1.msra.mxu0 0.0
    %1216 = vmatprep.subr.mxu0 0.0
    %1217 = vmatpush1.msra.mxu0 0.0
    %1218 = vmatprep.subr.mxu0 0.0
    %1219 = vmatpush1.msra.mxu0 0.0
    %1220 = vmatprep.subr.mxu0 0.0
    %1221 = vmatpush1.msra.mxu0 0.0
    %1222 = vmatprep.subr.mxu0 0.0
    %1223 = vmatpush1.msra.mxu0 0.0
    %1224 = vmatprep.subr.mxu0 0.0
    %1225 = vmatpush1.msra.mxu0 0.0
    %1226 = vmatprep.subr.mxu0 0.0
    %1227 = vmatpush1.msra.mxu0 0.0
    %1228 = vmatprep.subr.mxu0 0.0
    %1229 = vmatpush1.msra.mxu0 0.0
    %1230 = vmatprep.subr.mxu0 0.0
    %1231 = vmatpush1.msra.mxu0 0.0
    %1232 = vmatprep.mubr.f32.mxu0 0.0
    %1233 = vmatmul.mubr.f32.gmra.mrb[0].mxu0 %v1166
    %v1234 = vpop.f32.mrb[0].mxu0
    %v1235 = vadd.f32 %v1160, %v1234
    %v1236 = vpop.f32.mrb[0].mxu0
    %1237 = vdwg.mxu0
    %v1238 = vadd.f32 %v1235, %v159
    %v1239 = vxor.u32 %v1238, 2147483648
    %v1240 = vmul.f32 %v1239, 1.442695
    %v1241 = vpow.pop %v1240
    %v1242 = vadd.f32 %v1241, 1.0
    %v1243 = vrcp.pop %v1242
    %v1244 = vmul.f32 1.0, %v1243
    %v1245 = vtanh.pop %v1238
    %v1246 = vmul.f32 %v1244, %v683
    %1248 = vrot.lane.b32.xlu0 %v1245, 64
    %v1249 = vpop.permute.xlu0 %1248
    %v1251 = vmul.f32 %v1244, %v1249
    %1253 = vrot.lane.b32.xlu0 %v1251, 32
    %v1254 = vpop.permute.xlu0 %1253
    %v1256 = vadd.f32 %v1246, %v1254
    %v1257 = vtanh.pop %v1256
    %1259 = vrot.lane.b32.xlu0 %v1257, 64
    %v1260 = vpop.permute.xlu0 %1259
    %v1262 = vmul.f32 %v1244, %v1260
    %1264 = vrot.lane.b32.xlu0 %v1262, 32
    %v1265 = vpop.permute.xlu0 %1264
    %v1266 = vsel %vm329, %v1265, 0
    %1268 = vmatprep.subr.mxu0 0.0
    %1269 = vmatpush1.msra.mxu0 %v133
    %1270 = vmatprep.subr.mxu0 0.0
    %1271 = vmatpush1.msra.mxu0 %v134
    %1272 = vmatprep.subr.mxu0 0.0
    %1273 = vmatpush1.msra.mxu0 %v135
    %1274 = vmatprep.subr.mxu0 0.0
    %1275 = vmatpush1.msra.mxu0 %v136
    %1276 = vmatprep.subr.mxu0 0.0
    %1277 = vmatpush1.msra.mxu0 0.0
    %1278 = vmatprep.subr.mxu0 0.0
    %1279 = vmatpush1.msra.mxu0 0.0
    %1280 = vmatprep.subr.mxu0 0.0
    %1281 = vmatpush1.msra.mxu0 0.0
    %1282 = vmatprep.subr.mxu0 0.0
    %1283 = vmatpush1.msra.mxu0 0.0
    %1284 = vmatprep.subr.mxu0 0.0
    %1285 = vmatpush1.msra.mxu0 0.0
    %1286 = vmatprep.subr.mxu0 0.0
    %1287 = vmatpush1.msra.mxu0 0.0
    %1288 = vmatprep.subr.mxu0 0.0
    %1289 = vmatpush1.msra.mxu0 0.0
    %1290 = vmatprep.subr.mxu0 0.0
    %1291 = vmatpush1.msra.mxu0 0.0
    %1292 = vmatprep.subr.mxu0 0.0
    %1293 = vmatpush1.msra.mxu0 0.0
    %1294 = vmatprep.subr.mxu0 0.0
    %1295 = vmatpush1.msra.mxu0 0.0
    %1296 = vmatprep.subr.mxu0 0.0
    %1297 = vmatpush1.msra.mxu0 0.0
    %1298 = vmatprep.subr.mxu0 0.0
    %1299 = vmatpush1.msra.mxu0 0.0
    %1300 = vmatprep.subr.mxu0 0.0
    %1301 = vmatpush1.msra.mxu0 0.0
    %1302 = vmatprep.subr.mxu0 0.0
    %1303 = vmatpush1.msra.mxu0 0.0
    %1304 = vmatprep.subr.mxu0 0.0
    %1305 = vmatpush1.msra.mxu0 0.0
    %1306 = vmatprep.subr.mxu0 0.0
    %1307 = vmatpush1.msra.mxu0 0.0
    %1308 = vmatprep.subr.mxu0 0.0
    %1309 = vmatpush1.msra.mxu0 0.0
    %1310 = vmatprep.subr.mxu0 0.0
    %1311 = vmatpush1.msra.mxu0 0.0
    %1312 = vmatprep.subr.mxu0 0.0
    %1313 = vmatpush1.msra.mxu0 0.0
    %1314 = vmatprep.subr.mxu0 0.0
    %1315 = vmatpush1.msra.mxu0 0.0
    %1316 = vmatprep.subr.mxu0 0.0
    %1317 = vmatpush1.msra.mxu0 0.0
    %1318 = vmatprep.subr.mxu0 0.0
    %1319 = vmatpush1.msra.mxu0 0.0
    %1320 = vmatprep.subr.mxu0 0.0
    %1321 = vmatpush1.msra.mxu0 0.0
    %1322 = vmatprep.subr.mxu0 0.0
    %1323 = vmatpush1.msra.mxu0 0.0
    %1324 = vmatprep.subr.mxu0 0.0
    %1325 = vmatpush1.msra.mxu0 0.0
    %1326 = vmatprep.subr.mxu0 0.0
    %1327 = vmatpush1.msra.mxu0 0.0
    %1328 = vmatprep.subr.mxu0 0.0
    %1329 = vmatpush1.msra.mxu0 0.0
    %1330 = vmatprep.subr.mxu0 0.0
    %1331 = vmatpush1.msra.mxu0 0.0
    %1332 = vmatprep.mubr.f32.mxu0 0.0
    %1333 = vmatmul.mubr.f32.gmra.mrb[0].mxu0 %v1266
    %v1334 = vpop.f32.mrb[0].mxu0
    %v1335 = vadd.f32 0.0, %v1334
    %v1336 = vpop.f32.mrb[0].mxu0
    %1337 = vdwg.mxu0
    %v1338 = vlaneseq
    %v1339 = vshrl.u32 %v1338, 7
    %v1340 = vsub.s32 0, %v1339
    %v1341 = vrot.slane %v1335, %v1340
    %v1342 = vadd.f32 %v317, %v1341
    %v1343 = vtanh.pop %v1342
    %v1344 = vmul.f32 %v1343, %v775
    %v1345 = vsel %vm329, %v1344, 0.0
    %1346 = vadd.xlane.f32.xlu0 %v1345
    %v1347 = vpop.xlane.xlu0 %1346
    %v1348 = vrot.slane %v1347, 4
    %v1349 = vmax.f32 %v1347, %v1348
    %v1350 = vrot.slane %v1349, 2
    %v1351 = vmax.f32 %v1349, %v1350
    %v1352 = vrot.slane %v1351, 1
    %v1353 = vmax.f32 %v1351, %v1352
    %v1354 = vsub.f32 %v1347, %v1353
    %v1355 = vmul.f32 %v1354, 1.442695
    %v1356 = vpow.pop %v1355
    %v1357 = vrot.slane %v1356, 4
    %v1358 = vadd.f32 %v1356, %v1357
    %v1359 = vrot.slane %v1358, 2
    %v1360 = vadd.f32 %v1358, %v1359
    %v1361 = vrot.slane %v1360, 1
    %v1362 = vadd.f32 %v1360, %v1361
    %v1363 = vrcp.pop %v1362
    %v1364 = vmul.f32 %v1356, %v1363
    %v1365 = vmul.f32 %v1364, %v317
    %v1366 = vsel %vm329, %v1365, 0.0
    %v1367 = vrot.slane %v1366, 4
    %v1368 = vadd.f32 %v1366, %v1367
    %v1369 = vrot.slane %v1368, 2
    %v1370 = vadd.f32 %v1368, %v1369
    %v1371 = vrot.slane %v1370, 1
    %v1372 = vadd.f32 %v1370, %v1371
    %v1374 = vsel %vm329, %v1372, 0
    %1376 = vmatprep.subr.mxu0 0.0
    %1377 = vmatpush1.msra.mxu0 %v128
    %1378 = vmatprep.subr.mxu0 0.0
    %1379 = vmatpush1.msra.mxu0 %v129
    %1380 = vmatprep.subr.mxu0 0.0
    %1381 = vmatpush1.msra.mxu0 %v130
    %1382 = vmatprep.subr.mxu0 0.0
    %1383 = vmatpush1.msra.mxu0 %v131
    %1384 = vmatprep.subr.mxu0 0.0
    %1385 = vmatpush1.msra.mxu0 0.0
    %1386 = vmatprep.subr.mxu0 0.0
    %1387 = vmatpush1.msra.mxu0 0.0
    %1388 = vmatprep.subr.mxu0 0.0
    %1389 = vmatpush1.msra.mxu0 0.0
    %1390 = vmatprep.subr.mxu0 0.0
    %1391 = vmatpush1.msra.mxu0 0.0
    %1392 = vmatprep.subr.mxu0 0.0
    %1393 = vmatpush1.msra.mxu0 0.0
    %1394 = vmatprep.subr.mxu0 0.0
    %1395 = vmatpush1.msra.mxu0 0.0
    %1396 = vmatprep.subr.mxu0 0.0
    %1397 = vmatpush1.msra.mxu0 0.0
    %1398 = vmatprep.subr.mxu0 0.0
    %1399 = vmatpush1.msra.mxu0 0.0
    %1400 = vmatprep.subr.mxu0 0.0
    %1401 = vmatpush1.msra.mxu0 0.0
    %1402 = vmatprep.subr.mxu0 0.0
    %1403 = vmatpush1.msra.mxu0 0.0
    %1404 = vmatprep.subr.mxu0 0.0
    %1405 = vmatpush1.msra.mxu0 0.0
    %1406 = vmatprep.subr.mxu0 0.0
    %1407 = vmatpush1.msra.mxu0 0.0
    %1408 = vmatprep.subr.mxu0 0.0
    %1409 = vmatpush1.msra.mxu0 0.0
    %1410 = vmatprep.subr.mxu0 0.0
    %1411 = vmatpush1.msra.mxu0 0.0
    %1412 = vmatprep.subr.mxu0 0.0
    %1413 = vmatpush1.msra.mxu0 0.0
    %1414 = vmatprep.subr.mxu0 0.0
    %1415 = vmatpush1.msra.mxu0 0.0
    %1416 = vmatprep.subr.mxu0 0.0
    %1417 = vmatpush1.msra.mxu0 0.0
    %1418 = vmatprep.subr.mxu0 0.0
    %1419 = vmatpush1.msra.mxu0 0.0
    %1420 = vmatprep.subr.mxu0 0.0
    %1421 = vmatpush1.msra.mxu0 0.0
    %1422 = vmatprep.subr.mxu0 0.0
    %1423 = vmatpush1.msra.mxu0 0.0
    %1424 = vmatprep.subr.mxu0 0.0
    %1425 = vmatpush1.msra.mxu0 0.0
    %1426 = vmatprep.subr.mxu0 0.0
    %1427 = vmatpush1.msra.mxu0 0.0
    %1428 = vmatprep.subr.mxu0 0.0
    %1429 = vmatpush1.msra.mxu0 0.0
    %1430 = vmatprep.subr.mxu0 0.0
    %1431 = vmatpush1.msra.mxu0 0.0
    %1432 = vmatprep.subr.mxu0 0.0
    %1433 = vmatpush1.msra.mxu0 0.0
    %1434 = vmatprep.subr.mxu0 0.0
    %1435 = vmatpush1.msra.mxu0 0.0
    %1436 = vmatprep.subr.mxu0 0.0
    %1437 = vmatpush1.msra.mxu0 0.0
    %1438 = vmatprep.subr.mxu0 0.0
    %1439 = vmatpush1.msra.mxu0 0.0
    %1440 = vmatprep.mubr.f32.mxu0 0.0
    %1441 = vmatmul.mubr.f32.gmra.mrb[0].mxu0 %v1374
    %v1442 = vpop.f32.mrb[0].mxu0
    %v1443 = vadd.f32 0.0, %v1442
    %v1444 = vpop.f32.mrb[0].mxu0
    %1445 = vdwg.mxu0
    %v1446 = vlaneseq
    %v1447 = vshrl.u32 %v1446, 7
    %v1448 = vsub.s32 0, %v1447
    %v1449 = vrot.slane %v1443, %v1448
    %v1450 = vadd.f32 %v239, %v1449
    %v1451 = vtanh.pop %v1450
    %v1452 = vmul.f32 %v1451, %v889
    %v1453 = vsel %vm329, %v1452, 0.0
    %1454 = vadd.xlane.f32.xlu0 %v1453
    %v1455 = vpop.xlane.xlu0 %1454
    %v1456 = vsel %vm914, -1e+18, %v1455
    %v1457 = vrot.slane %v1456, 4
    %v1458 = vmax.f32 %v1456, %v1457
    %v1459 = vrot.slane %v1458, 2
    %v1460 = vmax.f32 %v1458, %v1459
    %v1461 = vrot.slane %v1460, 1
    %v1462 = vmax.f32 %v1460, %v1461
    %vm1463 = vcmp.eq.f32.partialorder %v1456, %v1462
    %v1464 = vsel %vm1463, %v328, 8
    %v1465 = vrot.slane %v1464, 4
    %vm1466 = vcmp.lt.s32.totalorder %v1464, %v1465
    %v1467 = vsel %vm1466, %v1464, %v1465
    %v1468 = vrot.slane %v1467, 2
    %vm1469 = vcmp.lt.s32.totalorder %v1467, %v1468
    %v1470 = vsel %vm1469, %v1467, %v1468
    %v1471 = vrot.slane %v1470, 1
    %vm1472 = vcmp.lt.s32.totalorder %v1470, %v1471
    %v1473 = vsel %vm1472, %v1470, %v1471
    %1474 = vst.msk [vmem:[%s16 + $0x1] sm:$0x1] %vm912, %v1473
    %vm1475 = vcmp.eq.s32.totalorder %v328, %v1473
    %vm1476 = vmor %vm914, %vm1475
    %v1477 = vsel %vm1475, 1, 0
    %vm1478 = vcmp.eq.s32.totalorder %v1477, 1
    %v1479 = vsel %vm1478, %v127, 0.0
    %v1480 = vsel %vm168, %v1479, 0.0
    %v1481 = vrot.slane %v1480, 4
    %v1482 = vadd.f32 %v1480, %v1481
    %v1483 = vrot.slane %v1482, 2
    %v1484 = vadd.f32 %v1482, %v1483
    %v1485 = vrot.slane %v1484, 1
    %v1486 = vadd.f32 %v1484, %v1485
    %1487 = vmatprep.subr.mxu0 0.0
    %1488 = vmatpush1.msra.mxu0 %v150
    %1489 = vmatprep.subr.mxu0 0.0
    %1490 = vmatpush1.msra.mxu0 %v151
    %1491 = vmatprep.subr.mxu0 0.0
    %1492 = vmatpush1.msra.mxu0 %v152
    %1493 = vmatprep.subr.mxu0 0.0
    %1494 = vmatpush1.msra.mxu0 %v153
    %1495 = vmatprep.subr.mxu0 0.0
    %1496 = vmatpush1.msra.mxu0 0.0
    %1497 = vmatprep.subr.mxu0 0.0
    %1498 = vmatpush1.msra.mxu0 0.0
    %1499 = vmatprep.subr.mxu0 0.0
    %1500 = vmatpush1.msra.mxu0 0.0
    %1501 = vmatprep.subr.mxu0 0.0
    %1502 = vmatpush1.msra.mxu0 0.0
    %1503 = vmatprep.subr.mxu0 0.0
    %1504 = vmatpush1.msra.mxu0 0.0
    %1505 = vmatprep.subr.mxu0 0.0
    %1506 = vmatpush1.msra.mxu0 0.0
    %1507 = vmatprep.subr.mxu0 0.0
    %1508 = vmatpush1.msra.mxu0 0.0
    %1509 = vmatprep.subr.mxu0 0.0
    %1510 = vmatpush1.msra.mxu0 0.0
    %1511 = vmatprep.subr.mxu0 0.0
    %1512 = vmatpush1.msra.mxu0 0.0
    %1513 = vmatprep.subr.mxu0 0.0
    %1514 = vmatpush1.msra.mxu0 0.0
    %1515 = vmatprep.subr.mxu0 0.0
    %1516 = vmatpush1.msra.mxu0 0.0
    %1517 = vmatprep.subr.mxu0 0.0
    %1518 = vmatpush1.msra.mxu0 0.0
    %1519 = vmatprep.subr.mxu0 0.0
    %1520 = vmatpush1.msra.mxu0 0.0
    %1521 = vmatprep.subr.mxu0 0.0
    %1522 = vmatpush1.msra.mxu0 0.0
    %1523 = vmatprep.subr.mxu0 0.0
    %1524 = vmatpush1.msra.mxu0 0.0
    %1525 = vmatprep.subr.mxu0 0.0
    %1526 = vmatpush1.msra.mxu0 0.0
    %1527 = vmatprep.subr.mxu0 0.0
    %1528 = vmatpush1.msra.mxu0 0.0
    %1529 = vmatprep.subr.mxu0 0.0
    %1530 = vmatpush1.msra.mxu0 0.0
    %1531 = vmatprep.subr.mxu0 0.0
    %1532 = vmatpush1.msra.mxu0 0.0
    %1533 = vmatprep.subr.mxu0 0.0
    %1534 = vmatpush1.msra.mxu0 0.0
    %1535 = vmatprep.subr.mxu0 0.0
    %1536 = vmatpush1.msra.mxu0 0.0
    %1537 = vmatprep.subr.mxu0 0.0
    %1538 = vmatpush1.msra.mxu0 0.0
    %1539 = vmatprep.subr.mxu0 0.0
    %1540 = vmatpush1.msra.mxu0 0.0
    %1541 = vmatprep.subr.mxu0 0.0
    %1542 = vmatpush1.msra.mxu0 0.0
    %1543 = vmatprep.subr.mxu0 0.0
    %1544 = vmatpush1.msra.mxu0 0.0
    %1545 = vmatprep.subr.mxu0 0.0
    %1546 = vmatpush1.msra.mxu0 0.0
    %1547 = vmatprep.subr.mxu0 0.0
    %1548 = vmatpush1.msra.mxu0 0.0
    %1549 = vmatprep.subr.mxu0 0.0
    %1550 = vmatpush1.msra.mxu0 0.0
    %1551 = vmatprep.mubr.f32.mxu0 0.0
    %1552 = vmatmul.mubr.f32.gmra.mrb[0].mxu0 %v1166
    %v1553 = vpop.f32.mrb[0].mxu0
    %v1554 = vadd.f32 0.0, %v1553
    %v1555 = vpop.f32.mrb[0].mxu0
    %1556 = vdwg.mxu0
    %v1558 = vsel %vm168, %v1486, 0
    %1560 = vmatprep.subr.mxu0 0.0
    %1561 = vmatpush1.msra.mxu0 %v138
    %1562 = vmatprep.subr.mxu0 0.0
    %1563 = vmatpush1.msra.mxu0 %v139
    %1564 = vmatprep.subr.mxu0 0.0
    %1565 = vmatpush1.msra.mxu0 %v140
    %1566 = vmatprep.subr.mxu0 0.0
    %1567 = vmatpush1.msra.mxu0 %v141
    %1568 = vmatprep.subr.mxu0 0.0
    %1569 = vmatpush1.msra.mxu0 %v142
    %1570 = vmatprep.subr.mxu0 0.0
    %1571 = vmatpush1.msra.mxu0 %v143
    %1572 = vmatprep.subr.mxu0 0.0
    %1573 = vmatpush1.msra.mxu0 %v144
    %1574 = vmatprep.subr.mxu0 0.0
    %1575 = vmatpush1.msra.mxu0 %v145
    %1576 = vmatprep.subr.mxu0 0.0
    %1577 = vmatpush1.msra.mxu0 0.0
    %1578 = vmatprep.subr.mxu0 0.0
    %1579 = vmatpush1.msra.mxu0 0.0
    %1580 = vmatprep.subr.mxu0 0.0
    %1581 = vmatpush1.msra.mxu0 0.0
    %1582 = vmatprep.subr.mxu0 0.0
    %1583 = vmatpush1.msra.mxu0 0.0
    %1584 = vmatprep.subr.mxu0 0.0
    %1585 = vmatpush1.msra.mxu0 0.0
    %1586 = vmatprep.subr.mxu0 0.0
    %1587 = vmatpush1.msra.mxu0 0.0
    %1588 = vmatprep.subr.mxu0 0.0
    %1589 = vmatpush1.msra.mxu0 0.0
    %1590 = vmatprep.subr.mxu0 0.0
    %1591 = vmatpush1.msra.mxu0 0.0
    %1592 = vmatprep.subr.mxu0 0.0
    %1593 = vmatpush1.msra.mxu0 0.0
    %1594 = vmatprep.subr.mxu0 0.0
    %1595 = vmatpush1.msra.mxu0 0.0
    %1596 = vmatprep.subr.mxu0 0.0
    %1597 = vmatpush1.msra.mxu0 0.0
    %1598 = vmatprep.subr.mxu0 0.0
    %1599 = vmatpush1.msra.mxu0 0.0
    %1600 = vmatprep.subr.mxu0 0.0
    %1601 = vmatpush1.msra.mxu0 0.0
    %1602 = vmatprep.subr.mxu0 0.0
    %1603 = vmatpush1.msra.mxu0 0.0
    %1604 = vmatprep.subr.mxu0 0.0
    %1605 = vmatpush1.msra.mxu0 0.0
    %1606 = vmatprep.subr.mxu0 0.0
    %1607 = vmatpush1.msra.mxu0 0.0
    %1608 = vmatprep.subr.mxu0 0.0
    %1609 = vmatpush1.msra.mxu0 0.0
    %1610 = vmatprep.subr.mxu0 0.0
    %1611 = vmatpush1.msra.mxu0 0.0
    %1612 = vmatprep.subr.mxu0 0.0
    %1613 = vmatpush1.msra.mxu0 0.0
    %1614 = vmatprep.subr.mxu0 0.0
    %1615 = vmatpush1.msra.mxu0 0.0
    %1616 = vmatprep.subr.mxu0 0.0
    %1617 = vmatpush1.msra.mxu0 0.0
    %1618 = vmatprep.subr.mxu0 0.0
    %1619 = vmatpush1.msra.mxu0 0.0
    %1620 = vmatprep.subr.mxu0 0.0
    %1621 = vmatpush1.msra.mxu0 0.0
    %1622 = vmatprep.subr.mxu0 0.0
    %1623 = vmatpush1.msra.mxu0 0.0
    %1624 = vmatprep.mubr.f32.mxu0 0.0
    %1625 = vmatmul.mubr.f32.gmra.mrb[0].mxu0 %v1558
    %v1626 = vpop.f32.mrb[0].mxu0
    %v1627 = vadd.f32 %v1554, %v1626
    %v1628 = vpop.f32.mrb[0].mxu0
    %1629 = vdwg.mxu0
    %v1630 = vadd.f32 %v1627, %v158
    %v1631 = vxor.u32 %v1630, 2147483648
    %v1632 = vmul.f32 %v1631, 1.442695
    %v1633 = vpow.pop %v1632
    %v1634 = vadd.f32 %v1633, 1.0
    %v1635 = vrcp.pop %v1634
    %v1636 = vmul.f32 1.0, %v1635
    %v1637 = vtanh.pop %v1630
    %v1638 = vmul.f32 %v1636, %v1086
    %1640 = vrot.lane.b32.xlu0 %v1637, 64
    %v1641 = vpop.permute.xlu0 %1640
    %v1643 = vmul.f32 %v1636, %v1641
    %1645 = vrot.lane.b32.xlu0 %v1643, 32
    %v1646 = vpop.permute.xlu0 %1645
    %v1648 = vadd.f32 %v1638, %v1646
    %v1649 = vtanh.pop %v1648
    %1651 = vrot.lane.b32.xlu0 %v1649, 64
    %v1652 = vpop.permute.xlu0 %1651
    %v1654 = vmul.f32 %v1636, %v1652
    %1655 = vmatprep.subr.mxu0 0.0
    %1656 = vmatpush1.msra.mxu0 %v154
    %1657 = vmatprep.subr.mxu0 0.0
    %1658 = vmatpush1.msra.mxu0 %v155
    %1659 = vmatprep.subr.mxu0 0.0
    %1660 = vmatpush1.msra.mxu0 %v156
    %1661 = vmatprep.subr.mxu0 0.0
    %1662 = vmatpush1.msra.mxu0 %v157
    %1663 = vmatprep.subr.mxu0 0.0
    %1664 = vmatpush1.msra.mxu0 0.0
    %1665 = vmatprep.subr.mxu0 0.0
    %1666 = vmatpush1.msra.mxu0 0.0
    %1667 = vmatprep.subr.mxu0 0.0
    %1668 = vmatpush1.msra.mxu0 0.0
    %1669 = vmatprep.subr.mxu0 0.0
    %1670 = vmatpush1.msra.mxu0 0.0
    %1671 = vmatprep.subr.mxu0 0.0
    %1672 = vmatpush1.msra.mxu0 0.0
    %1673 = vmatprep.subr.mxu0 0.0
    %1674 = vmatpush1.msra.mxu0 0.0
    %1675 = vmatprep.subr.mxu0 0.0
    %1676 = vmatpush1.msra.mxu0 0.0
    %1677 = vmatprep.subr.mxu0 0.0
    %1678 = vmatpush1.msra.mxu0 0.0
    %1679 = vmatprep.subr.mxu0 0.0
    %1680 = vmatpush1.msra.mxu0 0.0
    %1681 = vmatprep.subr.mxu0 0.0
    %1682 = vmatpush1.msra.mxu0 0.0
    %1683 = vmatprep.subr.mxu0 0.0
    %1684 = vmatpush1.msra.mxu0 0.0
    %1685 = vmatprep.subr.mxu0 0.0
    %1686 = vmatpush1.msra.mxu0 0.0
    %1687 = vmatprep.subr.mxu0 0.0
    %1688 = vmatpush1.msra.mxu0 0.0
    %1689 = vmatprep.subr.mxu0 0.0
    %1690 = vmatpush1.msra.mxu0 0.0
    %1691 = vmatprep.subr.mxu0 0.0
    %1692 = vmatpush1.msra.mxu0 0.0
    %1693 = vmatprep.subr.mxu0 0.0
    %1694 = vmatpush1.msra.mxu0 0.0
    %1695 = vmatprep.subr.mxu0 0.0
    %1696 = vmatpush1.msra.mxu0 0.0
    %1697 = vmatprep.subr.mxu0 0.0
    %1698 = vmatpush1.msra.mxu0 0.0
    %1699 = vmatprep.subr.mxu0 0.0
    %1700 = vmatpush1.msra.mxu0 0.0
    %1701 = vmatprep.subr.mxu0 0.0
    %1702 = vmatpush1.msra.mxu0 0.0
    %1703 = vmatprep.subr.mxu0 0.0
    %1704 = vmatpush1.msra.mxu0 0.0
    %1705 = vmatprep.subr.mxu0 0.0
    %1706 = vmatpush1.msra.mxu0 0.0
    %1707 = vmatprep.subr.mxu0 0.0
    %1708 = vmatpush1.msra.mxu0 0.0
    %1709 = vmatprep.subr.mxu0 0.0
    %1710 = vmatpush1.msra.mxu0 0.0
    %1711 = vmatprep.subr.mxu0 0.0
    %1712 = vmatpush1.msra.mxu0 0.0
    %1713 = vmatprep.subr.mxu0 0.0
    %1714 = vmatpush1.msra.mxu0 0.0
    %1715 = vmatprep.subr.mxu0 0.0
    %1716 = vmatpush1.msra.mxu0 0.0
    %1717 = vmatprep.subr.mxu0 0.0
    %1718 = vmatpush1.msra.mxu0 0.0
    %1719 = vmatprep.mubr.f32.mxu0 0.0
    %1720 = vmatmul.mubr.f32.gmra.mrb[0].mxu0 %v1266
    %v1721 = vpop.f32.mrb[0].mxu0
    %v1722 = vadd.f32 0.0, %v1721
    %v1723 = vpop.f32.mrb[0].mxu0
    %1724 = vdwg.mxu0
    %1726 = vrot.lane.b32.xlu0 %v1654, 32
    %v1727 = vpop.permute.xlu0 %1726
    %v1728 = vsel %vm329, %v1727, 0
    %1730 = vmatprep.subr.mxu0 0.0
    %1731 = vmatpush1.msra.mxu0 %v146
    %1732 = vmatprep.subr.mxu0 0.0
    %1733 = vmatpush1.msra.mxu0 %v147
    %1734 = vmatprep.subr.mxu0 0.0
    %1735 = vmatpush1.msra.mxu0 %v148
    %1736 = vmatprep.subr.mxu0 0.0
    %1737 = vmatpush1.msra.mxu0 %v149
    %1738 = vmatprep.subr.mxu0 0.0
    %1739 = vmatpush1.msra.mxu0 0.0
    %1740 = vmatprep.subr.mxu0 0.0
    %1741 = vmatpush1.msra.mxu0 0.0
    %1742 = vmatprep.subr.mxu0 0.0
    %1743 = vmatpush1.msra.mxu0 0.0
    %1744 = vmatprep.subr.mxu0 0.0
    %1745 = vmatpush1.msra.mxu0 0.0
    %1746 = vmatprep.subr.mxu0 0.0
    %1747 = vmatpush1.msra.mxu0 0.0
    %1748 = vmatprep.subr.mxu0 0.0
    %1749 = vmatpush1.msra.mxu0 0.0
    %1750 = vmatprep.subr.mxu0 0.0
    %1751 = vmatpush1.msra.mxu0 0.0
    %1752 = vmatprep.subr.mxu0 0.0
    %1753 = vmatpush1.msra.mxu0 0.0
    %1754 = vmatprep.subr.mxu0 0.0
    %1755 = vmatpush1.msra.mxu0 0.0
    %1756 = vmatprep.subr.mxu0 0.0
    %1757 = vmatpush1.msra.mxu0 0.0
    %1758 = vmatprep.subr.mxu0 0.0
    %1759 = vmatpush1.msra.mxu0 0.0
    %1760 = vmatprep.subr.mxu0 0.0
    %1761 = vmatpush1.msra.mxu0 0.0
    %1762 = vmatprep.subr.mxu0 0.0
    %1763 = vmatpush1.msra.mxu0 0.0
    %1764 = vmatprep.subr.mxu0 0.0
    %1765 = vmatpush1.msra.mxu0 0.0
    %1766 = vmatprep.subr.mxu0 0.0
    %1767 = vmatpush1.msra.mxu0 0.0
    %1768 = vmatprep.subr.mxu0 0.0
    %1769 = vmatpush1.msra.mxu0 0.0
    %1770 = vmatprep.subr.mxu0 0.0
    %1771 = vmatpush1.msra.mxu0 0.0
    %1772 = vmatprep.subr.mxu0 0.0
    %1773 = vmatpush1.msra.mxu0 0.0
    %1774 = vmatprep.subr.mxu0 0.0
    %1775 = vmatpush1.msra.mxu0 0.0
    %1776 = vmatprep.subr.mxu0 0.0
    %1777 = vmatpush1.msra.mxu0 0.0
    %1778 = vmatprep.subr.mxu0 0.0
    %1779 = vmatpush1.msra.mxu0 0.0
    %1780 = vmatprep.subr.mxu0 0.0
    %1781 = vmatpush1.msra.mxu0 0.0
    %1782 = vmatprep.subr.mxu0 0.0
    %1783 = vmatpush1.msra.mxu0 0.0
    %1784 = vmatprep.subr.mxu0 0.0
    %1785 = vmatpush1.msra.mxu0 0.0
    %1786 = vmatprep.subr.mxu0 0.0
    %1787 = vmatpush1.msra.mxu0 0.0
    %1788 = vmatprep.subr.mxu0 0.0
    %1789 = vmatpush1.msra.mxu0 0.0
    %1790 = vmatprep.subr.mxu0 0.0
    %1791 = vmatpush1.msra.mxu0 0.0
    %1792 = vmatprep.subr.mxu0 0.0
    %1793 = vmatpush1.msra.mxu0 0.0
    %1794 = vmatprep.mubr.f32.mxu0 0.0
    %1795 = vmatmul.mubr.f32.gmra.mrb[0].mxu0 %v1728
    %v1796 = vpop.f32.mrb[0].mxu0
    %v1797 = vadd.f32 %v1722, %v1796
    %v1798 = vpop.f32.mrb[0].mxu0
    %1799 = vdwg.mxu0
    %v1800 = vadd.f32 %v1797, %v159
    %v1801 = vxor.u32 %v1800, 2147483648
    %v1802 = vmul.f32 %v1801, 1.442695
    %v1803 = vpow.pop %v1802
    %v1804 = vadd.f32 %v1803, 1.0
    %v1805 = vrcp.pop %v1804
    %v1806 = vmul.f32 1.0, %v1805
    %v1807 = vtanh.pop %v1800
    %v1808 = vmul.f32 %v1806, %v1256
    %1810 = vrot.lane.b32.xlu0 %v1807, 64
    %v1811 = vpop.permute.xlu0 %1810
    %v1813 = vmul.f32 %v1806, %v1811
    %1815 = vrot.lane.b32.xlu0 %v1813, 32
    %v1816 = vpop.permute.xlu0 %1815
    %v1818 = vadd.f32 %v1808, %v1816
    %v1819 = vtanh.pop %v1818
    %1821 = vrot.lane.b32.xlu0 %v1819, 64
    %v1822 = vpop.permute.xlu0 %1821
    %v1824 = vmul.f32 %v1806, %v1822
    %1826 = vrot.lane.b32.xlu0 %v1824, 32
    %v1827 = vpop.permute.xlu0 %1826
    %v1828 = vsel %vm329, %v1827, 0
    %1830 = vmatprep.subr.mxu0 0.0
    %1831 = vmatpush1.msra.mxu0 %v133
    %1832 = vmatprep.subr.mxu0 0.0
    %1833 = vmatpush1.msra.mxu0 %v134
    %1834 = vmatprep.subr.mxu0 0.0
    %1835 = vmatpush1.msra.mxu0 %v135
    %1836 = vmatprep.subr.mxu0 0.0
    %1837 = vmatpush1.msra.mxu0 %v136
    %1838 = vmatprep.subr.mxu0 0.0
    %1839 = vmatpush1.msra.mxu0 0.0
    %1840 = vmatprep.subr.mxu0 0.0
    %1841 = vmatpush1.msra.mxu0 0.0
    %1842 = vmatprep.subr.mxu0 0.0
    %1843 = vmatpush1.msra.mxu0 0.0
    %1844 = vmatprep.subr.mxu0 0.0
    %1845 = vmatpush1.msra.mxu0 0.0
    %1846 = vmatprep.subr.mxu0 0.0
    %1847 = vmatpush1.msra.mxu0 0.0
    %1848 = vmatprep.subr.mxu0 0.0
    %1849 = vmatpush1.msra.mxu0 0.0
    %1850 = vmatprep.subr.mxu0 0.0
    %1851 = vmatpush1.msra.mxu0 0.0
    %1852 = vmatprep.subr.mxu0 0.0
    %1853 = vmatpush1.msra.mxu0 0.0
    %1854 = vmatprep.subr.mxu0 0.0
    %1855 = vmatpush1.msra.mxu0 0.0
    %1856 = vmatprep.subr.mxu0 0.0
    %1857 = vmatpush1.msra.mxu0 0.0
    %1858 = vmatprep.subr.mxu0 0.0
    %1859 = vmatpush1.msra.mxu0 0.0
    %1860 = vmatprep.subr.mxu0 0.0
    %1861 = vmatpush1.msra.mxu0 0.0
    %1862 = vmatprep.subr.mxu0 0.0
    %1863 = vmatpush1.msra.mxu0 0.0
    %1864 = vmatprep.subr.mxu0 0.0
    %1865 = vmatpush1.msra.mxu0 0.0
    %1866 = vmatprep.subr.mxu0 0.0
    %1867 = vmatpush1.msra.mxu0 0.0
    %1868 = vmatprep.subr.mxu0 0.0
    %1869 = vmatpush1.msra.mxu0 0.0
    %1870 = vmatprep.subr.mxu0 0.0
    %1871 = vmatpush1.msra.mxu0 0.0
    %1872 = vmatprep.subr.mxu0 0.0
    %1873 = vmatpush1.msra.mxu0 0.0
    %1874 = vmatprep.subr.mxu0 0.0
    %1875 = vmatpush1.msra.mxu0 0.0
    %1876 = vmatprep.subr.mxu0 0.0
    %1877 = vmatpush1.msra.mxu0 0.0
    %1878 = vmatprep.subr.mxu0 0.0
    %1879 = vmatpush1.msra.mxu0 0.0
    %1880 = vmatprep.subr.mxu0 0.0
    %1881 = vmatpush1.msra.mxu0 0.0
    %1882 = vmatprep.subr.mxu0 0.0
    %1883 = vmatpush1.msra.mxu0 0.0
    %1884 = vmatprep.subr.mxu0 0.0
    %1885 = vmatpush1.msra.mxu0 0.0
    %1886 = vmatprep.subr.mxu0 0.0
    %1887 = vmatpush1.msra.mxu0 0.0
    %1888 = vmatprep.subr.mxu0 0.0
    %1889 = vmatpush1.msra.mxu0 0.0
    %1890 = vmatprep.subr.mxu0 0.0
    %1891 = vmatpush1.msra.mxu0 0.0
    %1892 = vmatprep.subr.mxu0 0.0
    %1893 = vmatpush1.msra.mxu0 0.0
    %1894 = vmatprep.mubr.f32.mxu0 0.0
    %1895 = vmatmul.mubr.f32.gmra.mrb[0].mxu0 %v1828
    %v1896 = vpop.f32.mrb[0].mxu0
    %v1897 = vadd.f32 0.0, %v1896
    %v1898 = vpop.f32.mrb[0].mxu0
    %1899 = vdwg.mxu0
    %v1900 = vlaneseq
    %v1901 = vshrl.u32 %v1900, 7
    %v1902 = vsub.s32 0, %v1901
    %v1903 = vrot.slane %v1897, %v1902
    %v1904 = vadd.f32 %v317, %v1903
    %v1905 = vtanh.pop %v1904
    %v1906 = vmul.f32 %v1905, %v775
    %v1907 = vsel %vm329, %v1906, 0.0
    %1908 = vadd.xlane.f32.xlu0 %v1907
    %v1909 = vpop.xlane.xlu0 %1908
    %v1910 = vrot.slane %v1909, 4
    %v1911 = vmax.f32 %v1909, %v1910
    %v1912 = vrot.slane %v1911, 2
    %v1913 = vmax.f32 %v1911, %v1912
    %v1914 = vrot.slane %v1913, 1
    %v1915 = vmax.f32 %v1913, %v1914
    %v1916 = vsub.f32 %v1909, %v1915
    %v1917 = vmul.f32 %v1916, 1.442695
    %v1918 = vpow.pop %v1917
    %v1919 = vrot.slane %v1918, 4
    %v1920 = vadd.f32 %v1918, %v1919
    %v1921 = vrot.slane %v1920, 2
    %v1922 = vadd.f32 %v1920, %v1921
    %v1923 = vrot.slane %v1922, 1
    %v1924 = vadd.f32 %v1922, %v1923
    %v1925 = vrcp.pop %v1924
    %v1926 = vmul.f32 %v1918, %v1925
    %v1927 = vmul.f32 %v1926, %v317
    %v1928 = vsel %vm329, %v1927, 0.0
    %v1929 = vrot.slane %v1928, 4
    %v1930 = vadd.f32 %v1928, %v1929
    %v1931 = vrot.slane %v1930, 2
    %v1932 = vadd.f32 %v1930, %v1931
    %v1933 = vrot.slane %v1932, 1
    %v1934 = vadd.f32 %v1932, %v1933
    %v1936 = vsel %vm329, %v1934, 0
    %1938 = vmatprep.subr.mxu0 0.0
    %1939 = vmatpush1.msra.mxu0 %v128
    %1940 = vmatprep.subr.mxu0 0.0
    %1941 = vmatpush1.msra.mxu0 %v129
    %1942 = vmatprep.subr.mxu0 0.0
    %1943 = vmatpush1.msra.mxu0 %v130
    %1944 = vmatprep.subr.mxu0 0.0
    %1945 = vmatpush1.msra.mxu0 %v131
    %1946 = vmatprep.subr.mxu0 0.0
    %1947 = vmatpush1.msra.mxu0 0.0
    %1948 = vmatprep.subr.mxu0 0.0
    %1949 = vmatpush1.msra.mxu0 0.0
    %1950 = vmatprep.subr.mxu0 0.0
    %1951 = vmatpush1.msra.mxu0 0.0
    %1952 = vmatprep.subr.mxu0 0.0
    %1953 = vmatpush1.msra.mxu0 0.0
    %1954 = vmatprep.subr.mxu0 0.0
    %1955 = vmatpush1.msra.mxu0 0.0
    %1956 = vmatprep.subr.mxu0 0.0
    %1957 = vmatpush1.msra.mxu0 0.0
    %1958 = vmatprep.subr.mxu0 0.0
    %1959 = vmatpush1.msra.mxu0 0.0
    %1960 = vmatprep.subr.mxu0 0.0
    %1961 = vmatpush1.msra.mxu0 0.0
    %1962 = vmatprep.subr.mxu0 0.0
    %1963 = vmatpush1.msra.mxu0 0.0
    %1964 = vmatprep.subr.mxu0 0.0
    %1965 = vmatpush1.msra.mxu0 0.0
    %1966 = vmatprep.subr.mxu0 0.0
    %1967 = vmatpush1.msra.mxu0 0.0
    %1968 = vmatprep.subr.mxu0 0.0
    %1969 = vmatpush1.msra.mxu0 0.0
    %1970 = vmatprep.subr.mxu0 0.0
    %1971 = vmatpush1.msra.mxu0 0.0
    %1972 = vmatprep.subr.mxu0 0.0
    %1973 = vmatpush1.msra.mxu0 0.0
    %1974 = vmatprep.subr.mxu0 0.0
    %1975 = vmatpush1.msra.mxu0 0.0
    %1976 = vmatprep.subr.mxu0 0.0
    %1977 = vmatpush1.msra.mxu0 0.0
    %1978 = vmatprep.subr.mxu0 0.0
    %1979 = vmatpush1.msra.mxu0 0.0
    %1980 = vmatprep.subr.mxu0 0.0
    %1981 = vmatpush1.msra.mxu0 0.0
    %1982 = vmatprep.subr.mxu0 0.0
    %1983 = vmatpush1.msra.mxu0 0.0
    %1984 = vmatprep.subr.mxu0 0.0
    %1985 = vmatpush1.msra.mxu0 0.0
    %1986 = vmatprep.subr.mxu0 0.0
    %1987 = vmatpush1.msra.mxu0 0.0
    %1988 = vmatprep.subr.mxu0 0.0
    %1989 = vmatpush1.msra.mxu0 0.0
    %1990 = vmatprep.subr.mxu0 0.0
    %1991 = vmatpush1.msra.mxu0 0.0
    %1992 = vmatprep.subr.mxu0 0.0
    %1993 = vmatpush1.msra.mxu0 0.0
    %1994 = vmatprep.subr.mxu0 0.0
    %1995 = vmatpush1.msra.mxu0 0.0
    %1996 = vmatprep.subr.mxu0 0.0
    %1997 = vmatpush1.msra.mxu0 0.0
    %1998 = vmatprep.subr.mxu0 0.0
    %1999 = vmatpush1.msra.mxu0 0.0
    %2000 = vmatprep.subr.mxu0 0.0
    %2001 = vmatpush1.msra.mxu0 0.0
    %2002 = vmatprep.mubr.f32.mxu0 0.0
    %2003 = vmatmul.mubr.f32.gmra.mrb[0].mxu0 %v1936
    %v2004 = vpop.f32.mrb[0].mxu0
    %v2005 = vadd.f32 0.0, %v2004
    %v2006 = vpop.f32.mrb[0].mxu0
    %2007 = vdwg.mxu0
    %v2008 = vlaneseq
    %v2009 = vshrl.u32 %v2008, 7
    %v2010 = vsub.s32 0, %v2009
    %v2011 = vrot.slane %v2005, %v2010
    %v2012 = vadd.f32 %v239, %v2011
    %v2013 = vtanh.pop %v2012
    %v2014 = vmul.f32 %v2013, %v889
    %v2015 = vsel %vm329, %v2014, 0.0
    %2016 = vadd.xlane.f32.xlu0 %v2015
    %v2017 = vpop.xlane.xlu0 %2016
    %v2018 = vsel %vm1476, -1e+18, %v2017
    %v2019 = vrot.slane %v2018, 4
    %v2020 = vmax.f32 %v2018, %v2019
    %v2021 = vrot.slane %v2020, 2
    %v2022 = vmax.f32 %v2020, %v2021
    %v2023 = vrot.slane %v2022, 1
    %v2024 = vmax.f32 %v2022, %v2023
    %vm2025 = vcmp.eq.f32.partialorder %v2018, %v2024
    %v2026 = vsel %vm2025, %v328, 8
    %v2027 = vrot.slane %v2026, 4
    %vm2028 = vcmp.lt.s32.totalorder %v2026, %v2027
    %v2029 = vsel %vm2028, %v2026, %v2027
    %v2030 = vrot.slane %v2029, 2
    %vm2031 = vcmp.lt.s32.totalorder %v2029, %v2030
    %v2032 = vsel %vm2031, %v2029, %v2030
    %v2033 = vrot.slane %v2032, 1
    %vm2034 = vcmp.lt.s32.totalorder %v2032, %v2033
    %v2035 = vsel %vm2034, %v2032, %v2033
    %2036 = vst.msk [vmem:[%s16 + $0x2] sm:$0x1] %vm912, %v2035
    %vm2037 = vcmp.eq.s32.totalorder %v328, %v2035
    %vm2038 = vmor %vm1476, %vm2037
    %v2039 = vsel %vm2037, 1, 0
    %vm2040 = vcmp.eq.s32.totalorder %v2039, 1
    %v2041 = vsel %vm2040, %v127, 0.0
    %v2042 = vsel %vm168, %v2041, 0.0
    %v2043 = vrot.slane %v2042, 4
    %v2044 = vadd.f32 %v2042, %v2043
    %v2045 = vrot.slane %v2044, 2
    %v2046 = vadd.f32 %v2044, %v2045
    %v2047 = vrot.slane %v2046, 1
    %v2048 = vadd.f32 %v2046, %v2047
    %2049 = vmatprep.subr.mxu0 0.0
    %2050 = vmatpush1.msra.mxu0 %v150
    %2051 = vmatprep.subr.mxu0 0.0
    %2052 = vmatpush1.msra.mxu0 %v151
    %2053 = vmatprep.subr.mxu0 0.0
    %2054 = vmatpush1.msra.mxu0 %v152
    %2055 = vmatprep.subr.mxu0 0.0
    %2056 = vmatpush1.msra.mxu0 %v153
    %2057 = vmatprep.subr.mxu0 0.0
    %2058 = vmatpush1.msra.mxu0 0.0
    %2059 = vmatprep.subr.mxu0 0.0
    %2060 = vmatpush1.msra.mxu0 0.0
    %2061 = vmatprep.subr.mxu0 0.0
    %2062 = vmatpush1.msra.mxu0 0.0
    %2063 = vmatprep.subr.mxu0 0.0
    %2064 = vmatpush1.msra.mxu0 0.0
    %2065 = vmatprep.subr.mxu0 0.0
    %2066 = vmatpush1.msra.mxu0 0.0
    %2067 = vmatprep.subr.mxu0 0.0
    %2068 = vmatpush1.msra.mxu0 0.0
    %2069 = vmatprep.subr.mxu0 0.0
    %2070 = vmatpush1.msra.mxu0 0.0
    %2071 = vmatprep.subr.mxu0 0.0
    %2072 = vmatpush1.msra.mxu0 0.0
    %2073 = vmatprep.subr.mxu0 0.0
    %2074 = vmatpush1.msra.mxu0 0.0
    %2075 = vmatprep.subr.mxu0 0.0
    %2076 = vmatpush1.msra.mxu0 0.0
    %2077 = vmatprep.subr.mxu0 0.0
    %2078 = vmatpush1.msra.mxu0 0.0
    %2079 = vmatprep.subr.mxu0 0.0
    %2080 = vmatpush1.msra.mxu0 0.0
    %2081 = vmatprep.subr.mxu0 0.0
    %2082 = vmatpush1.msra.mxu0 0.0
    %2083 = vmatprep.subr.mxu0 0.0
    %2084 = vmatpush1.msra.mxu0 0.0
    %2085 = vmatprep.subr.mxu0 0.0
    %2086 = vmatpush1.msra.mxu0 0.0
    %2087 = vmatprep.subr.mxu0 0.0
    %2088 = vmatpush1.msra.mxu0 0.0
    %2089 = vmatprep.subr.mxu0 0.0
    %2090 = vmatpush1.msra.mxu0 0.0
    %2091 = vmatprep.subr.mxu0 0.0
    %2092 = vmatpush1.msra.mxu0 0.0
    %2093 = vmatprep.subr.mxu0 0.0
    %2094 = vmatpush1.msra.mxu0 0.0
    %2095 = vmatprep.subr.mxu0 0.0
    %2096 = vmatpush1.msra.mxu0 0.0
    %2097 = vmatprep.subr.mxu0 0.0
    %2098 = vmatpush1.msra.mxu0 0.0
    %2099 = vmatprep.subr.mxu0 0.0
    %2100 = vmatpush1.msra.mxu0 0.0
    %2101 = vmatprep.subr.mxu0 0.0
    %2102 = vmatpush1.msra.mxu0 0.0
    %2103 = vmatprep.subr.mxu0 0.0
    %2104 = vmatpush1.msra.mxu0 0.0
    %2105 = vmatprep.subr.mxu0 0.0
    %2106 = vmatpush1.msra.mxu0 0.0
    %2107 = vmatprep.subr.mxu0 0.0
    %2108 = vmatpush1.msra.mxu0 0.0
    %2109 = vmatprep.subr.mxu0 0.0
    %2110 = vmatpush1.msra.mxu0 0.0
    %2111 = vmatprep.subr.mxu0 0.0
    %2112 = vmatpush1.msra.mxu0 0.0
    %2113 = vmatprep.mubr.f32.mxu0 0.0
    %2114 = vmatmul.mubr.f32.gmra.mrb[0].mxu0 %v1728
    %v2115 = vpop.f32.mrb[0].mxu0
    %v2116 = vadd.f32 0.0, %v2115
    %v2117 = vpop.f32.mrb[0].mxu0
    %2118 = vdwg.mxu0
    %v2120 = vsel %vm168, %v2048, 0
    %2122 = vmatprep.subr.mxu0 0.0
    %2123 = vmatpush1.msra.mxu0 %v138
    %2124 = vmatprep.subr.mxu0 0.0
    %2125 = vmatpush1.msra.mxu0 %v139
    %2126 = vmatprep.subr.mxu0 0.0
    %2127 = vmatpush1.msra.mxu0 %v140
    %2128 = vmatprep.subr.mxu0 0.0
    %2129 = vmatpush1.msra.mxu0 %v141
    %2130 = vmatprep.subr.mxu0 0.0
    %2131 = vmatpush1.msra.mxu0 %v142
    %2132 = vmatprep.subr.mxu0 0.0
    %2133 = vmatpush1.msra.mxu0 %v143
    %2134 = vmatprep.subr.mxu0 0.0
    %2135 = vmatpush1.msra.mxu0 %v144
    %2136 = vmatprep.subr.mxu0 0.0
    %2137 = vmatpush1.msra.mxu0 %v145
    %2138 = vmatprep.subr.mxu0 0.0
    %2139 = vmatpush1.msra.mxu0 0.0
    %2140 = vmatprep.subr.mxu0 0.0
    %2141 = vmatpush1.msra.mxu0 0.0
    %2142 = vmatprep.subr.mxu0 0.0
    %2143 = vmatpush1.msra.mxu0 0.0
    %2144 = vmatprep.subr.mxu0 0.0
    %2145 = vmatpush1.msra.mxu0 0.0
    %2146 = vmatprep.subr.mxu0 0.0
    %2147 = vmatpush1.msra.mxu0 0.0
    %2148 = vmatprep.subr.mxu0 0.0
    %2149 = vmatpush1.msra.mxu0 0.0
    %2150 = vmatprep.subr.mxu0 0.0
    %2151 = vmatpush1.msra.mxu0 0.0
    %2152 = vmatprep.subr.mxu0 0.0
    %2153 = vmatpush1.msra.mxu0 0.0
    %2154 = vmatprep.subr.mxu0 0.0
    %2155 = vmatpush1.msra.mxu0 0.0
    %2156 = vmatprep.subr.mxu0 0.0
    %2157 = vmatpush1.msra.mxu0 0.0
    %2158 = vmatprep.subr.mxu0 0.0
    %2159 = vmatpush1.msra.mxu0 0.0
    %2160 = vmatprep.subr.mxu0 0.0
    %2161 = vmatpush1.msra.mxu0 0.0
    %2162 = vmatprep.subr.mxu0 0.0
    %2163 = vmatpush1.msra.mxu0 0.0
    %2164 = vmatprep.subr.mxu0 0.0
    %2165 = vmatpush1.msra.mxu0 0.0
    %2166 = vmatprep.subr.mxu0 0.0
    %2167 = vmatpush1.msra.mxu0 0.0
    %2168 = vmatprep.subr.mxu0 0.0
    %2169 = vmatpush1.msra.mxu0 0.0
    %2170 = vmatprep.subr.mxu0 0.0
    %2171 = vmatpush1.msra.mxu0 0.0
    %2172 = vmatprep.subr.mxu0 0.0
    %2173 = vmatpush1.msra.mxu0 0.0
    %2174 = vmatprep.subr.mxu0 0.0
    %2175 = vmatpush1.msra.mxu0 0.0
    %2176 = vmatprep.subr.mxu0 0.0
    %2177 = vmatpush1.msra.mxu0 0.0
    %2178 = vmatprep.subr.mxu0 0.0
    %2179 = vmatpush1.msra.mxu0 0.0
    %2180 = vmatprep.subr.mxu0 0.0
    %2181 = vmatpush1.msra.mxu0 0.0
    %2182 = vmatprep.subr.mxu0 0.0
    %2183 = vmatpush1.msra.mxu0 0.0
    %2184 = vmatprep.subr.mxu0 0.0
    %2185 = vmatpush1.msra.mxu0 0.0
    %2186 = vmatprep.mubr.f32.mxu0 0.0
    %2187 = vmatmul.mubr.f32.gmra.mrb[0].mxu0 %v2120
    %v2188 = vpop.f32.mrb[0].mxu0
    %v2189 = vadd.f32 %v2116, %v2188
    %v2190 = vpop.f32.mrb[0].mxu0
    %2191 = vdwg.mxu0
    %v2192 = vadd.f32 %v2189, %v158
    %v2193 = vxor.u32 %v2192, 2147483648
    %v2194 = vmul.f32 %v2193, 1.442695
    %v2195 = vpow.pop %v2194
    %v2196 = vadd.f32 %v2195, 1.0
    %v2197 = vrcp.pop %v2196
    %v2198 = vmul.f32 1.0, %v2197
    %v2199 = vtanh.pop %v2192
    %v2200 = vmul.f32 %v2198, %v1648
    %2202 = vrot.lane.b32.xlu0 %v2199, 64
    %v2203 = vpop.permute.xlu0 %2202
    %v2205 = vmul.f32 %v2198, %v2203
    %2207 = vrot.lane.b32.xlu0 %v2205, 32
    %v2208 = vpop.permute.xlu0 %2207
    %v2210 = vadd.f32 %v2200, %v2208
    %v2211 = vtanh.pop %v2210
    %2213 = vrot.lane.b32.xlu0 %v2211, 64
    %v2214 = vpop.permute.xlu0 %2213
    %v2216 = vmul.f32 %v2198, %v2214
    %2217 = vmatprep.subr.mxu0 0.0
    %2218 = vmatpush1.msra.mxu0 %v154
    %2219 = vmatprep.subr.mxu0 0.0
    %2220 = vmatpush1.msra.mxu0 %v155
    %2221 = vmatprep.subr.mxu0 0.0
    %2222 = vmatpush1.msra.mxu0 %v156
    %2223 = vmatprep.subr.mxu0 0.0
    %2224 = vmatpush1.msra.mxu0 %v157
    %2225 = vmatprep.subr.mxu0 0.0
    %2226 = vmatpush1.msra.mxu0 0.0
    %2227 = vmatprep.subr.mxu0 0.0
    %2228 = vmatpush1.msra.mxu0 0.0
    %2229 = vmatprep.subr.mxu0 0.0
    %2230 = vmatpush1.msra.mxu0 0.0
    %2231 = vmatprep.subr.mxu0 0.0
    %2232 = vmatpush1.msra.mxu0 0.0
    %2233 = vmatprep.subr.mxu0 0.0
    %2234 = vmatpush1.msra.mxu0 0.0
    %2235 = vmatprep.subr.mxu0 0.0
    %2236 = vmatpush1.msra.mxu0 0.0
    %2237 = vmatprep.subr.mxu0 0.0
    %2238 = vmatpush1.msra.mxu0 0.0
    %2239 = vmatprep.subr.mxu0 0.0
    %2240 = vmatpush1.msra.mxu0 0.0
    %2241 = vmatprep.subr.mxu0 0.0
    %2242 = vmatpush1.msra.mxu0 0.0
    %2243 = vmatprep.subr.mxu0 0.0
    %2244 = vmatpush1.msra.mxu0 0.0
    %2245 = vmatprep.subr.mxu0 0.0
    %2246 = vmatpush1.msra.mxu0 0.0
    %2247 = vmatprep.subr.mxu0 0.0
    %2248 = vmatpush1.msra.mxu0 0.0
    %2249 = vmatprep.subr.mxu0 0.0
    %2250 = vmatpush1.msra.mxu0 0.0
    %2251 = vmatprep.subr.mxu0 0.0
    %2252 = vmatpush1.msra.mxu0 0.0
    %2253 = vmatprep.subr.mxu0 0.0
    %2254 = vmatpush1.msra.mxu0 0.0
    %2255 = vmatprep.subr.mxu0 0.0
    %2256 = vmatpush1.msra.mxu0 0.0
    %2257 = vmatprep.subr.mxu0 0.0
    %2258 = vmatpush1.msra.mxu0 0.0
    %2259 = vmatprep.subr.mxu0 0.0
    %2260 = vmatpush1.msra.mxu0 0.0
    %2261 = vmatprep.subr.mxu0 0.0
    %2262 = vmatpush1.msra.mxu0 0.0
    %2263 = vmatprep.subr.mxu0 0.0
    %2264 = vmatpush1.msra.mxu0 0.0
    %2265 = vmatprep.subr.mxu0 0.0
    %2266 = vmatpush1.msra.mxu0 0.0
    %2267 = vmatprep.subr.mxu0 0.0
    %2268 = vmatpush1.msra.mxu0 0.0
    %2269 = vmatprep.subr.mxu0 0.0
    %2270 = vmatpush1.msra.mxu0 0.0
    %2271 = vmatprep.subr.mxu0 0.0
    %2272 = vmatpush1.msra.mxu0 0.0
    %2273 = vmatprep.subr.mxu0 0.0
    %2274 = vmatpush1.msra.mxu0 0.0
    %2275 = vmatprep.subr.mxu0 0.0
    %2276 = vmatpush1.msra.mxu0 0.0
    %2277 = vmatprep.subr.mxu0 0.0
    %2278 = vmatpush1.msra.mxu0 0.0
    %2279 = vmatprep.subr.mxu0 0.0
    %2280 = vmatpush1.msra.mxu0 0.0
    %2281 = vmatprep.mubr.f32.mxu0 0.0
    %2282 = vmatmul.mubr.f32.gmra.mrb[0].mxu0 %v1828
    %v2283 = vpop.f32.mrb[0].mxu0
    %v2284 = vadd.f32 0.0, %v2283
    %v2285 = vpop.f32.mrb[0].mxu0
    %2286 = vdwg.mxu0
    %2288 = vrot.lane.b32.xlu0 %v2216, 32
    %v2289 = vpop.permute.xlu0 %2288
    %v2290 = vsel %vm329, %v2289, 0
    %2292 = vmatprep.subr.mxu0 0.0
    %2293 = vmatpush1.msra.mxu0 %v146
    %2294 = vmatprep.subr.mxu0 0.0
    %2295 = vmatpush1.msra.mxu0 %v147
    %2296 = vmatprep.subr.mxu0 0.0
    %2297 = vmatpush1.msra.mxu0 %v148
    %2298 = vmatprep.subr.mxu0 0.0
    %2299 = vmatpush1.msra.mxu0 %v149
    %2300 = vmatprep.subr.mxu0 0.0
    %2301 = vmatpush1.msra.mxu0 0.0
    %2302 = vmatprep.subr.mxu0 0.0
    %2303 = vmatpush1.msra.mxu0 0.0
    %2304 = vmatprep.subr.mxu0 0.0
    %2305 = vmatpush1.msra.mxu0 0.0
    %2306 = vmatprep.subr.mxu0 0.0
    %2307 = vmatpush1.msra.mxu0 0.0
    %2308 = vmatprep.subr.mxu0 0.0
    %2309 = vmatpush1.msra.mxu0 0.0
    %2310 = vmatprep.subr.mxu0 0.0
    %2311 = vmatpush1.msra.mxu0 0.0
    %2312 = vmatprep.subr.mxu0 0.0
    %2313 = vmatpush1.msra.mxu0 0.0
    %2314 = vmatprep.subr.mxu0 0.0
    %2315 = vmatpush1.msra.mxu0 0.0
    %2316 = vmatprep.subr.mxu0 0.0
    %2317 = vmatpush1.msra.mxu0 0.0
    %2318 = vmatprep.subr.mxu0 0.0
    %2319 = vmatpush1.msra.mxu0 0.0
    %2320 = vmatprep.subr.mxu0 0.0
    %2321 = vmatpush1.msra.mxu0 0.0
    %2322 = vmatprep.subr.mxu0 0.0
    %2323 = vmatpush1.msra.mxu0 0.0
    %2324 = vmatprep.subr.mxu0 0.0
    %2325 = vmatpush1.msra.mxu0 0.0
    %2326 = vmatprep.subr.mxu0 0.0
    %2327 = vmatpush1.msra.mxu0 0.0
    %2328 = vmatprep.subr.mxu0 0.0
    %2329 = vmatpush1.msra.mxu0 0.0
    %2330 = vmatprep.subr.mxu0 0.0
    %2331 = vmatpush1.msra.mxu0 0.0
    %2332 = vmatprep.subr.mxu0 0.0
    %2333 = vmatpush1.msra.mxu0 0.0
    %2334 = vmatprep.subr.mxu0 0.0
    %2335 = vmatpush1.msra.mxu0 0.0
    %2336 = vmatprep.subr.mxu0 0.0
    %2337 = vmatpush1.msra.mxu0 0.0
    %2338 = vmatprep.subr.mxu0 0.0
    %2339 = vmatpush1.msra.mxu0 0.0
    %2340 = vmatprep.subr.mxu0 0.0
    %2341 = vmatpush1.msra.mxu0 0.0
    %2342 = vmatprep.subr.mxu0 0.0
    %2343 = vmatpush1.msra.mxu0 0.0
    %2344 = vmatprep.subr.mxu0 0.0
    %2345 = vmatpush1.msra.mxu0 0.0
    %2346 = vmatprep.subr.mxu0 0.0
    %2347 = vmatpush1.msra.mxu0 0.0
    %2348 = vmatprep.subr.mxu0 0.0
    %2349 = vmatpush1.msra.mxu0 0.0
    %2350 = vmatprep.subr.mxu0 0.0
    %2351 = vmatpush1.msra.mxu0 0.0
    %2352 = vmatprep.subr.mxu0 0.0
    %2353 = vmatpush1.msra.mxu0 0.0
    %2354 = vmatprep.subr.mxu0 0.0
    %2355 = vmatpush1.msra.mxu0 0.0
    %2356 = vmatprep.mubr.f32.mxu0 0.0
    %2357 = vmatmul.mubr.f32.gmra.mrb[0].mxu0 %v2290
    %v2358 = vpop.f32.mrb[0].mxu0
    %v2359 = vadd.f32 %v2284, %v2358
    %v2360 = vpop.f32.mrb[0].mxu0
    %2361 = vdwg.mxu0
    %v2362 = vadd.f32 %v2359, %v159
    %v2363 = vxor.u32 %v2362, 2147483648
    %v2364 = vmul.f32 %v2363, 1.442695
    %v2365 = vpow.pop %v2364
    %v2366 = vadd.f32 %v2365, 1.0
    %v2367 = vrcp.pop %v2366
    %v2368 = vmul.f32 1.0, %v2367
    %v2369 = vtanh.pop %v2362
    %v2370 = vmul.f32 %v2368, %v1818
    %2372 = vrot.lane.b32.xlu0 %v2369, 64
    %v2373 = vpop.permute.xlu0 %2372
    %v2375 = vmul.f32 %v2368, %v2373
    %2377 = vrot.lane.b32.xlu0 %v2375, 32
    %v2378 = vpop.permute.xlu0 %2377
    %v2380 = vadd.f32 %v2370, %v2378
    %v2381 = vtanh.pop %v2380
    %2383 = vrot.lane.b32.xlu0 %v2381, 64
    %v2384 = vpop.permute.xlu0 %2383
    %v2386 = vmul.f32 %v2368, %v2384
    %2388 = vrot.lane.b32.xlu0 %v2386, 32
    %v2389 = vpop.permute.xlu0 %2388
    %v2390 = vsel %vm329, %v2389, 0
    %2392 = vmatprep.subr.mxu0 0.0
    %2393 = vmatpush1.msra.mxu0 %v133
    %2394 = vmatprep.subr.mxu0 0.0
    %2395 = vmatpush1.msra.mxu0 %v134
    %2396 = vmatprep.subr.mxu0 0.0
    %2397 = vmatpush1.msra.mxu0 %v135
    %2398 = vmatprep.subr.mxu0 0.0
    %2399 = vmatpush1.msra.mxu0 %v136
    %2400 = vmatprep.subr.mxu0 0.0
    %2401 = vmatpush1.msra.mxu0 0.0
    %2402 = vmatprep.subr.mxu0 0.0
    %2403 = vmatpush1.msra.mxu0 0.0
    %2404 = vmatprep.subr.mxu0 0.0
    %2405 = vmatpush1.msra.mxu0 0.0
    %2406 = vmatprep.subr.mxu0 0.0
    %2407 = vmatpush1.msra.mxu0 0.0
    %2408 = vmatprep.subr.mxu0 0.0
    %2409 = vmatpush1.msra.mxu0 0.0
    %2410 = vmatprep.subr.mxu0 0.0
    %2411 = vmatpush1.msra.mxu0 0.0
    %2412 = vmatprep.subr.mxu0 0.0
    %2413 = vmatpush1.msra.mxu0 0.0
    %2414 = vmatprep.subr.mxu0 0.0
    %2415 = vmatpush1.msra.mxu0 0.0
    %2416 = vmatprep.subr.mxu0 0.0
    %2417 = vmatpush1.msra.mxu0 0.0
    %2418 = vmatprep.subr.mxu0 0.0
    %2419 = vmatpush1.msra.mxu0 0.0
    %2420 = vmatprep.subr.mxu0 0.0
    %2421 = vmatpush1.msra.mxu0 0.0
    %2422 = vmatprep.subr.mxu0 0.0
    %2423 = vmatpush1.msra.mxu0 0.0
    %2424 = vmatprep.subr.mxu0 0.0
    %2425 = vmatpush1.msra.mxu0 0.0
    %2426 = vmatprep.subr.mxu0 0.0
    %2427 = vmatpush1.msra.mxu0 0.0
    %2428 = vmatprep.subr.mxu0 0.0
    %2429 = vmatpush1.msra.mxu0 0.0
    %2430 = vmatprep.subr.mxu0 0.0
    %2431 = vmatpush1.msra.mxu0 0.0
    %2432 = vmatprep.subr.mxu0 0.0
    %2433 = vmatpush1.msra.mxu0 0.0
    %2434 = vmatprep.subr.mxu0 0.0
    %2435 = vmatpush1.msra.mxu0 0.0
    %2436 = vmatprep.subr.mxu0 0.0
    %2437 = vmatpush1.msra.mxu0 0.0
    %2438 = vmatprep.subr.mxu0 0.0
    %2439 = vmatpush1.msra.mxu0 0.0
    %2440 = vmatprep.subr.mxu0 0.0
    %2441 = vmatpush1.msra.mxu0 0.0
    %2442 = vmatprep.subr.mxu0 0.0
    %2443 = vmatpush1.msra.mxu0 0.0
    %2444 = vmatprep.subr.mxu0 0.0
    %2445 = vmatpush1.msra.mxu0 0.0
    %2446 = vmatprep.subr.mxu0 0.0
    %2447 = vmatpush1.msra.mxu0 0.0
    %2448 = vmatprep.subr.mxu0 0.0
    %2449 = vmatpush1.msra.mxu0 0.0
    %2450 = vmatprep.subr.mxu0 0.0
    %2451 = vmatpush1.msra.mxu0 0.0
    %2452 = vmatprep.subr.mxu0 0.0
    %2453 = vmatpush1.msra.mxu0 0.0
    %2454 = vmatprep.subr.mxu0 0.0
    %2455 = vmatpush1.msra.mxu0 0.0
    %2456 = vmatprep.mubr.f32.mxu0 0.0
    %2457 = vmatmul.mubr.f32.gmra.mrb[0].mxu0 %v2390
    %v2458 = vpop.f32.mrb[0].mxu0
    %v2459 = vadd.f32 0.0, %v2458
    %v2460 = vpop.f32.mrb[0].mxu0
    %2461 = vdwg.mxu0
    %v2462 = vlaneseq
    %v2463 = vshrl.u32 %v2462, 7
    %v2464 = vsub.s32 0, %v2463
    %v2465 = vrot.slane %v2459, %v2464
    %v2466 = vadd.f32 %v317, %v2465
    %v2467 = vtanh.pop %v2466
    %v2468 = vmul.f32 %v2467, %v775
    %v2469 = vsel %vm329, %v2468, 0.0
    %2470 = vadd.xlane.f32.xlu0 %v2469
    %v2471 = vpop.xlane.xlu0 %2470
    %v2472 = vrot.slane %v2471, 4
    %v2473 = vmax.f32 %v2471, %v2472
    %v2474 = vrot.slane %v2473, 2
    %v2475 = vmax.f32 %v2473, %v2474
    %v2476 = vrot.slane %v2475, 1
    %v2477 = vmax.f32 %v2475, %v2476
    %v2478 = vsub.f32 %v2471, %v2477
    %v2479 = vmul.f32 %v2478, 1.442695
    %v2480 = vpow.pop %v2479
    %v2481 = vrot.slane %v2480, 4
    %v2482 = vadd.f32 %v2480, %v2481
    %v2483 = vrot.slane %v2482, 2
    %v2484 = vadd.f32 %v2482, %v2483
    %v2485 = vrot.slane %v2484, 1
    %v2486 = vadd.f32 %v2484, %v2485
    %v2487 = vrcp.pop %v2486
    %v2488 = vmul.f32 %v2480, %v2487
    %v2489 = vmul.f32 %v2488, %v317
    %v2490 = vsel %vm329, %v2489, 0.0
    %v2491 = vrot.slane %v2490, 4
    %v2492 = vadd.f32 %v2490, %v2491
    %v2493 = vrot.slane %v2492, 2
    %v2494 = vadd.f32 %v2492, %v2493
    %v2495 = vrot.slane %v2494, 1
    %v2496 = vadd.f32 %v2494, %v2495
    %v2498 = vsel %vm329, %v2496, 0
    %2500 = vmatprep.subr.mxu0 0.0
    %2501 = vmatpush1.msra.mxu0 %v128
    %2502 = vmatprep.subr.mxu0 0.0
    %2503 = vmatpush1.msra.mxu0 %v129
    %2504 = vmatprep.subr.mxu0 0.0
    %2505 = vmatpush1.msra.mxu0 %v130
    %2506 = vmatprep.subr.mxu0 0.0
    %2507 = vmatpush1.msra.mxu0 %v131
    %2508 = vmatprep.subr.mxu0 0.0
    %2509 = vmatpush1.msra.mxu0 0.0
    %2510 = vmatprep.subr.mxu0 0.0
    %2511 = vmatpush1.msra.mxu0 0.0
    %2512 = vmatprep.subr.mxu0 0.0
    %2513 = vmatpush1.msra.mxu0 0.0
    %2514 = vmatprep.subr.mxu0 0.0
    %2515 = vmatpush1.msra.mxu0 0.0
    %2516 = vmatprep.subr.mxu0 0.0
    %2517 = vmatpush1.msra.mxu0 0.0
    %2518 = vmatprep.subr.mxu0 0.0
    %2519 = vmatpush1.msra.mxu0 0.0
    %2520 = vmatprep.subr.mxu0 0.0
    %2521 = vmatpush1.msra.mxu0 0.0
    %2522 = vmatprep.subr.mxu0 0.0
    %2523 = vmatpush1.msra.mxu0 0.0
    %2524 = vmatprep.subr.mxu0 0.0
    %2525 = vmatpush1.msra.mxu0 0.0
    %2526 = vmatprep.subr.mxu0 0.0
    %2527 = vmatpush1.msra.mxu0 0.0
    %2528 = vmatprep.subr.mxu0 0.0
    %2529 = vmatpush1.msra.mxu0 0.0
    %2530 = vmatprep.subr.mxu0 0.0
    %2531 = vmatpush1.msra.mxu0 0.0
    %2532 = vmatprep.subr.mxu0 0.0
    %2533 = vmatpush1.msra.mxu0 0.0
    %2534 = vmatprep.subr.mxu0 0.0
    %2535 = vmatpush1.msra.mxu0 0.0
    %2536 = vmatprep.subr.mxu0 0.0
    %2537 = vmatpush1.msra.mxu0 0.0
    %2538 = vmatprep.subr.mxu0 0.0
    %2539 = vmatpush1.msra.mxu0 0.0
    %2540 = vmatprep.subr.mxu0 0.0
    %2541 = vmatpush1.msra.mxu0 0.0
    %2542 = vmatprep.subr.mxu0 0.0
    %2543 = vmatpush1.msra.mxu0 0.0
    %2544 = vmatprep.subr.mxu0 0.0
    %2545 = vmatpush1.msra.mxu0 0.0
    %2546 = vmatprep.subr.mxu0 0.0
    %2547 = vmatpush1.msra.mxu0 0.0
    %2548 = vmatprep.subr.mxu0 0.0
    %2549 = vmatpush1.msra.mxu0 0.0
    %2550 = vmatprep.subr.mxu0 0.0
    %2551 = vmatpush1.msra.mxu0 0.0
    %2552 = vmatprep.subr.mxu0 0.0
    %2553 = vmatpush1.msra.mxu0 0.0
    %2554 = vmatprep.subr.mxu0 0.0
    %2555 = vmatpush1.msra.mxu0 0.0
    %2556 = vmatprep.subr.mxu0 0.0
    %2557 = vmatpush1.msra.mxu0 0.0
    %2558 = vmatprep.subr.mxu0 0.0
    %2559 = vmatpush1.msra.mxu0 0.0
    %2560 = vmatprep.subr.mxu0 0.0
    %2561 = vmatpush1.msra.mxu0 0.0
    %2562 = vmatprep.subr.mxu0 0.0
    %2563 = vmatpush1.msra.mxu0 0.0
    %2564 = vmatprep.mubr.f32.mxu0 0.0
    %2565 = vmatmul.mubr.f32.gmra.mrb[0].mxu0 %v2498
    %v2566 = vpop.f32.mrb[0].mxu0
    %v2567 = vadd.f32 0.0, %v2566
    %v2568 = vpop.f32.mrb[0].mxu0
    %2569 = vdwg.mxu0
    %v2570 = vlaneseq
    %v2571 = vshrl.u32 %v2570, 7
    %v2572 = vsub.s32 0, %v2571
    %v2573 = vrot.slane %v2567, %v2572
    %v2574 = vadd.f32 %v239, %v2573
    %v2575 = vtanh.pop %v2574
    %v2576 = vmul.f32 %v2575, %v889
    %v2577 = vsel %vm329, %v2576, 0.0
    %2578 = vadd.xlane.f32.xlu0 %v2577
    %v2579 = vpop.xlane.xlu0 %2578
    %v2580 = vsel %vm2038, -1e+18, %v2579
    %v2581 = vrot.slane %v2580, 4
    %v2582 = vmax.f32 %v2580, %v2581
    %v2583 = vrot.slane %v2582, 2
    %v2584 = vmax.f32 %v2582, %v2583
    %v2585 = vrot.slane %v2584, 1
    %v2586 = vmax.f32 %v2584, %v2585
    %vm2587 = vcmp.eq.f32.partialorder %v2580, %v2586
    %v2588 = vsel %vm2587, %v328, 8
    %v2589 = vrot.slane %v2588, 4
    %vm2590 = vcmp.lt.s32.totalorder %v2588, %v2589
    %v2591 = vsel %vm2590, %v2588, %v2589
    %v2592 = vrot.slane %v2591, 2
    %vm2593 = vcmp.lt.s32.totalorder %v2591, %v2592
    %v2594 = vsel %vm2593, %v2591, %v2592
    %v2595 = vrot.slane %v2594, 1
    %vm2596 = vcmp.lt.s32.totalorder %v2594, %v2595
    %v2597 = vsel %vm2596, %v2594, %v2595
    %2598 = vst.msk [vmem:[%s16 + $0x3] sm:$0x1] %vm912, %v2597
    // Predicated region
    $region90: #{tpu_custom_call.1} parent=1 // pred_check
      _
    $region91: #{tpu_custom_call.1} parent=1 // pred_check_branch
      %2600 = sbr.rel (0) target = $region93
    $region92: #{tpu_custom_call.1} parent=1 // pred_region
      _
    $region93: #{tpu_custom_call.1} parent=1 // pred_fallthru
      _
    // Predicated region
    $region94: #{tpu_custom_call.1} parent=1 // pred_check
      _
    $region95: #{tpu_custom_call.1} parent=1 // pred_check_branch
      %2602 = sbr.rel (0) target = $region97
    $region96: #{tpu_custom_call.1} parent=1 // pred_region
      _
    $region97: #{tpu_custom_call.1} parent=1 // pred_fallthru
      _
    %2603 = vsyncpa [#allocation3], 1
    %2604 = vsyncpa [#allocation5], 1
    %2605 = vsyncpa [#allocation8], 1
    %2606 = vsyncpa [#allocation11], 1

</llo_original>
